<compile_context>
chip_gen: v7x
topology: tpu7x:2x2x1
jax: 0.10.0
libtpu: 0.0.40
codegen_flags: <defaults>
</compile_context>

<pallas_src>
import functools
import math

import jax
import jax.numpy as jnp
from jax import lax
from jax.experimental import pallas as pl
from jax.experimental.pallas import tpu as pltpu


def _attention_pool_kernel(num_heads, head_dim,
                           x_ref, pos_x_ref, pos_m_ref,
                           wq_ref, bq_ref, wk_ref, bk_ref, wv_ref, bv_ref,
                           wc_ref, bc_ref, out_ref):
    # x_ref:     (B, L, C)  B_TILE samples, tokens on sublanes, channels on lanes
    # pos_x_ref: (L, C)     positional embedding for the L spatial tokens
    # pos_m_ref: (1, C)     positional embedding for the mean token
    # w*_ref:    (C, C) bf16, pre-transposed so y = x @ w + b;  b*_ref: (1, C) f32
    # wc_ref:    (C, Dout) bf16;  bc_ref: (1, Dout) f32
    # out_ref:   (B, Dout)
    B, L, C = x_ref.shape
    nh = num_heads

    x = x_ref[...].astype(jnp.float32)                         # (B, L, C)
    pos_x = pos_x_ref[...]                                     # (L, C)
    pos_m = pos_m_ref[...]                                     # (1, C)

    # Mean token per sample (f32) + positional add.  The mean token stays on
    # its own path so the hot (L, C) block remains sublane-aligned.
    tok_m = jnp.mean(x, axis=1) + pos_m                        # (B, C)
    tok_x = x + pos_x[None, :, :]                              # (B, L, C)

    # bf16 operands for the MXU, f32 accumulation.
    tok_m_b = tok_m.astype(jnp.bfloat16)                       # (B, C)
    tok_x_b = tok_x.reshape(B * L, C).astype(jnp.bfloat16)     # (B*L, C)

    wq, wk, wv = wq_ref[...], wk_ref[...], wv_ref[...]
    bq, bk, bv = bq_ref[...], bk_ref[...], bv_ref[...]

    # Query comes only from the mean token.
    q = jnp.dot(tok_m_b, wq, preferred_element_type=jnp.float32) + bq    # (B, C)
    k_m = jnp.dot(tok_m_b, wk, preferred_element_type=jnp.float32) + bk  # (B, C)
    v_m = jnp.dot(tok_m_b, wv, preferred_element_type=jnp.float32) + bv  # (B, C)
    k_x = (jnp.dot(tok_x_b, wk, preferred_element_type=jnp.float32)
           + bk).reshape(B, L, C)                                        # (B, L, C)
    v_x = (jnp.dot(tok_x_b, wv, preferred_element_type=jnp.float32)
           + bv).reshape(B, L, C)                                        # (B, L, C)

    qs = q * (1.0 / math.sqrt(head_dim))                                 # (B, C)

    # Block-diagonal head selector: hsel[c, h] = 1 iff channel c is in head h.
    ch = lax.broadcasted_iota(jnp.int32, (C, nh), 0)
    h0 = lax.broadcasted_iota(jnp.int32, (C, nh), 1) * head_dim
    hsel = ((ch >= h0) & (ch < h0 + head_dim)).astype(jnp.float32)       # (C, nh)
    chT = lax.broadcasted_iota(jnp.int32, (nh, C), 1)
    h0T = lax.broadcasted_iota(jnp.int32, (nh, C), 0) * head_dim
    hsel_t = ((chT >= h0T) & (chT < h0T + head_dim)).astype(jnp.float32)  # (nh, C)

    # Per-head scores: contract (q * k) over each head's channels via hsel.
    qk_x = (qs[:, None, :] * k_x).reshape(B * L, C)                      # (B*L, C)
    s_x = jnp.dot(qk_x, hsel,
                  preferred_element_type=jnp.float32).reshape(B, L, nh)  # (B, L, nh)
    s_m = jnp.dot(qs * k_m, hsel, preferred_element_type=jnp.float32)    # (B, nh)

    # Softmax over (mean token + L tokens) without a misaligned S=L+1 concat.
    m = jnp.maximum(jnp.max(s_x, axis=1), s_m)                           # (B, nh)
    e_x = jnp.exp(s_x - m[:, None, :])                                   # (B, L, nh)
    e_m = jnp.exp(s_m - m)                                               # (B, nh)
    inv = pl.reciprocal(jnp.sum(e_x, axis=1) + e_m, approx=True)         # (B, nh)
    p_x = e_x * inv[:, None, :]                                          # (B, L, nh)
    p_m = e_m * inv                                                      # (B, nh)

    # Broadcast per-head probabilities back to channels and weight V.
    p_x_full = jnp.dot(p_x.reshape(B * L, nh), hsel_t,
                       preferred_element_type=jnp.float32).reshape(B, L, C)
    p_m_full = jnp.dot(p_m, hsel_t, preferred_element_type=jnp.float32)  # (B, C)
    attn = jnp.sum(p_x_full * v_x, axis=1) + p_m_full * v_m              # (B, C)

    # Output projection.
    y = jnp.dot(attn.astype(jnp.bfloat16), wc_ref[...],
                preferred_element_type=jnp.float32) + bc_ref[...]        # (B, Dout)
    out_ref[...] = y.astype(out_ref.dtype)


def attention_pool3d(x, params, num_heads, b_tile=8):
    """x: (N, C, D, H, W) float32. Returns (N, output_dim)."""
    N, C, D, H, W = x.shape
    L = D * H * W
    Dout = params["wc"].shape[0]
    head_dim = C // num_heads

    # Tokens-on-sublanes / channels-on-lanes layout for the kernel.
    # TODO(synk): in a full model this transpose should be fused into the
    # upstream producer so the (N, L, C) layout never round-trips HBM.
    x_tok = jnp.transpose(x.reshape(N, C, L), (0, 2, 1)).astype(jnp.float32)

    # Pad the batch to a multiple of the per-step batch tile (padded rows are
    # computed on garbage-free zero inputs and sliced off afterwards).
    pad = (-N) % b_tile
    if pad:
        x_tok = jnp.pad(x_tok, ((0, pad), (0, 0), (0, 0)))
    n_pad = N + pad

    pos = params["pos"].astype(jnp.float32)
    pos_m = pos[0:1]                                  # (1, C)   mean token
    pos_x = pos[1:]                                   # (L, C)   spatial tokens

    # bf16 weights for the MXU (f32 accumulation in-kernel), f32 biases.
    wq_t = params["wq"].T.astype(jnp.bfloat16)
    wk_t = params["wk"].T.astype(jnp.bfloat16)
    wv_t = params["wv"].T.astype(jnp.bfloat16)
    wc_t = params["wc"].T.astype(jnp.bfloat16)
    bq = params["bq"].reshape(1, C).astype(jnp.float32)
    bk = params["bk"].reshape(1, C).astype(jnp.float32)
    bv = params["bv"].reshape(1, C).astype(jnp.float32)
    bc = params["bc"].reshape(1, Dout).astype(jnp.float32)

    kernel = functools.partial(_attention_pool_kernel, num_heads, head_dim)
    rep = lambda b: (0, 0)     # replicated (constant) blocks, fetched once

    out = pl.pallas_call(
        kernel,
        out_shape=jax.ShapeDtypeStruct((n_pad, Dout), jnp.float32),
        grid_spec=pltpu.PrefetchScalarGridSpec(
            num_scalar_prefetch=0,
            grid=(n_pad // b_tile,),
            in_specs=[
                pl.BlockSpec((b_tile, L, C), lambda b: (b, 0, 0)),   # x tokens
                pl.BlockSpec((L, C), rep),                           # pos[1:]
                pl.BlockSpec((1, C), rep),                           # pos[0]
                pl.BlockSpec((C, C), rep),                           # Wq^T
                pl.BlockSpec((1, C), rep),                           # bq
                pl.BlockSpec((C, C), rep),                           # Wk^T
                pl.BlockSpec((1, C), rep),                           # bk
                pl.BlockSpec((C, C), rep),                           # Wv^T
                pl.BlockSpec((1, C), rep),                           # bv
                pl.BlockSpec((C, Dout), rep),                        # Wc^T
                pl.BlockSpec((1, Dout), rep),                        # bc
            ],
            out_specs=pl.BlockSpec((b_tile, Dout), lambda b: (b, 0)),
        ),
        compiler_params=pltpu.CompilerParams(
            dimension_semantics=("parallel",)),
    )(x_tok, pos_x, pos_m, wq_t, bq, wk_t, bk, wv_t, bv, wc_t, bc)

    return out[:N]


def reference_attention_pool3d(x, params, num_heads):
    """Pure-JAX f32 reference mirroring F.multi_head_attention_forward."""
    N, C = x.shape[0], x.shape[1]
    L = int(x.shape[2] * x.shape[3] * x.shape[4])
    xt = x.reshape(N, C, L).transpose(2, 0, 1)                  # (L, N, C)
    xt = jnp.concatenate([xt.mean(axis=0, keepdims=True), xt], axis=0)  # (S, N, C)
    xt = xt + params["pos"][:, None, :]
    q = xt[:1] @ params["wq"].T + params["bq"]                  # (1, N, C)
    k = xt @ params["wk"].T + params["bk"]                      # (S, N, C)
    v = xt @ params["wv"].T + params["bv"]                      # (S, N, C)
    Dh = C // num_heads
    scale = 1.0 / math.sqrt(Dh)
    qh = q.transpose(1, 0, 2).reshape(N, 1, num_heads, Dh).transpose(0, 2, 1, 3)
    kh = k.transpose(1, 0, 2).reshape(N, -1, num_heads, Dh).transpose(0, 2, 1, 3)
    vh = v.transpose(1, 0, 2).reshape(N, -1, num_heads, Dh).transpose(0, 2, 1, 3)
    s = jnp.einsum('nhqd,nhkd->nhqk', qh * scale, kh)
    p = jax.nn.softmax(s, axis=-1)
    o = jnp.einsum('nhqk,nhkd->nhqd', p, vh)
    o = o.transpose(0, 2, 1, 3).reshape(N, C)
    return o @ params["wc"].T + params["bc"]


def init_params(key, voxel_counts, embed_dim, output_dim):
    ks = jax.random.split(key, 9)
    bound = 1.0 / math.sqrt(embed_dim)
    return {
        "pos": jax.random.normal(ks[0], (voxel_counts + 1, embed_dim),
                                 jnp.float32) / math.sqrt(embed_dim),
        "wq": jax.random.uniform(ks[1], (embed_dim, embed_dim), jnp.float32, -bound, bound),
        "bq": jax.random.uniform(ks[2], (embed_dim,), jnp.float32, -bound, bound),
        "wk": jax.random.uniform(ks[3], (embed_dim, embed_dim), jnp.float32, -bound, bound),
        "bk": jax.random.uniform(ks[4], (embed_dim,), jnp.float32, -bound, bound),
        "wv": jax.random.uniform(ks[5], (embed_dim, embed_dim), jnp.float32, -bound, bound),
        "bv": jax.random.uniform(ks[6], (embed_dim,), jnp.float32, -bound, bound),
        "wc": jax.random.uniform(ks[7], (output_dim, embed_dim), jnp.float32, -bound, bound),
        "bc": jax.random.uniform(ks[8], (output_dim,), jnp.float32, -bound, bound),
    }


if __name__ == "__main__":
    # Module-consistent small shapes: batch=12 (exercises batch-tile padding),
    # embed_dim=32, spatial 4x4x4 => voxel_counts=64, num_heads=4, output_dim=16.
    N, C, D, H, W = 12, 32, 4, 4, 4
    num_heads = 4
    output_dim = 16
    voxel_counts = D * H * W

    key = jax.random.PRNGKey(0)
    k_x, k_p = jax.random.split(key)
    x = jax.random.normal(k_x, (N, C, D, H, W), jnp.float32)
    params = init_params(k_p, voxel_counts, C, output_dim)

    out = attention_pool3d(x, params, num_heads, b_tile=8)
    out = jax.block_until_ready(out)

    ref = reference_attention_pool3d(x, params, num_heads)
    assert out.shape == (N, output_dim)
    err = jnp.max(jnp.abs(out - ref))
    # bf16 MXU operands + approx reciprocal => loosen from the f32 1e-4 tol.
    assert jnp.allclose(out, ref, atol=5e-2, rtol=5e-2), f"max abs err {err}"

    print("KERNEL_OK")
</pallas_src>

<mosaic_0001>
module attributes {stable_mosaic.version = 11 : i64} {
  func.func @_attention_pool_kernel(%arg0: i32, %arg1: memref<8x64x32xf32, #tpu.memory_space<vmem>>, %arg2: memref<64x32xf32, #tpu.memory_space<vmem>>, %arg3: memref<1x32xf32, #tpu.memory_space<vmem>>, %arg4: memref<32x32xbf16, #tpu.memory_space<vmem>>, %arg5: memref<1x32xf32, #tpu.memory_space<vmem>>, %arg6: memref<32x32xbf16, #tpu.memory_space<vmem>>, %arg7: memref<1x32xf32, #tpu.memory_space<vmem>>, %arg8: memref<32x32xbf16, #tpu.memory_space<vmem>>, %arg9: memref<1x32xf32, #tpu.memory_space<vmem>>, %arg10: memref<32x16xbf16, #tpu.memory_space<vmem>>, %arg11: memref<1x16xf32, #tpu.memory_space<vmem>>, %arg12: memref<8x16xf32, #tpu.memory_space<vmem>>) attributes {dimension_semantics = [#tpu.dimension_semantics<parallel>], iteration_bounds = array<i64: 2>, scalar_prefetch = 0 : i64, scratch_operands = 0 : i64, tpu.core_type = #tpu.core_type<tc>, window_params = [{transform_indices = @transform_0, window_bounds = array<i64: 8, 64, 32>}, {pipeline_mode = #tpu.pipeline_mode<synchronous>, transform_indices = @transform_1, window_bounds = array<i64: 64, 32>}, {pipeline_mode = #tpu.pipeline_mode<synchronous>, transform_indices = @transform_2, window_bounds = array<i64: 1, 32>}, {pipeline_mode = #tpu.pipeline_mode<synchronous>, transform_indices = @transform_3, window_bounds = array<i64: 32, 32>}, {pipeline_mode = #tpu.pipeline_mode<synchronous>, transform_indices = @transform_4, window_bounds = array<i64: 1, 32>}, {pipeline_mode = #tpu.pipeline_mode<synchronous>, transform_indices = @transform_5, window_bounds = array<i64: 32, 32>}, {pipeline_mode = #tpu.pipeline_mode<synchronous>, transform_indices = @transform_6, window_bounds = array<i64: 1, 32>}, {pipeline_mode = #tpu.pipeline_mode<synchronous>, transform_indices = @transform_7, window_bounds = array<i64: 32, 32>}, {pipeline_mode = #tpu.pipeline_mode<synchronous>, transform_indices = @transform_8, window_bounds = array<i64: 1, 32>}, {pipeline_mode = #tpu.pipeline_mode<synchronous>, transform_indices = @transform_9, window_bounds = array<i64: 32, 16>}, {pipeline_mode = #tpu.pipeline_mode<synchronous>, transform_indices = @transform_10, window_bounds = array<i64: 1, 16>}, {transform_indices = @transform_11, window_bounds = array<i64: 8, 16>}]} {
    %c0 = arith.constant 0 : index
    %c0_0 = arith.constant 0 : index
    %c0_1 = arith.constant 0 : index
    %0 = vector.load %arg1[%c0, %c0_0, %c0_1] : memref<8x64x32xf32, #tpu.memory_space<vmem>>, vector<8x64x32xf32>
    %c0_2 = arith.constant 0 : index
    %c0_3 = arith.constant 0 : index
    %1 = vector.load %arg2[%c0_2, %c0_3] : memref<64x32xf32, #tpu.memory_space<vmem>>, vector<64x32xf32>
    %c0_4 = arith.constant 0 : index
    %c0_5 = arith.constant 0 : index
    %2 = vector.load %arg3[%c0_4, %c0_5] : memref<1x32xf32, #tpu.memory_space<vmem>>, vector<1x32xf32>
    %cst = arith.constant dense<0.000000e+00> : vector<8x32xf32>
    %3 = vector.multi_reduction <add>, %0, %cst [1] : vector<8x64x32xf32> to vector<8x32xf32>
    %cst_6 = arith.constant 6.400000e+01 : f32
    %4 = vector.broadcast %cst_6 : f32 to vector<8x32xf32>
    %5 = arith.divf %3, %4 : vector<8x32xf32>
    %6 = vector.broadcast %2 : vector<1x32xf32> to vector<8x32xf32>
    %7 = arith.addf %5, %6 : vector<8x32xf32>
    %8 = vector.shape_cast %1 : vector<64x32xf32> to vector<1x64x32xf32>
    %9 = vector.broadcast %8 : vector<1x64x32xf32> to vector<8x64x32xf32>
    %10 = arith.addf %0, %9 : vector<8x64x32xf32>
    %11 = arith.truncf %7 : vector<8x32xf32> to vector<8x32xbf16>
    %12 = vector.shape_cast %10 : vector<8x64x32xf32> to vector<512x32xf32>
    %13 = arith.truncf %12 : vector<512x32xf32> to vector<512x32xbf16>
    %c0_7 = arith.constant 0 : index
    %c0_8 = arith.constant 0 : index
    %14 = vector.load %arg4[%c0_7, %c0_8] : memref<32x32xbf16, #tpu.memory_space<vmem>>, vector<32x32xbf16>
    %c0_9 = arith.constant 0 : index
    %c0_10 = arith.constant 0 : index
    %15 = vector.load %arg6[%c0_9, %c0_10] : memref<32x32xbf16, #tpu.memory_space<vmem>>, vector<32x32xbf16>
    %c0_11 = arith.constant 0 : index
    %c0_12 = arith.constant 0 : index
    %16 = vector.load %arg8[%c0_11, %c0_12] : memref<32x32xbf16, #tpu.memory_space<vmem>>, vector<32x32xbf16>
    %c0_13 = arith.constant 0 : index
    %c0_14 = arith.constant 0 : index
    %17 = vector.load %arg5[%c0_13, %c0_14] : memref<1x32xf32, #tpu.memory_space<vmem>>, vector<1x32xf32>
    %c0_15 = arith.constant 0 : index
    %c0_16 = arith.constant 0 : index
    %18 = vector.load %arg7[%c0_15, %c0_16] : memref<1x32xf32, #tpu.memory_space<vmem>>, vector<1x32xf32>
    %c0_17 = arith.constant 0 : index
    %c0_18 = arith.constant 0 : index
    %19 = vector.load %arg9[%c0_17, %c0_18] : memref<1x32xf32, #tpu.memory_space<vmem>>, vector<1x32xf32>
    %cst_19 = arith.constant dense<0.000000e+00> : vector<8x32xf32>
    %20 = tpu.matmul %11, %14, %cst_19 {dimension_numbers = #tpu.dot_dimension_numbers<[1], [0], [0], [1], [0, 0, 1, 1], [], []>} : vector<8x32xbf16>, vector<32x32xbf16>, vector<8x32xf32> -> vector<8x32xf32>
    %21 = vector.broadcast %17 : vector<1x32xf32> to vector<8x32xf32>
    %22 = arith.addf %20, %21 : vector<8x32xf32>
    %cst_20 = arith.constant dense<0.000000e+00> : vector<8x32xf32>
    %23 = tpu.matmul %11, %15, %cst_20 {dimension_numbers = #tpu.dot_dimension_numbers<[1], [0], [0], [1], [0, 0, 1, 1], [], []>} : vector<8x32xbf16>, vector<32x32xbf16>, vector<8x32xf32> -> vector<8x32xf32>
    %24 = vector.broadcast %18 : vector<1x32xf32> to vector<8x32xf32>
    %25 = arith.addf %23, %24 : vector<8x32xf32>
    %cst_21 = arith.constant dense<0.000000e+00> : vector<8x32xf32>
    %26 = tpu.matmul %11, %16, %cst_21 {dimension_numbers = #tpu.dot_dimension_numbers<[1], [0], [0], [1], [0, 0, 1, 1], [], []>} : vector<8x32xbf16>, vector<32x32xbf16>, vector<8x32xf32> -> vector<8x32xf32>
    %27 = vector.broadcast %19 : vector<1x32xf32> to vector<8x32xf32>
    %28 = arith.addf %26, %27 : vector<8x32xf32>
    %cst_22 = arith.constant dense<0.000000e+00> : vector<512x32xf32>
    %29 = tpu.matmul %13, %15, %cst_22 {dimension_numbers = #tpu.dot_dimension_numbers<[1], [0], [0], [1], [0, 0, 1, 1], [], []>} : vector<512x32xbf16>, vector<32x32xbf16>, vector<512x32xf32> -> vector<512x32xf32>
    %30 = vector.broadcast %18 : vector<1x32xf32> to vector<512x32xf32>
    %31 = arith.addf %29, %30 : vector<512x32xf32>
    %32 = vector.shape_cast %31 : vector<512x32xf32> to vector<8x64x32xf32>
    %cst_23 = arith.constant dense<0.000000e+00> : vector<512x32xf32>
    %33 = tpu.matmul %13, %16, %cst_23 {dimension_numbers = #tpu.dot_dimension_numbers<[1], [0], [0], [1], [0, 0, 1, 1], [], []>} : vector<512x32xbf16>, vector<32x32xbf16>, vector<512x32xf32> -> vector<512x32xf32>
    %34 = vector.broadcast %19 : vector<1x32xf32> to vector<512x32xf32>
    %35 = arith.addf %33, %34 : vector<512x32xf32>
    %36 = vector.shape_cast %35 : vector<512x32xf32> to vector<8x64x32xf32>
    %cst_24 = arith.constant 0.353553385 : f32
    %37 = vector.broadcast %cst_24 : f32 to vector<8x32xf32>
    %38 = arith.mulf %22, %37 : vector<8x32xf32>
    %39 = tpu.iota {dimensions = array<i32: 0>} : vector<32x4xi32>
    %40 = tpu.iota {dimensions = array<i32: 1>} : vector<32x4xi32>
    %c8_i32 = arith.constant 8 : i32
    %41 = vector.broadcast %c8_i32 : i32 to vector<32x4xi32>
    %42 = arith.muli %40, %41 : vector<32x4xi32>
    %43 = arith.cmpi sge, %39, %42 : vector<32x4xi32>
    %c8_i32_25 = arith.constant 8 : i32
    %44 = vector.broadcast %c8_i32_25 : i32 to vector<32x4xi32>
    %45 = arith.addi %42, %44 : vector<32x4xi32>
    %46 = arith.cmpi slt, %39, %45 : vector<32x4xi32>
    %47 = arith.andi %43, %46 : vector<32x4xi1>
    %48 = arith.extui %47 : vector<32x4xi1> to vector<32x4xi32>
    %49 = arith.sitofp %48 : vector<32x4xi32> to vector<32x4xf32>
    %50 = tpu.iota {dimensions = array<i32: 1>} : vector<4x32xi32>
    %51 = tpu.iota {dimensions = array<i32: 0>} : vector<4x32xi32>
    %c8_i32_26 = arith.constant 8 : i32
    %52 = vector.broadcast %c8_i32_26 : i32 to vector<4x32xi32>
    %53 = arith.muli %51, %52 : vector<4x32xi32>
    %54 = arith.cmpi sge, %50, %53 : vector<4x32xi32>
    %c8_i32_27 = arith.constant 8 : i32
    %55 = vector.broadcast %c8_i32_27 : i32 to vector<4x32xi32>
    %56 = arith.addi %53, %55 : vector<4x32xi32>
    %57 = arith.cmpi slt, %50, %56 : vector<4x32xi32>
    %58 = arith.andi %54, %57 : vector<4x32xi1>
    %59 = arith.extui %58 : vector<4x32xi1> to vector<4x32xi32>
    %60 = arith.sitofp %59 : vector<4x32xi32> to vector<4x32xf32>
    %61 = vector.shape_cast %38 : vector<8x32xf32> to vector<8x1x32xf32>
    %62 = vector.broadcast %61 : vector<8x1x32xf32> to vector<8x64x32xf32>
    %63 = arith.mulf %62, %32 : vector<8x64x32xf32>
    %64 = vector.shape_cast %63 : vector<8x64x32xf32> to vector<512x32xf32>
    %cst_28 = arith.constant dense<0.000000e+00> : vector<512x4xf32>
    %65 = tpu.matmul %64, %49, %cst_28 {dimension_numbers = #tpu.dot_dimension_numbers<[1], [0], [0], [1], [0, 0, 1, 1], [], []>} : vector<512x32xf32>, vector<32x4xf32>, vector<512x4xf32> -> vector<512x4xf32>
    %66 = vector.shape_cast %65 : vector<512x4xf32> to vector<8x64x4xf32>
    %67 = arith.mulf %38, %25 : vector<8x32xf32>
    %cst_29 = arith.constant dense<0.000000e+00> : vector<8x4xf32>
    %68 = tpu.matmul %67, %49, %cst_29 {dimension_numbers = #tpu.dot_dimension_numbers<[1], [0], [0], [1], [0, 0, 1, 1], [], []>} : vector<8x32xf32>, vector<32x4xf32>, vector<8x4xf32> -> vector<8x4xf32>
    %cst_30 = arith.constant dense<0xFF800000> : vector<8x4xf32>
    %69 = vector.multi_reduction <maximumf>, %66, %cst_30 [1] : vector<8x64x4xf32> to vector<8x4xf32>
    %70 = arith.maximumf %69, %68 : vector<8x4xf32>
    %71 = vector.shape_cast %70 : vector<8x4xf32> to vector<8x1x4xf32>
    %72 = vector.broadcast %71 : vector<8x1x4xf32> to vector<8x64x4xf32>
    %73 = arith.subf %66, %72 : vector<8x64x4xf32>
    %74 = math.exp %73 : vector<8x64x4xf32>
    %75 = arith.subf %68, %70 : vector<8x4xf32>
    %76 = math.exp %75 : vector<8x4xf32>
    %cst_31 = arith.constant dense<0.000000e+00> : vector<8x4xf32>
    %77 = vector.multi_reduction <add>, %74, %cst_31 [1] : vector<8x64x4xf32> to vector<8x4xf32>
    %78 = arith.addf %77, %76 : vector<8x4xf32>
    %79 = tpu.reciprocal %78 {approx = true} : vector<8x4xf32> -> vector<8x4xf32>
    %80 = vector.shape_cast %79 : vector<8x4xf32> to vector<8x1x4xf32>
    %81 = vector.broadcast %80 : vector<8x1x4xf32> to vector<8x64x4xf32>
    %82 = arith.mulf %74, %81 : vector<8x64x4xf32>
    %83 = arith.mulf %76, %79 : vector<8x4xf32>
    %84 = vector.shape_cast %82 : vector<8x64x4xf32> to vector<512x4xf32>
    %cst_32 = arith.constant dense<0.000000e+00> : vector<512x32xf32>
    %85 = tpu.matmul %84, %60, %cst_32 {dimension_numbers = #tpu.dot_dimension_numbers<[1], [0], [0], [1], [0, 0, 1, 1], [], []>} : vector<512x4xf32>, vector<4x32xf32>, vector<512x32xf32> -> vector<512x32xf32>
    %86 = vector.shape_cast %85 : vector<512x32xf32> to vector<8x64x32xf32>
    %cst_33 = arith.constant dense<0.000000e+00> : vector<8x32xf32>
    %87 = tpu.matmul %83, %60, %cst_33 {dimension_numbers = #tpu.dot_dimension_numbers<[1], [0], [0], [1], [0, 0, 1, 1], [], []>} : vector<8x4xf32>, vector<4x32xf32>, vector<8x32xf32> -> vector<8x32xf32>
    %88 = arith.mulf %86, %36 : vector<8x64x32xf32>
    %cst_34 = arith.constant dense<0.000000e+00> : vector<8x32xf32>
    %89 = vector.multi_reduction <add>, %88, %cst_34 [1] : vector<8x64x32xf32> to vector<8x32xf32>
    %90 = arith.mulf %87, %28 : vector<8x32xf32>
    %91 = arith.addf %89, %90 : vector<8x32xf32>
    %92 = arith.truncf %91 : vector<8x32xf32> to vector<8x32xbf16>
    %c0_35 = arith.constant 0 : index
    %c0_36 = arith.constant 0 : index
    %93 = vector.load %arg10[%c0_35, %c0_36] : memref<32x16xbf16, #tpu.memory_space<vmem>>, vector<32x16xbf16>
    %cst_37 = arith.constant dense<0.000000e+00> : vector<8x16xf32>
    %94 = tpu.matmul %92, %93, %cst_37 {dimension_numbers = #tpu.dot_dimension_numbers<[1], [0], [0], [1], [0, 0, 1, 1], [], []>} : vector<8x32xbf16>, vector<32x16xbf16>, vector<8x16xf32> -> vector<8x16xf32>
    %c0_38 = arith.constant 0 : index
    %c0_39 = arith.constant 0 : index
    %95 = vector.load %arg11[%c0_38, %c0_39] : memref<1x16xf32, #tpu.memory_space<vmem>>, vector<1x16xf32>
    %96 = vector.broadcast %95 : vector<1x16xf32> to vector<8x16xf32>
    %97 = arith.addf %94, %96 : vector<8x16xf32>
    %c0_40 = arith.constant 0 : index
    %c0_41 = arith.constant 0 : index
    %98 = vector.load %arg12[%c0_40, %c0_41] : memref<8x16xf32, #tpu.memory_space<vmem>>, vector<8x16xf32>
    tpu.vector_store %arg12[%c0_40, %c0_41], %97 {strides = array<i32>} : memref<8x16xf32, #tpu.memory_space<vmem>>, vector<8x16xf32>,
    return
  }
  func.func @transform_0(%arg0: i32) -> (i32, i32, i32) {
    %c0_i32 = arith.constant 0 : i32
    %c0_i32_0 = arith.constant 0 : i32
    %c0_i32_1 = arith.constant 0 : i32
    return %arg0, %c0_i32, %c0_i32_0 : i32, i32, i32
  }
  func.func @transform_1(%arg0: i32) -> (i32, i32) {
    %c0_i32 = arith.constant 0 : i32
    %c0_i32_0 = arith.constant 0 : i32
    %c0_i32_1 = arith.constant 0 : i32
    return %c0_i32, %c0_i32_0 : i32, i32
  }
  func.func @transform_2(%arg0: i32) -> (i32, i32) {
    %c0_i32 = arith.constant 0 : i32
    %c0_i32_0 = arith.constant 0 : i32
    %c0_i32_1 = arith.constant 0 : i32
    return %c0_i32, %c0_i32_0 : i32, i32
  }
  func.func @transform_3(%arg0: i32) -> (i32, i32) {
    %c0_i32 = arith.constant 0 : i32
    %c0_i32_0 = arith.constant 0 : i32
    %c0_i32_1 = arith.constant 0 : i32
    return %c0_i32, %c0_i32_0 : i32, i32
  }
  func.func @transform_4(%arg0: i32) -> (i32, i32) {
    %c0_i32 = arith.constant 0 : i32
    %c0_i32_0 = arith.constant 0 : i32
    %c0_i32_1 = arith.constant 0 : i32
    return %c0_i32, %c0_i32_0 : i32, i32
  }
  func.func @transform_5(%arg0: i32) -> (i32, i32) {
    %c0_i32 = arith.constant 0 : i32
    %c0_i32_0 = arith.constant 0 : i32
    %c0_i32_1 = arith.constant 0 : i32
    return %c0_i32, %c0_i32_0 : i32, i32
  }
  func.func @transform_6(%arg0: i32) -> (i32, i32) {
    %c0_i32 = arith.constant 0 : i32
    %c0_i32_0 = arith.constant 0 : i32
    %c0_i32_1 = arith.constant 0 : i32
    return %c0_i32, %c0_i32_0 : i32, i32
  }
  func.func @transform_7(%arg0: i32) -> (i32, i32) {
    %c0_i32 = arith.constant 0 : i32
    %c0_i32_0 = arith.constant 0 : i32
    %c0_i32_1 = arith.constant 0 : i32
    return %c0_i32, %c0_i32_0 : i32, i32
  }
  func.func @transform_8(%arg0: i32) -> (i32, i32) {
    %c0_i32 = arith.constant 0 : i32
    %c0_i32_0 = arith.constant 0 : i32
    %c0_i32_1 = arith.constant 0 : i32
    return %c0_i32, %c0_i32_0 : i32, i32
  }
  func.func @transform_9(%arg0: i32) -> (i32, i32) {
    %c0_i32 = arith.constant 0 : i32
    %c0_i32_0 = arith.constant 0 : i32
    %c0_i32_1 = arith.constant 0 : i32
    return %c0_i32, %c0_i32_0 : i32, i32
  }
  func.func @transform_10(%arg0: i32) -> (i32, i32) {
    %c0_i32 = arith.constant 0 : i32
    %c0_i32_0 = arith.constant 0 : i32
    %c0_i32_1 = arith.constant 0 : i32
    return %c0_i32, %c0_i32_0 : i32, i32
  }
  func.func @transform_11(%arg0: i32) -> (i32, i32) {
    %c0_i32 = arith.constant 0 : i32
    %c0_i32_0 = arith.constant 0 : i32
    return %arg0, %c0_i32 : i32, i32
  }
}

</mosaic_0001>

<llo_original>
// kernel: tpu_custom_call.1
$region0: #{tpu_custom_call.1}
  #allocation0 [shape = 'u32[]', space=smem, size = 0x4, offset = 0x4, fixed_abs, tag = 'smem constant byte address 0x4 - core index']
  #allocation1 [shape = 'u32[144,128]{1,0:T(1,128)}', space=vmem, size = 0x12000, scoped, tag = 'internal scratch']
  %s0 = inlined_call_operand.vmem [shape: f32[16,64,32], index: 0, kind: input, shape index: {}]
  %s1 = inlined_call_operand.vmem [shape: f32[64,32], index: 1, kind: input, shape index: {}]
  %s2 = inlined_call_operand.vmem [shape: f32[1,32], index: 2, kind: input, shape index: {}]
  %s3 = inlined_call_operand.vmem [shape: bf16[32,32], index: 3, kind: input, shape index: {}]
  %s4 = inlined_call_operand.vmem [shape: f32[1,32], index: 4, kind: input, shape index: {}]
  %s5 = inlined_call_operand.vmem [shape: bf16[32,32], index: 5, kind: input, shape index: {}]
  %s6 = inlined_call_operand.vmem [shape: f32[1,32], index: 6, kind: input, shape index: {}]
  %s7 = inlined_call_operand.vmem [shape: bf16[32,32], index: 7, kind: input, shape index: {}]
  %s8 = inlined_call_operand.vmem [shape: f32[1,32], index: 8, kind: input, shape index: {}]
  %s9 = inlined_call_operand.vmem [shape: bf16[32,16], index: 9, kind: input, shape index: {}]
  %s10 = inlined_call_operand.vmem [shape: f32[1,16], index: 10, kind: input, shape index: {}]
  %s11 = inlined_call_operand.hbm [shape: f32[16,16], index: 11, kind: output, shape index: {}]
  %s12 = sld [smem:[#allocation0]]
  $region77: #{tpu_custom_call.1} parent=0
    _
  %s14 = ssub.s32 1, %s12
  %s15 = scalar_select 0, %s14, %s12
  $region1: #{tpu_custom_call.1} parent=0
    #allocation2 [shape = 'u8[8192]{0}', space=vmem, size = 0x2000, scoped, tag = 'output window, operand 0']
    #allocation3 [shape = 's32[2]{0}', space=sflag, size = 0x8, scoped, tag = 'scoped memory for tpu_custom_call.1']
    %16 = vsyncpa [#allocation3], 0
    %s17 = scalar_lea.sflag [#allocation3], 1
    %18 = vsyncpa %s17, 0
    loop: start=0, step=1, limit=4
    $region2: #{tpu_custom_call.1} parent=1 // loop_pre_header
      _
    $region3: #{tpu_custom_call.1} parent=1 // loop_header
      %s20 = sphi 0, %s24
      %p21 = scmp.ge.s32.totalorder %s20, 4
      %s30 = sphi 0, %s32
      %s33 = sphi 0, %s30
      %s34 = sphi 0, %s33
      %s50 = sphi 0, %s34
      %s54 = sphi 0, %s54
      %s56 = sphi 0, %s54
      %s57 = sphi 0, %s56
      %s71 = sphi 0, %s57
      %s75 = sphi 0, %s75
      %s77 = sphi 0, %s75
      %s78 = sphi 0, %s77
      %s92 = sphi 0, %s78
      %s96 = sphi 0, %s96
      %s98 = sphi 0, %s96
      %s99 = sphi 0, %s98
      %s113 = sphi 0, %s99
      %s117 = sphi 0, %s117
      %s119 = sphi 0, %s117
      %s120 = sphi 0, %s119
      %s134 = sphi 0, %s120
      %s138 = sphi 0, %s138
      %s140 = sphi 0, %s138
      %s141 = sphi 0, %s140
      %s155 = sphi 0, %s141
      %s159 = sphi 0, %s159
      %s161 = sphi 0, %s159
      %s162 = sphi 0, %s161
      %s176 = sphi 0, %s162
      %s180 = sphi 0, %s180
      %s182 = sphi 0, %s180
      %s183 = sphi 0, %s182
      %s197 = sphi 0, %s183
      %s201 = sphi 0, %s201
      %s203 = sphi 0, %s201
      %s204 = sphi 0, %s203
      %s218 = sphi 0, %s204
      %s222 = sphi 0, %s222
      %s224 = sphi 0, %s222
      %s225 = sphi 0, %s224
      %s239 = sphi 0, %s225
      %s243 = sphi 0, %s243
      %s245 = sphi 0, %s243
      %s246 = sphi 0, %s245
      %s260 = sphi 0, %s246
      %s266 = sphi 0, %s268
      %s269 = sphi 0, %s266
      %s270 = sphi 0, %s269
      %s286 = sphi 0, %s270
    $region4: #{tpu_custom_call.1} parent=1 // loop_header_branch
      %23 = sbr.rel (%p21) target = $region8
    $region5: #{tpu_custom_call.1} parent=1 // loop_body
      %s25 = ssub.s32 %s20, 1
      %s26 = ssub.s32 %s20, 2
      %s27 = sadd.s32 %s20, 1
      %s28 = ssub.s32 %s20, %s27
      %p29 = scmp.eq.s32.totalorder %s28, 0
      %s31 = sadd.s32 %s30, 1
      %s32 = scalar_select %p29, %s30, %s31
      %p35 = pneg %p29
      %p36 = scmp.eq.s32.totalorder %s20, 1
      %p37 = por %p35, %p36
      %p38 = scmp.ne.s32.totalorder %s30, %s33
      %p39 = scmp.eq.s32.totalorder %s20, 0
      %p40 = por %p38, %p39
      %p41 = scmp.ne.s32.totalorder %s30, %s33
      %p42 = scmp.eq.s32.totalorder %s25, 1
      %p43 = por %p41, %p42
      %p44 = scmp.ne.s32.totalorder %s33, %s34
      %p45 = scmp.eq.s32.totalorder %s25, 0
      %p46 = por %p44, %p45
      %p47 = scmp.ne.s32.totalorder %s33, %s34
      %p48 = scmp.eq.s32.totalorder %s26, 1
      %p49 = por %p47, %p48
      %p51 = scmp.ne.s32.totalorder %s34, %s50
      %p52 = scmp.eq.s32.totalorder %s26, 0
      %p53 = por %p51, %p52
      %s55 = sadd.s32 %s54, 1
      %p58 = scmp.eq.s32.totalorder %s20, 1
      %p59 = scmp.ne.s32.totalorder %s54, %s56
      %p60 = scmp.eq.s32.totalorder %s20, 0
      %p61 = por %p59, %p60
      %p62 = scmp.ne.s32.totalorder %s54, %s56
      %p63 = scmp.eq.s32.totalorder %s25, 1
      %p64 = por %p62, %p63
      %p65 = scmp.ne.s32.totalorder %s56, %s57
      %p66 = scmp.eq.s32.totalorder %s25, 0
      %p67 = por %p65, %p66
      %p68 = scmp.ne.s32.totalorder %s56, %s57
      %p69 = scmp.eq.s32.totalorder %s26, 1
      %p70 = por %p68, %p69
      %p72 = scmp.ne.s32.totalorder %s57, %s71
      %p73 = scmp.eq.s32.totalorder %s26, 0
      %p74 = por %p72, %p73
      %s76 = sadd.s32 %s75, 1
      %p79 = scmp.eq.s32.totalorder %s20, 1
      %p80 = scmp.ne.s32.totalorder %s75, %s77
      %p81 = scmp.eq.s32.totalorder %s20, 0
      %p82 = por %p80, %p81
      %p83 = scmp.ne.s32.totalorder %s75, %s77
      %p84 = scmp.eq.s32.totalorder %s25, 1
      %p85 = por %p83, %p84
      %p86 = scmp.ne.s32.totalorder %s77, %s78
      %p87 = scmp.eq.s32.totalorder %s25, 0
      %p88 = por %p86, %p87
      %p89 = scmp.ne.s32.totalorder %s77, %s78
      %p90 = scmp.eq.s32.totalorder %s26, 1
      %p91 = por %p89, %p90
      %p93 = scmp.ne.s32.totalorder %s78, %s92
      %p94 = scmp.eq.s32.totalorder %s26, 0
      %p95 = por %p93, %p94
      %s97 = sadd.s32 %s96, 1
      %p100 = scmp.eq.s32.totalorder %s20, 1
      %p101 = scmp.ne.s32.totalorder %s96, %s98
      %p102 = scmp.eq.s32.totalorder %s20, 0
      %p103 = por %p101, %p102
      %p104 = scmp.ne.s32.totalorder %s96, %s98
      %p105 = scmp.eq.s32.totalorder %s25, 1
      %p106 = por %p104, %p105
      %p107 = scmp.ne.s32.totalorder %s98, %s99
      %p108 = scmp.eq.s32.totalorder %s25, 0
      %p109 = por %p107, %p108
      %p110 = scmp.ne.s32.totalorder %s98, %s99
      %p111 = scmp.eq.s32.totalorder %s26, 1
      %p112 = por %p110, %p111
      %p114 = scmp.ne.s32.totalorder %s99, %s113
      %p115 = scmp.eq.s32.totalorder %s26, 0
      %p116 = por %p114, %p115
      %s118 = sadd.s32 %s117, 1
      %p121 = scmp.eq.s32.totalorder %s20, 1
      %p122 = scmp.ne.s32.totalorder %s117, %s119
      %p123 = scmp.eq.s32.totalorder %s20, 0
      %p124 = por %p122, %p123
      %p125 = scmp.ne.s32.totalorder %s117, %s119
      %p126 = scmp.eq.s32.totalorder %s25, 1
      %p127 = por %p125, %p126
      %p128 = scmp.ne.s32.totalorder %s119, %s120
      %p129 = scmp.eq.s32.totalorder %s25, 0
      %p130 = por %p128, %p129
      %p131 = scmp.ne.s32.totalorder %s119, %s120
      %p132 = scmp.eq.s32.totalorder %s26, 1
      %p133 = por %p131, %p132
      %p135 = scmp.ne.s32.totalorder %s120, %s134
      %p136 = scmp.eq.s32.totalorder %s26, 0
      %p137 = por %p135, %p136
      %s139 = sadd.s32 %s138, 1
      %p142 = scmp.eq.s32.totalorder %s20, 1
      %p143 = scmp.ne.s32.totalorder %s138, %s140
      %p144 = scmp.eq.s32.totalorder %s20, 0
      %p145 = por %p143, %p144
      %p146 = scmp.ne.s32.totalorder %s138, %s140
      %p147 = scmp.eq.s32.totalorder %s25, 1
      %p148 = por %p146, %p147
      %p149 = scmp.ne.s32.totalorder %s140, %s141
      %p150 = scmp.eq.s32.totalorder %s25, 0
      %p151 = por %p149, %p150
      %p152 = scmp.ne.s32.totalorder %s140, %s141
      %p153 = scmp.eq.s32.totalorder %s26, 1
      %p154 = por %p152, %p153
      %p156 = scmp.ne.s32.totalorder %s141, %s155
      %p157 = scmp.eq.s32.totalorder %s26, 0
      %p158 = por %p156, %p157
      %s160 = sadd.s32 %s159, 1
      %p163 = scmp.eq.s32.totalorder %s20, 1
      %p164 = scmp.ne.s32.totalorder %s159, %s161
      %p165 = scmp.eq.s32.totalorder %s20, 0
      %p166 = por %p164, %p165
      %p167 = scmp.ne.s32.totalorder %s159, %s161
      %p168 = scmp.eq.s32.totalorder %s25, 1
      %p169 = por %p167, %p168
      %p170 = scmp.ne.s32.totalorder %s161, %s162
      %p171 = scmp.eq.s32.totalorder %s25, 0
      %p172 = por %p170, %p171
      %p173 = scmp.ne.s32.totalorder %s161, %s162
      %p174 = scmp.eq.s32.totalorder %s26, 1
      %p175 = por %p173, %p174
      %p177 = scmp.ne.s32.totalorder %s162, %s176
      %p178 = scmp.eq.s32.totalorder %s26, 0
      %p179 = por %p177, %p178
      %s181 = sadd.s32 %s180, 1
      %p184 = scmp.eq.s32.totalorder %s20, 1
      %p185 = scmp.ne.s32.totalorder %s180, %s182
      %p186 = scmp.eq.s32.totalorder %s20, 0
      %p187 = por %p185, %p186
      %p188 = scmp.ne.s32.totalorder %s180, %s182
      %p189 = scmp.eq.s32.totalorder %s25, 1
      %p190 = por %p188, %p189
      %p191 = scmp.ne.s32.totalorder %s182, %s183
      %p192 = scmp.eq.s32.totalorder %s25, 0
      %p193 = por %p191, %p192
      %p194 = scmp.ne.s32.totalorder %s182, %s183
      %p195 = scmp.eq.s32.totalorder %s26, 1
      %p196 = por %p194, %p195
      %p198 = scmp.ne.s32.totalorder %s183, %s197
      %p199 = scmp.eq.s32.totalorder %s26, 0
      %p200 = por %p198, %p199
      %s202 = sadd.s32 %s201, 1
      %p205 = scmp.eq.s32.totalorder %s20, 1
      %p206 = scmp.ne.s32.totalorder %s201, %s203
      %p207 = scmp.eq.s32.totalorder %s20, 0
      %p208 = por %p206, %p207
      %p209 = scmp.ne.s32.totalorder %s201, %s203
      %p210 = scmp.eq.s32.totalorder %s25, 1
      %p211 = por %p209, %p210
      %p212 = scmp.ne.s32.totalorder %s203, %s204
      %p213 = scmp.eq.s32.totalorder %s25, 0
      %p214 = por %p212, %p213
      %p215 = scmp.ne.s32.totalorder %s203, %s204
      %p216 = scmp.eq.s32.totalorder %s26, 1
      %p217 = por %p215, %p216
      %p219 = scmp.ne.s32.totalorder %s204, %s218
      %p220 = scmp.eq.s32.totalorder %s26, 0
      %p221 = por %p219, %p220
      %s223 = sadd.s32 %s222, 1
      %p226 = scmp.eq.s32.totalorder %s20, 1
      %p227 = scmp.ne.s32.totalorder %s222, %s224
      %p228 = scmp.eq.s32.totalorder %s20, 0
      %p229 = por %p227, %p228
      %p230 = scmp.ne.s32.totalorder %s222, %s224
      %p231 = scmp.eq.s32.totalorder %s25, 1
      %p232 = por %p230, %p231
      %p233 = scmp.ne.s32.totalorder %s224, %s225
      %p234 = scmp.eq.s32.totalorder %s25, 0
      %p235 = por %p233, %p234
      %p236 = scmp.ne.s32.totalorder %s224, %s225
      %p237 = scmp.eq.s32.totalorder %s26, 1
      %p238 = por %p236, %p237
      %p240 = scmp.ne.s32.totalorder %s225, %s239
      %p241 = scmp.eq.s32.totalorder %s26, 0
      %p242 = por %p240, %p241
      %s244 = sadd.s32 %s243, 1
      %p247 = scmp.eq.s32.totalorder %s20, 1
      %p248 = scmp.ne.s32.totalorder %s243, %s245
      %p249 = scmp.eq.s32.totalorder %s20, 0
      %p250 = por %p248, %p249
      %p251 = scmp.ne.s32.totalorder %s243, %s245
      %p252 = scmp.eq.s32.totalorder %s25, 1
      %p253 = por %p251, %p252
      %p254 = scmp.ne.s32.totalorder %s245, %s246
      %p255 = scmp.eq.s32.totalorder %s25, 0
      %p256 = por %p254, %p255
      %p257 = scmp.ne.s32.totalorder %s245, %s246
      %p258 = scmp.eq.s32.totalorder %s26, 1
      %p259 = por %p257, %p258
      %p261 = scmp.ne.s32.totalorder %s246, %s260
      %p262 = scmp.eq.s32.totalorder %s26, 0
      %p263 = por %p261, %p262
      %s264 = ssub.s32 %s20, %s27
      %p265 = scmp.eq.s32.totalorder %s264, 0
      %s267 = sadd.s32 %s266, 1
      %s268 = scalar_select %p265, %s266, %s267
      %p271 = pneg %p265
      %p272 = scmp.eq.s32.totalorder %s20, 1
      %p273 = por %p271, %p272
      %p274 = scmp.ne.s32.totalorder %s266, %s269
      %p275 = scmp.eq.s32.totalorder %s20, 0
      %p276 = por %p274, %p275
      %p277 = scmp.ne.s32.totalorder %s266, %s269
      %p278 = scmp.eq.s32.totalorder %s25, 1
      %p279 = por %p277, %p278
      %p280 = scmp.ne.s32.totalorder %s269, %s270
      %p281 = scmp.eq.s32.totalorder %s25, 0
      %p282 = por %p280, %p281
      %p283 = scmp.ne.s32.totalorder %s269, %s270
      %p284 = scmp.eq.s32.totalorder %s26, 1
      %p285 = por %p283, %p284
      %p287 = scmp.ne.s32.totalorder %s270, %s286
      %p288 = scmp.eq.s32.totalorder %s26, 0
      %p289 = por %p287, %p288
      %p290 = scmp.le.s32.totalorder 1, %s20
      %p291 = scmp.lt.s32.totalorder %s20, 3
      %p292 = pnand %p290, %p291
      %p293 = pneg %p292
      // Predicated region
      $region9: #{tpu_custom_call.1} parent=5 // pred_check
        _
      $region10: #{tpu_custom_call.1} parent=5 // pred_check_branch
        %295 = sbr.rel (%p292) target = $region12
      $region11: #{tpu_custom_call.1} parent=5 // pred_region
        %s296 = ssub.s32 %s20, 1
        // Predicated region
        $region13: #{tpu_custom_call.1} parent=11 // pred_check
          %p297 = pneg %p67
        $region14: #{tpu_custom_call.1} parent=11 // pred_check_branch
          %299 = sbr.rel (%p297) target = $region16
        $region15: #{tpu_custom_call.1} parent=11 // pred_region
          _
        $region16: #{tpu_custom_call.1} parent=11 // pred_fallthru
          _
        // Predicated region
        $region17: #{tpu_custom_call.1} parent=11 // pred_check
          %p300 = pneg %p88
        $region18: #{tpu_custom_call.1} parent=11 // pred_check_branch
          %302 = sbr.rel (%p300) target = $region20
        $region19: #{tpu_custom_call.1} parent=11 // pred_region
          _
        $region20: #{tpu_custom_call.1} parent=11 // pred_fallthru
          _
        // Predicated region
        $region21: #{tpu_custom_call.1} parent=11 // pred_check
          %p303 = pneg %p109
        $region22: #{tpu_custom_call.1} parent=11 // pred_check_branch
          %305 = sbr.rel (%p303) target = $region24
        $region23: #{tpu_custom_call.1} parent=11 // pred_region
          _
        $region24: #{tpu_custom_call.1} parent=11 // pred_fallthru
          _
        // Predicated region
        $region25: #{tpu_custom_call.1} parent=11 // pred_check
          %p306 = pneg %p130
        $region26: #{tpu_custom_call.1} parent=11 // pred_check_branch
          %308 = sbr.rel (%p306) target = $region28
        $region27: #{tpu_custom_call.1} parent=11 // pred_region
          _
        $region28: #{tpu_custom_call.1} parent=11 // pred_fallthru
          _
        // Predicated region
        $region29: #{tpu_custom_call.1} parent=11 // pred_check
          %p309 = pneg %p151
        $region30: #{tpu_custom_call.1} parent=11 // pred_check_branch
          %311 = sbr.rel (%p309) target = $region32
        $region31: #{tpu_custom_call.1} parent=11 // pred_region
          _
        $region32: #{tpu_custom_call.1} parent=11 // pred_fallthru
          _
        // Predicated region
        $region33: #{tpu_custom_call.1} parent=11 // pred_check
          %p312 = pneg %p172
        $region34: #{tpu_custom_call.1} parent=11 // pred_check_branch
          %314 = sbr.rel (%p312) target = $region36
        $region35: #{tpu_custom_call.1} parent=11 // pred_region
          _
        $region36: #{tpu_custom_call.1} parent=11 // pred_fallthru
          _
        // Predicated region
        $region37: #{tpu_custom_call.1} parent=11 // pred_check
          %p315 = pneg %p193
        $region38: #{tpu_custom_call.1} parent=11 // pred_check_branch
          %317 = sbr.rel (%p315) target = $region40
        $region39: #{tpu_custom_call.1} parent=11 // pred_region
          _
        $region40: #{tpu_custom_call.1} parent=11 // pred_fallthru
          _
        // Predicated region
        $region41: #{tpu_custom_call.1} parent=11 // pred_check
          %p318 = pneg %p214
        $region42: #{tpu_custom_call.1} parent=11 // pred_check_branch
          %320 = sbr.rel (%p318) target = $region44
        $region43: #{tpu_custom_call.1} parent=11 // pred_region
          _
        $region44: #{tpu_custom_call.1} parent=11 // pred_fallthru
          _
        // Predicated region
        $region45: #{tpu_custom_call.1} parent=11 // pred_check
          %p321 = pneg %p235
        $region46: #{tpu_custom_call.1} parent=11 // pred_check_branch
          %323 = sbr.rel (%p321) target = $region48
        $region47: #{tpu_custom_call.1} parent=11 // pred_region
          _
        $region48: #{tpu_custom_call.1} parent=11 // pred_fallthru
          _
        // Predicated region
        $region49: #{tpu_custom_call.1} parent=11 // pred_check
          %p324 = pneg %p256
        $region50: #{tpu_custom_call.1} parent=11 // pred_check_branch
          %326 = sbr.rel (%p324) target = $region52
        $region51: #{tpu_custom_call.1} parent=11 // pred_region
          _
        $region52: #{tpu_custom_call.1} parent=11 // pred_fallthru
          _
      $region12: #{tpu_custom_call.1} parent=5 // pred_fallthru
        _
      %p327 = scmp.lt.s32.totalorder %s20, 2
      // Predicated region
      $region53: #{tpu_custom_call.1} parent=5 // pred_check
        %p328 = pneg %p327
      $region54: #{tpu_custom_call.1} parent=5 // pred_check_branch
        %330 = sbr.rel (%p328) target = $region56
      $region55: #{tpu_custom_call.1} parent=5 // pred_region
        // Predicated region
        $region57: #{tpu_custom_call.1} parent=55 // pred_check
          %p331 = pneg %p40
        $region58: #{tpu_custom_call.1} parent=55 // pred_check_branch
          %333 = sbr.rel (%p331) target = $region60
        $region59: #{tpu_custom_call.1} parent=55 // pred_region
          %s334 = smul.u32 8, %s20
          %p335 = scmp.lt.s32.totalorder %s334, 15
          %s336 = scalar_select %p335, %s334, 15
          %s337 = smul.addr %s336, 8
          %s338 = smul.addr %s337, 8
          %s339 = scalar_lea.vmem %s0, %s338
          %s340 = smul.u32 8, %s20
        $region60: #{tpu_custom_call.1} parent=55 // pred_fallthru
          _
      $region56: #{tpu_custom_call.1} parent=5 // pred_fallthru
        _
      %p341 = scmp.le.s32.totalorder 1, %s20
      %p342 = scmp.lt.s32.totalorder %s20, 3
      %p343 = pnand %p341, %p342
      %p344 = pneg %p343
      // Predicated region
      $region61: #{tpu_custom_call.1} parent=5 // pred_check
        _
      $region62: #{tpu_custom_call.1} parent=5 // pred_check_branch
        %346 = sbr.rel (%p343) target = $region64
      $region63: #{tpu_custom_call.1} parent=5 // pred_region
        %s347 = ssub.s32 %s20, 1
        %s348 = smul.u32 8, %s25
        %p349 = scmp.lt.s32.totalorder %s348, 15
        %s350 = scalar_select %p349, %s348, 15
        %s351 = smul.addr %s350, 8
        %s352 = smul.addr %s351, 8
        %s353 = scalar_lea.vmem %s0, %s352
        %p354 = pneg %p46
        %p355 = pneg %p43
        %p356 = pneg %p67
        %p357 = pneg %p64
        %p358 = pneg %p88
        %p359 = pneg %p85
        %p360 = pneg %p109
        %p361 = pneg %p106
        %p362 = pneg %p130
        %p363 = pneg %p127
        %p364 = pneg %p151
        %p365 = pneg %p148
        %p366 = pneg %p172
        %p367 = pneg %p169
        %p368 = pneg %p193
        %p369 = pneg %p190
        %p370 = pneg %p214
        %p371 = pneg %p211
        %p372 = pneg %p235
        %p373 = pneg %p232
        %p374 = pneg %p256
        %p375 = pneg %p253
        %p376 = pneg %p282
        %p377 = pneg %p279
        %s378 = sand.u32 %s269, 1
        %s379 = scalar_lea.sflag [#allocation3], %s378
        %s380 = sand.u32 %s269, 1
        %s381 = smul.addr %s380, 8
        %s382 = scalar_lea.vmem [#allocation2], %s381
        %s383 = smul.u32 8, %s25
        %p384 = scmp.lt.s32.totalorder %s383, 15
        %s385 = scalar_select %p384, %s383, 15
        %s386 = smul.addr %s385, 8
        %s387 = smul.addr %s386, 8
        %s388 = scalar_lea.vmem %s0, %s387
        %s389 = smul.u32 8, %s25
        %v391 = vld [vmem:[%s388] sm:$0xff]
        %v392 = vld [vmem:[%s388 + $0x8] sm:$0xff]
        %v393 = vld [vmem:[%s388 + $0x10] sm:$0xff]
        %v394 = vld [vmem:[%s388 + $0x18] sm:$0xff]
        %v395 = vld [vmem:[%s388 + $0x20] sm:$0xff]
        %v396 = vld [vmem:[%s388 + $0x28] sm:$0xff]
        %v397 = vld [vmem:[%s388 + $0x30] sm:$0xff]
        %v398 = vld [vmem:[%s388 + $0x38] sm:$0xff]
        %v399 = vld [vmem:[%s388 + $0x40] sm:$0xff]
        %v400 = vld [vmem:[%s388 + $0x48] sm:$0xff]
        %v401 = vld [vmem:[%s388 + $0x50] sm:$0xff]
        %v402 = vld [vmem:[%s388 + $0x58] sm:$0xff]
        %v403 = vld [vmem:[%s388 + $0x60] sm:$0xff]
        %v404 = vld [vmem:[%s388 + $0x68] sm:$0xff]
        %v405 = vld [vmem:[%s388 + $0x70] sm:$0xff]
        %v406 = vld [vmem:[%s388 + $0x78] sm:$0xff]
        %v407 = vld [vmem:[%s388 + $0x80] sm:$0xff]
        %v408 = vld [vmem:[%s388 + $0x88] sm:$0xff]
        %v409 = vld [vmem:[%s388 + $0x90] sm:$0xff]
        %v410 = vld [vmem:[%s388 + $0x98] sm:$0xff]
        %v411 = vld [vmem:[%s388 + $0xa0] sm:$0xff]
        %v412 = vld [vmem:[%s388 + $0xa8] sm:$0xff]
        %v413 = vld [vmem:[%s388 + $0xb0] sm:$0xff]
        %v414 = vld [vmem:[%s388 + $0xb8] sm:$0xff]
        %v415 = vld [vmem:[%s388 + $0xc0] sm:$0xff]
        %v416 = vld [vmem:[%s388 + $0xc8] sm:$0xff]
        %v417 = vld [vmem:[%s388 + $0xd0] sm:$0xff]
        %v418 = vld [vmem:[%s388 + $0xd8] sm:$0xff]
        %v419 = vld [vmem:[%s388 + $0xe0] sm:$0xff]
        %v420 = vld [vmem:[%s388 + $0xe8] sm:$0xff]
        %v421 = vld [vmem:[%s388 + $0xf0] sm:$0xff]
        %v422 = vld [vmem:[%s388 + $0xf8] sm:$0xff]
        %v423 = vld [vmem:[%s388 + $0x100] sm:$0xff]
        %v424 = vld [vmem:[%s388 + $0x108] sm:$0xff]
        %v425 = vld [vmem:[%s388 + $0x110] sm:$0xff]
        %v426 = vld [vmem:[%s388 + $0x118] sm:$0xff]
        %v427 = vld [vmem:[%s388 + $0x120] sm:$0xff]
        %v428 = vld [vmem:[%s388 + $0x128] sm:$0xff]
        %v429 = vld [vmem:[%s388 + $0x130] sm:$0xff]
        %v430 = vld [vmem:[%s388 + $0x138] sm:$0xff]
        %v431 = vld [vmem:[%s388 + $0x140] sm:$0xff]
        %v432 = vld [vmem:[%s388 + $0x148] sm:$0xff]
        %v433 = vld [vmem:[%s388 + $0x150] sm:$0xff]
        %v434 = vld [vmem:[%s388 + $0x158] sm:$0xff]
        %v435 = vld [vmem:[%s388 + $0x160] sm:$0xff]
        %v436 = vld [vmem:[%s388 + $0x168] sm:$0xff]
        %v437 = vld [vmem:[%s388 + $0x170] sm:$0xff]
        %v438 = vld [vmem:[%s388 + $0x178] sm:$0xff]
        %v439 = vld [vmem:[%s388 + $0x180] sm:$0xff]
        %v440 = vld [vmem:[%s388 + $0x188] sm:$0xff]
        %v441 = vld [vmem:[%s388 + $0x190] sm:$0xff]
        %v442 = vld [vmem:[%s388 + $0x198] sm:$0xff]
        %v443 = vld [vmem:[%s388 + $0x1a0] sm:$0xff]
        %v444 = vld [vmem:[%s388 + $0x1a8] sm:$0xff]
        %v445 = vld [vmem:[%s388 + $0x1b0] sm:$0xff]
        %v446 = vld [vmem:[%s388 + $0x1b8] sm:$0xff]
        %v447 = vld [vmem:[%s388 + $0x1c0] sm:$0xff]
        %v448 = vld [vmem:[%s388 + $0x1c8] sm:$0xff]
        %v449 = vld [vmem:[%s388 + $0x1d0] sm:$0xff]
        %v450 = vld [vmem:[%s388 + $0x1d8] sm:$0xff]
        %v451 = vld [vmem:[%s388 + $0x1e0] sm:$0xff]
        %v452 = vld [vmem:[%s388 + $0x1e8] sm:$0xff]
        %v453 = vld [vmem:[%s388 + $0x1f0] sm:$0xff]
        %v454 = vld [vmem:[%s388 + $0x1f8] sm:$0xff]
        %v455 = vld [vmem:[%s1] sm:$0xff]
        %v456 = vld [vmem:[%s1 + $0x8] sm:$0xff]
        %v457 = vld [vmem:[%s1 + $0x10] sm:$0xff]
        %v458 = vld [vmem:[%s1 + $0x18] sm:$0xff]
        %v459 = vld [vmem:[%s1 + $0x20] sm:$0xff]
        %v460 = vld [vmem:[%s1 + $0x28] sm:$0xff]
        %v461 = vld [vmem:[%s1 + $0x30] sm:$0xff]
        %v462 = vld [vmem:[%s1 + $0x38] sm:$0xff]
        %v463 = vld [vmem:[%s2] sm:$0x1]
        %vm464 = vcmask 261120
        %v465 = vsel %vm464, %v391, 0.0
        %v466 = vsel %vm464, %v392, 0.0
        %v467 = vadd.f32 %v465, %v466
        %v468 = vsel %vm464, %v393, 0.0
        %v469 = vadd.f32 %v467, %v468
        %v470 = vsel %vm464, %v394, 0.0
        %v471 = vadd.f32 %v469, %v470
        %v472 = vsel %vm464, %v395, 0.0
        %v473 = vadd.f32 %v471, %v472
        %v474 = vsel %vm464, %v396, 0.0
        %v475 = vadd.f32 %v473, %v474
        %v476 = vsel %vm464, %v397, 0.0
        %v477 = vadd.f32 %v475, %v476
        %v478 = vsel %vm464, %v398, 0.0
        %v479 = vadd.f32 %v477, %v478
        %v480 = vrot.slane %v479, 4
        %v481 = vadd.f32 %v479, %v480
        %v482 = vrot.slane %v481, 2
        %v483 = vadd.f32 %v481, %v482
        %v484 = vrot.slane %v483, 1
        %v485 = vadd.f32 %v483, %v484
        %v486 = vsel %vm464, %v399, 0.0
        %v487 = vsel %vm464, %v400, 0.0
        %v488 = vadd.f32 %v486, %v487
        %v489 = vsel %vm464, %v401, 0.0
        %v490 = vadd.f32 %v488, %v489
        %v491 = vsel %vm464, %v402, 0.0
        %v492 = vadd.f32 %v490, %v491
        %v493 = vsel %vm464, %v403, 0.0
        %v494 = vadd.f32 %v492, %v493
        %v495 = vsel %vm464, %v404, 0.0
        %v496 = vadd.f32 %v494, %v495
        %v497 = vsel %vm464, %v405, 0.0
        %v498 = vadd.f32 %v496, %v497
        %v499 = vsel %vm464, %v406, 0.0
        %v500 = vadd.f32 %v498, %v499
        %v501 = vrot.slane %v500, 4
        %v502 = vadd.f32 %v500, %v501
        %v503 = vrot.slane %v502, 2
        %v504 = vadd.f32 %v502, %v503
        %v505 = vrot.slane %v504, 1
        %v506 = vadd.f32 %v504, %v505
        %v507 = vsel %vm464, %v407, 0.0
        %v508 = vsel %vm464, %v408, 0.0
        %v509 = vadd.f32 %v507, %v508
        %v510 = vsel %vm464, %v409, 0.0
        %v511 = vadd.f32 %v509, %v510
        %v512 = vsel %vm464, %v410, 0.0
        %v513 = vadd.f32 %v511, %v512
        %v514 = vsel %vm464, %v411, 0.0
        %v515 = vadd.f32 %v513, %v514
        %v516 = vsel %vm464, %v412, 0.0
        %v517 = vadd.f32 %v515, %v516
        %v518 = vsel %vm464, %v413, 0.0
        %v519 = vadd.f32 %v517, %v518
        %v520 = vsel %vm464, %v414, 0.0
        %v521 = vadd.f32 %v519, %v520
        %v522 = vrot.slane %v521, 4
        %v523 = vadd.f32 %v521, %v522
        %v524 = vrot.slane %v523, 2
        %v525 = vadd.f32 %v523, %v524
        %v526 = vrot.slane %v525, 1
        %v527 = vadd.f32 %v525, %v526
        %v528 = vsel %vm464, %v415, 0.0
        %v529 = vsel %vm464, %v416, 0.0
        %v530 = vadd.f32 %v528, %v529
        %v531 = vsel %vm464, %v417, 0.0
        %v532 = vadd.f32 %v530, %v531
        %v533 = vsel %vm464, %v418, 0.0
        %v534 = vadd.f32 %v532, %v533
        %v535 = vsel %vm464, %v419, 0.0
        %v536 = vadd.f32 %v534, %v535
        %v537 = vsel %vm464, %v420, 0.0
        %v538 = vadd.f32 %v536, %v537
        %v539 = vsel %vm464, %v421, 0.0
        %v540 = vadd.f32 %v538, %v539
        %v541 = vsel %vm464, %v422, 0.0
        %v542 = vadd.f32 %v540, %v541
        %v543 = vrot.slane %v542, 4
        %v544 = vadd.f32 %v542, %v543
        %v545 = vrot.slane %v544, 2
        %v546 = vadd.f32 %v544, %v545
        %v547 = vrot.slane %v546, 1
        %v548 = vadd.f32 %v546, %v547
        %v549 = vsel %vm464, %v423, 0.0
        %v550 = vsel %vm464, %v424, 0.0
        %v551 = vadd.f32 %v549, %v550
        %v552 = vsel %vm464, %v425, 0.0
        %v553 = vadd.f32 %v551, %v552
        %v554 = vsel %vm464, %v426, 0.0
        %v555 = vadd.f32 %v553, %v554
        %v556 = vsel %vm464, %v427, 0.0
        %v557 = vadd.f32 %v555, %v556
        %v558 = vsel %vm464, %v428, 0.0
        %v559 = vadd.f32 %v557, %v558
        %v560 = vsel %vm464, %v429, 0.0
        %v561 = vadd.f32 %v559, %v560
        %v562 = vsel %vm464, %v430, 0.0
        %v563 = vadd.f32 %v561, %v562
        %v564 = vrot.slane %v563, 4
        %v565 = vadd.f32 %v563, %v564
        %v566 = vrot.slane %v565, 2
        %v567 = vadd.f32 %v565, %v566
        %v568 = vrot.slane %v567, 1
        %v569 = vadd.f32 %v567, %v568
        %v570 = vsel %vm464, %v431, 0.0
        %v571 = vsel %vm464, %v432, 0.0
        %v572 = vadd.f32 %v570, %v571
        %v573 = vsel %vm464, %v433, 0.0
        %v574 = vadd.f32 %v572, %v573
        %v575 = vsel %vm464, %v434, 0.0
        %v576 = vadd.f32 %v574, %v575
        %v577 = vsel %vm464, %v435, 0.0
        %v578 = vadd.f32 %v576, %v577
        %v579 = vsel %vm464, %v436, 0.0
        %v580 = vadd.f32 %v578, %v579
        %v581 = vsel %vm464, %v437, 0.0
        %v582 = vadd.f32 %v580, %v581
        %v583 = vsel %vm464, %v438, 0.0
        %v584 = vadd.f32 %v582, %v583
        %v585 = vrot.slane %v584, 4
        %v586 = vadd.f32 %v584, %v585
        %v587 = vrot.slane %v586, 2
        %v588 = vadd.f32 %v586, %v587
        %v589 = vrot.slane %v588, 1
        %v590 = vadd.f32 %v588, %v589
        %v591 = vsel %vm464, %v439, 0.0
        %v592 = vsel %vm464, %v440, 0.0
        %v593 = vadd.f32 %v591, %v592
        %v594 = vsel %vm464, %v441, 0.0
        %v595 = vadd.f32 %v593, %v594
        %v596 = vsel %vm464, %v442, 0.0
        %v597 = vadd.f32 %v595, %v596
        %v598 = vsel %vm464, %v443, 0.0
        %v599 = vadd.f32 %v597, %v598
        %v600 = vsel %vm464, %v444, 0.0
        %v601 = vadd.f32 %v599, %v600
        %v602 = vsel %vm464, %v445, 0.0
        %v603 = vadd.f32 %v601, %v602
        %v604 = vsel %vm464, %v446, 0.0
        %v605 = vadd.f32 %v603, %v604
        %v606 = vrot.slane %v605, 4
        %v607 = vadd.f32 %v605, %v606
        %v608 = vrot.slane %v607, 2
        %v609 = vadd.f32 %v607, %v608
        %v610 = vrot.slane %v609, 1
        %v611 = vadd.f32 %v609, %v610
        %v612 = vsel %vm464, %v447, 0.0
        %v613 = vsel %vm464, %v448, 0.0
        %v614 = vadd.f32 %v612, %v613
        %v615 = vsel %vm464, %v449, 0.0
        %v616 = vadd.f32 %v614, %v615
        %v617 = vsel %vm464, %v450, 0.0
        %v618 = vadd.f32 %v616, %v617
        %v619 = vsel %vm464, %v451, 0.0
        %v620 = vadd.f32 %v618, %v619
        %v621 = vsel %vm464, %v452, 0.0
        %v622 = vadd.f32 %v620, %v621
        %v623 = vsel %vm464, %v453, 0.0
        %v624 = vadd.f32 %v622, %v623
        %v625 = vsel %vm464, %v454, 0.0
        %v626 = vadd.f32 %v624, %v625
        %v627 = vrot.slane %v626, 4
        %v628 = vadd.f32 %v626, %v627
        %v629 = vrot.slane %v628, 2
        %v630 = vadd.f32 %v628, %v629
        %v631 = vrot.slane %v630, 1
        %v632 = vadd.f32 %v630, %v631
        %v633 = vrcp.pop 64.0
        %v634 = vmul.f32 %v485, %v633
        %v635 = vmul.f32 %v506, %v633
        %v636 = vmul.f32 %v527, %v633
        %v637 = vmul.f32 %v548, %v633
        %v638 = vmul.f32 %v569, %v633
        %v639 = vmul.f32 %v590, %v633
        %v640 = vmul.f32 %v611, %v633
        %v641 = vmul.f32 %v632, %v633
        %v643 = vlaneseq
        %v644 = vshrl.u32 %v643, 7
        %v645 = vsub.s32 0, %v644
        %v646 = vrot.slane %v463, %v645
        %v648 = vadd.f32 %v634, %v646
        %v649 = vadd.f32 %v635, %v646
        %v650 = vadd.f32 %v636, %v646
        %v651 = vadd.f32 %v637, %v646
        %v652 = vadd.f32 %v638, %v646
        %v653 = vadd.f32 %v639, %v646
        %v654 = vadd.f32 %v640, %v646
        %v655 = vadd.f32 %v641, %v646
        %v656 = vadd.f32 %v391, %v455
        %v657 = vadd.f32 %v392, %v456
        %v658 = vadd.f32 %v393, %v457
        %v659 = vadd.f32 %v394, %v458
        %v660 = vadd.f32 %v395, %v459
        %v661 = vadd.f32 %v396, %v460
        %v662 = vadd.f32 %v397, %v461
        %v663 = vadd.f32 %v398, %v462
        %v664 = vadd.f32 %v399, %v455
        %v665 = vadd.f32 %v400, %v456
        %v666 = vadd.f32 %v401, %v457
        %v667 = vadd.f32 %v402, %v458
        %v668 = vadd.f32 %v403, %v459
        %v669 = vadd.f32 %v404, %v460
        %v670 = vadd.f32 %v405, %v461
        %v671 = vadd.f32 %v406, %v462
        %v672 = vadd.f32 %v407, %v455
        %v673 = vadd.f32 %v408, %v456
        %v674 = vadd.f32 %v409, %v457
        %v675 = vadd.f32 %v410, %v458
        %v676 = vadd.f32 %v411, %v459
        %v677 = vadd.f32 %v412, %v460
        %v678 = vadd.f32 %v413, %v461
        %v679 = vadd.f32 %v414, %v462
        %v680 = vadd.f32 %v415, %v455
        %v681 = vadd.f32 %v416, %v456
        %v682 = vadd.f32 %v417, %v457
        %v683 = vadd.f32 %v418, %v458
        %v684 = vadd.f32 %v419, %v459
        %v685 = vadd.f32 %v420, %v460
        %v686 = vadd.f32 %v421, %v461
        %v687 = vadd.f32 %v422, %v462
        %v688 = vadd.f32 %v423, %v455
        %v689 = vadd.f32 %v424, %v456
        %v690 = vadd.f32 %v425, %v457
        %v691 = vadd.f32 %v426, %v458
        %v692 = vadd.f32 %v427, %v459
        %v693 = vadd.f32 %v428, %v460
        %v694 = vadd.f32 %v429, %v461
        %v695 = vadd.f32 %v430, %v462
        %v696 = vadd.f32 %v431, %v455
        %v697 = vadd.f32 %v432, %v456
        %v698 = vadd.f32 %v433, %v457
        %v699 = vadd.f32 %v434, %v458
        %v700 = vadd.f32 %v435, %v459
        %v701 = vadd.f32 %v436, %v460
        %v702 = vadd.f32 %v437, %v461
        %v703 = vadd.f32 %v438, %v462
        %v704 = vadd.f32 %v439, %v455
        %v705 = vadd.f32 %v440, %v456
        %v706 = vadd.f32 %v441, %v457
        %v707 = vadd.f32 %v442, %v458
        %v708 = vadd.f32 %v443, %v459
        %v709 = vadd.f32 %v444, %v460
        %v710 = vadd.f32 %v445, %v461
        %v711 = vadd.f32 %v446, %v462
        %v712 = vadd.f32 %v447, %v455
        %v713 = vadd.f32 %v448, %v456
        %v714 = vadd.f32 %v449, %v457
        %v715 = vadd.f32 %v450, %v458
        %v716 = vadd.f32 %v451, %v459
        %v717 = vadd.f32 %v452, %v460
        %v718 = vadd.f32 %v453, %v461
        %v719 = vadd.f32 %v454, %v462
        %v720 = vpack.c.bf16 %v648, %v648
        %v721 = vpack.c.bf16 %v649, %v649
        %v722 = vpack.c.bf16 %v650, %v650
        %v723 = vpack.c.bf16 %v651, %v651
        %v724 = vpack.c.bf16 %v652, %v652
        %v725 = vpack.c.bf16 %v653, %v653
        %v726 = vpack.c.bf16 %v654, %v654
        %v727 = vpack.c.bf16 %v655, %v655
        %v728 = vpack.c.bf16 %v657, %v656
        %v729 = vpack.c.bf16 %v659, %v658
        %v730 = vpack.c.bf16 %v661, %v660
        %v731 = vpack.c.bf16 %v663, %v662
        %v732 = vpack.c.bf16 %v665, %v664
        %v733 = vpack.c.bf16 %v667, %v666
        %v734 = vpack.c.bf16 %v669, %v668
        %v735 = vpack.c.bf16 %v671, %v670
        %v736 = vpack.c.bf16 %v673, %v672
        %v737 = vpack.c.bf16 %v675, %v674
        %v738 = vpack.c.bf16 %v677, %v676
        %v739 = vpack.c.bf16 %v679, %v678
        %v740 = vpack.c.bf16 %v681, %v680
        %v741 = vpack.c.bf16 %v683, %v682
        %v742 = vpack.c.bf16 %v685, %v684
        %v743 = vpack.c.bf16 %v687, %v686
        %v744 = vpack.c.bf16 %v689, %v688
        %v745 = vpack.c.bf16 %v691, %v690
        %v746 = vpack.c.bf16 %v693, %v692
        %v747 = vpack.c.bf16 %v695, %v694
        %v748 = vpack.c.bf16 %v697, %v696
        %v749 = vpack.c.bf16 %v699, %v698
        %v750 = vpack.c.bf16 %v701, %v700
        %v751 = vpack.c.bf16 %v703, %v702
        %v752 = vpack.c.bf16 %v705, %v704
        %v753 = vpack.c.bf16 %v707, %v706
        %v754 = vpack.c.bf16 %v709, %v708
        %v755 = vpack.c.bf16 %v711, %v710
        %v756 = vpack.c.bf16 %v713, %v712
        %v757 = vpack.c.bf16 %v715, %v714
        %v758 = vpack.c.bf16 %v717, %v716
        %v759 = vpack.c.bf16 %v719, %v718
        %v760 = vld [vmem:[%s3] sm:$0xf]
        %v761 = vld [vmem:[%s3 + $0x4] sm:$0xf]
        %v762 = vld [vmem:[%s3 + $0x8] sm:$0xf]
        %v763 = vld [vmem:[%s3 + $0xc] sm:$0xf]
        %v764 = vld [vmem:[%s5] sm:$0xf]
        %v765 = vld [vmem:[%s5 + $0x4] sm:$0xf]
        %v766 = vld [vmem:[%s5 + $0x8] sm:$0xf]
        %v767 = vld [vmem:[%s5 + $0xc] sm:$0xf]
        %v768 = vld [vmem:[%s7] sm:$0xf]
        %v769 = vld [vmem:[%s7 + $0x4] sm:$0xf]
        %v770 = vld [vmem:[%s7 + $0x8] sm:$0xf]
        %v771 = vld [vmem:[%s7 + $0xc] sm:$0xf]
        %v772 = vld [vmem:[%s4] sm:$0x1]
        %v773 = vld [vmem:[%s6] sm:$0x1]
        %v774 = vld [vmem:[%s8] sm:$0x1]
        %v776 = vlaneseq
        %v777 = vshrl.u32 %v776, 7
        %v778 = vsub.s32 0, %v777
        %v779 = vrot.slane %v772, %v778
        %v789 = vunpack.c.l.b16 %v720
        %v790 = vunpack.c.l.b16 %v721
        %v791 = vunpack.c.l.b16 %v722
        %v792 = vunpack.c.l.b16 %v723
        %v793 = vunpack.c.l.b16 %v724
        %v794 = vunpack.c.l.b16 %v725
        %v795 = vunpack.c.l.b16 %v726
        %v796 = vunpack.c.l.b16 %v727
        %v797 = vrot.slane %v790, 7
        %vm798 = vcmask 1041409
        %v799 = vsel %vm798, %v797, %v789
        %v800 = vrot.slane %v791, 6
        %vm801 = vcmask 1042434
        %v802 = vsel %vm801, %v800, %v799
        %v803 = vrot.slane %v792, 5
        %vm804 = vcmask 1043459
        %v805 = vsel %vm804, %v803, %v802
        %v806 = vrot.slane %v793, 4
        %vm807 = vcmask 1044484
        %v808 = vsel %vm807, %v806, %v805
        %v809 = vrot.slane %v794, 3
        %vm810 = vcmask 1045509
        %v811 = vsel %vm810, %v809, %v808
        %v812 = vrot.slane %v795, 2
        %vm813 = vcmask 1046534
        %v814 = vsel %vm813, %v812, %v811
        %v815 = vrot.slane %v796, 1
        %vm816 = vcmask 1047559
        %v817 = vsel %vm816, %v815, %v814
        %v818 = vpack.c.b16 %v817, %v817
        %v823 = vunpack.c.l.b16 %v760
        %v824 = vunpack.c.l.b16 %v761
        %v825 = vunpack.c.l.b16 %v762
        %v826 = vunpack.c.l.b16 %v763
        %v827 = vpack.c.b16 %v824, %v823
        %v828 = vpack.c.b16 %v826, %v825
        %v832 = vsel %vm464, %v818, 0
        %834 = vmatprep.subr.bf16.mxu0 0
        %835 = vmatpush1.bf16.msra.mxu0 %v827
        %836 = vmatprep.subr.bf16.mxu0 0
        %837 = vmatpush1.bf16.msra.mxu0 %v828
        %838 = vmatprep.subr.bf16.mxu0 0
        %839 = vmatpush1.bf16.msra.mxu0 0
        %840 = vmatprep.subr.bf16.mxu0 0
        %841 = vmatpush1.bf16.msra.mxu0 0
        %842 = vmatprep.subr.bf16.mxu0 0
        %843 = vmatpush1.bf16.msra.mxu0 0
        %844 = vmatprep.subr.bf16.mxu0 0
        %845 = vmatpush1.bf16.msra.mxu0 0
        %846 = vmatprep.subr.bf16.mxu0 0
        %847 = vmatpush1.bf16.msra.mxu0 0
        %848 = vmatprep.subr.bf16.mxu0 0
        %849 = vmatpush1.bf16.msra.mxu0 0
        %850 = vmatprep.subr.bf16.mxu0 0
        %851 = vmatpush1.bf16.msra.mxu0 0
        %852 = vmatprep.subr.bf16.mxu0 0
        %853 = vmatpush1.bf16.msra.mxu0 0
        %854 = vmatprep.subr.bf16.mxu0 0
        %855 = vmatpush1.bf16.msra.mxu0 0
        %856 = vmatprep.subr.bf16.mxu0 0
        %857 = vmatpush1.bf16.msra.mxu0 0
        %858 = vmatprep.subr.bf16.mxu0 0
        %859 = vmatpush1.bf16.msra.mxu0 0
        %860 = vmatprep.subr.bf16.mxu0 0
        %861 = vmatpush1.bf16.msra.mxu0 0
        %862 = vmatprep.subr.bf16.mxu0 0
        %863 = vmatpush1.bf16.msra.mxu0 0
        %864 = vmatprep.subr.bf16.mxu0 0
        %865 = vmatpush1.bf16.msra.mxu0 0
        %866 = vmatprep.mubr.bf16.mxu0 0
        %867 = vmatmul.mubr.bf16.gmra.mrb[0].mxu0 %v832
        %v868 = vpop.f32.mrb[0].mxu0
        %v869 = vadd.f32 %v779, %v868
        %v870 = vpop.f32.mrb[0].mxu0
        %v871 = vpop.f32.mrb[0].mxu0
        %v872 = vpop.f32.mrb[0].mxu0
        %873 = vdwg.mxu0
        %v875 = vlaneseq
        %v876 = vshrl.u32 %v875, 7
        %v877 = vsub.s32 0, %v876
        %v878 = vrot.slane %v773, %v877
        %v884 = vunpack.c.l.b16 %v764
        %v885 = vunpack.c.l.b16 %v765
        %v886 = vunpack.c.l.b16 %v766
        %v887 = vunpack.c.l.b16 %v767
        %v888 = vpack.c.b16 %v885, %v884
        %v889 = vpack.c.b16 %v887, %v886
        %892 = vmatprep.subr.bf16.mxu0 0
        %893 = vmatpush1.bf16.msra.mxu0 %v888
        %894 = vmatprep.subr.bf16.mxu0 0
        %895 = vmatpush1.bf16.msra.mxu0 %v889
        %896 = vmatprep.subr.bf16.mxu0 0
        %897 = vmatpush1.bf16.msra.mxu0 0
        %898 = vmatprep.subr.bf16.mxu0 0
        %899 = vmatpush1.bf16.msra.mxu0 0
        %900 = vmatprep.subr.bf16.mxu0 0
        %901 = vmatpush1.bf16.msra.mxu0 0
        %902 = vmatprep.subr.bf16.mxu0 0
        %903 = vmatpush1.bf16.msra.mxu0 0
        %904 = vmatprep.subr.bf16.mxu0 0
        %905 = vmatpush1.bf16.msra.mxu0 0
        %906 = vmatprep.subr.bf16.mxu0 0
        %907 = vmatpush1.bf16.msra.mxu0 0
        %908 = vmatprep.subr.bf16.mxu0 0
        %909 = vmatpush1.bf16.msra.mxu0 0
        %910 = vmatprep.subr.bf16.mxu0 0
        %911 = vmatpush1.bf16.msra.mxu0 0
        %912 = vmatprep.subr.bf16.mxu0 0
        %913 = vmatpush1.bf16.msra.mxu0 0
        %914 = vmatprep.subr.bf16.mxu0 0
        %915 = vmatpush1.bf16.msra.mxu0 0
        %916 = vmatprep.subr.bf16.mxu0 0
        %917 = vmatpush1.bf16.msra.mxu0 0
        %918 = vmatprep.subr.bf16.mxu0 0
        %919 = vmatpush1.bf16.msra.mxu0 0
        %920 = vmatprep.subr.bf16.mxu0 0
        %921 = vmatpush1.bf16.msra.mxu0 0
        %922 = vmatprep.subr.bf16.mxu0 0
        %923 = vmatpush1.bf16.msra.mxu0 0
        %924 = vmatprep.mubr.bf16.mxu0 0
        %925 = vmatmul.mubr.bf16.gmra.mrb[0].mxu0 %v832
        %v926 = vpop.f32.mrb[0].mxu0
        %v927 = vadd.f32 %v878, %v926
        %v928 = vpop.f32.mrb[0].mxu0
        %v929 = vpop.f32.mrb[0].mxu0
        %v930 = vpop.f32.mrb[0].mxu0
        %931 = vdwg.mxu0
        %v933 = vlaneseq
        %v934 = vshrl.u32 %v933, 7
        %v935 = vsub.s32 0, %v934
        %v936 = vrot.slane %v774, %v935
        %v942 = vunpack.c.l.b16 %v768
        %v943 = vunpack.c.l.b16 %v769
        %v944 = vunpack.c.l.b16 %v770
        %v945 = vunpack.c.l.b16 %v771
        %v946 = vpack.c.b16 %v943, %v942
        %v947 = vpack.c.b16 %v945, %v944
        %950 = vmatprep.subr.bf16.mxu0 0
        %951 = vmatpush1.bf16.msra.mxu0 %v946
        %952 = vmatprep.subr.bf16.mxu0 0
        %953 = vmatpush1.bf16.msra.mxu0 %v947
        %954 = vmatprep.subr.bf16.mxu0 0
        %955 = vmatpush1.bf16.msra.mxu0 0
        %956 = vmatprep.subr.bf16.mxu0 0
        %957 = vmatpush1.bf16.msra.mxu0 0
        %958 = vmatprep.subr.bf16.mxu0 0
        %959 = vmatpush1.bf16.msra.mxu0 0
        %960 = vmatprep.subr.bf16.mxu0 0
        %961 = vmatpush1.bf16.msra.mxu0 0
        %962 = vmatprep.subr.bf16.mxu0 0
        %963 = vmatpush1.bf16.msra.mxu0 0
        %964 = vmatprep.subr.bf16.mxu0 0
        %965 = vmatpush1.bf16.msra.mxu0 0
        %966 = vmatprep.subr.bf16.mxu0 0
        %967 = vmatpush1.bf16.msra.mxu0 0
        %968 = vmatprep.subr.bf16.mxu0 0
        %969 = vmatpush1.bf16.msra.mxu0 0
        %970 = vmatprep.subr.bf16.mxu0 0
        %971 = vmatpush1.bf16.msra.mxu0 0
        %972 = vmatprep.subr.bf16.mxu0 0
        %973 = vmatpush1.bf16.msra.mxu0 0
        %974 = vmatprep.subr.bf16.mxu0 0
        %975 = vmatpush1.bf16.msra.mxu0 0
        %976 = vmatprep.subr.bf16.mxu0 0
        %977 = vmatpush1.bf16.msra.mxu0 0
        %978 = vmatprep.subr.bf16.mxu0 0
        %979 = vmatpush1.bf16.msra.mxu0 0
        %980 = vmatprep.subr.bf16.mxu0 0
        %981 = vmatpush1.bf16.msra.mxu0 0
        %982 = vmatprep.mubr.bf16.mxu0 0
        %983 = vmatmul.mubr.bf16.gmra.mrb[0].mxu0 %v832
        %v984 = vpop.f32.mrb[0].mxu0
        %v985 = vadd.f32 %v936, %v984
        %v986 = vpop.f32.mrb[0].mxu0
        %v987 = vpop.f32.mrb[0].mxu0
        %v988 = vpop.f32.mrb[0].mxu0
        %989 = vdwg.mxu0
        %v991 = vsel %vm464, %v728, 0
        %v994 = vsel %vm464, %v729, 0
        %v997 = vsel %vm464, %v730, 0
        %v1000 = vsel %vm464, %v731, 0
        %v1003 = vsel %vm464, %v732, 0
        %v1006 = vsel %vm464, %v733, 0
        %v1009 = vsel %vm464, %v734, 0
        %v1012 = vsel %vm464, %v735, 0
        %v1015 = vsel %vm464, %v736, 0
        %v1018 = vsel %vm464, %v737, 0
        %v1021 = vsel %vm464, %v738, 0
        %v1024 = vsel %vm464, %v739, 0
        %v1027 = vsel %vm464, %v740, 0
        %v1030 = vsel %vm464, %v741, 0
        %v1033 = vsel %vm464, %v742, 0
        %v1036 = vsel %vm464, %v743, 0
        %v1039 = vsel %vm464, %v744, 0
        %v1042 = vsel %vm464, %v745, 0
        %v1045 = vsel %vm464, %v746, 0
        %v1048 = vsel %vm464, %v747, 0
        %v1051 = vsel %vm464, %v748, 0
        %v1054 = vsel %vm464, %v749, 0
        %v1057 = vsel %vm464, %v750, 0
        %v1060 = vsel %vm464, %v751, 0
        %v1063 = vsel %vm464, %v752, 0
        %v1066 = vsel %vm464, %v753, 0
        %v1069 = vsel %vm464, %v754, 0
        %v1072 = vsel %vm464, %v755, 0
        %v1075 = vsel %vm464, %v756, 0
        %v1078 = vsel %vm464, %v757, 0
        %v1081 = vsel %vm464, %v758, 0
        %v1084 = vsel %vm464, %v759, 0
        %1086 = vmatprep.subr.bf16.mxu0 0
        %1087 = vmatpush1.bf16.msra.mxu0 %v888
        %1088 = vmatprep.subr.bf16.mxu0 0
        %1089 = vmatpush1.bf16.msra.mxu0 %v889
        %1090 = vmatprep.subr.bf16.mxu0 0
        %1091 = vmatpush1.bf16.msra.mxu0 0
        %1092 = vmatprep.subr.bf16.mxu0 0
        %1093 = vmatpush1.bf16.msra.mxu0 0
        %1094 = vmatprep.subr.bf16.mxu0 0
        %1095 = vmatpush1.bf16.msra.mxu0 0
        %1096 = vmatprep.subr.bf16.mxu0 0
        %1097 = vmatpush1.bf16.msra.mxu0 0
        %1098 = vmatprep.subr.bf16.mxu0 0
        %1099 = vmatpush1.bf16.msra.mxu0 0
        %1100 = vmatprep.subr.bf16.mxu0 0
        %1101 = vmatpush1.bf16.msra.mxu0 0
        %1102 = vmatprep.subr.bf16.mxu0 0
        %1103 = vmatpush1.bf16.msra.mxu0 0
        %1104 = vmatprep.subr.bf16.mxu0 0
        %1105 = vmatpush1.bf16.msra.mxu0 0
        %1106 = vmatprep.subr.bf16.mxu0 0
        %1107 = vmatpush1.bf16.msra.mxu0 0
        %1108 = vmatprep.subr.bf16.mxu0 0
        %1109 = vmatpush1.bf16.msra.mxu0 0
        %1110 = vmatprep.subr.bf16.mxu0 0
        %1111 = vmatpush1.bf16.msra.mxu0 0
        %1112 = vmatprep.subr.bf16.mxu0 0
        %1113 = vmatpush1.bf16.msra.mxu0 0
        %1114 = vmatprep.subr.bf16.mxu0 0
        %1115 = vmatpush1.bf16.msra.mxu0 0
        %1116 = vmatprep.subr.bf16.mxu0 0
        %1117 = vmatpush1.bf16.msra.mxu0 0
        %1118 = vmatprep.mubr.bf16.mxu0 0
        %1119 = vmatmul.mubr.bf16.gmra.mrb[0].mxu0 %v991
        %v1120 = vpop.f32.mrb[0].mxu0
        %v1121 = vadd.f32 %v878, %v1120
        %v1122 = vpop.f32.mrb[0].mxu0
        %v1123 = vpop.f32.mrb[0].mxu0
        %v1124 = vadd.f32 %v878, %v1123
        %v1125 = vpop.f32.mrb[0].mxu0
        %1126 = vmatprep.mubr.bf16.mxu0 0
        %1127 = vmatmul.mubr.bf16.gmra.mrb[0].mxu0 %v994
        %v1128 = vpop.f32.mrb[0].mxu0
        %v1129 = vadd.f32 %v878, %v1128
        %v1130 = vpop.f32.mrb[0].mxu0
        %v1131 = vpop.f32.mrb[0].mxu0
        %v1132 = vadd.f32 %v878, %v1131
        %v1133 = vpop.f32.mrb[0].mxu0
        %1134 = vmatprep.mubr.bf16.mxu0 0
        %1135 = vmatmul.mubr.bf16.gmra.mrb[0].mxu0 %v997
        %v1136 = vpop.f32.mrb[0].mxu0
        %v1137 = vadd.f32 %v878, %v1136
        %v1138 = vpop.f32.mrb[0].mxu0
        %v1139 = vpop.f32.mrb[0].mxu0
        %v1140 = vadd.f32 %v878, %v1139
        %v1141 = vpop.f32.mrb[0].mxu0
        %1142 = vmatprep.mubr.bf16.mxu0 0
        %1143 = vmatmul.mubr.bf16.gmra.mrb[0].mxu0 %v1000
        %v1144 = vpop.f32.mrb[0].mxu0
        %v1145 = vadd.f32 %v878, %v1144
        %v1146 = vpop.f32.mrb[0].mxu0
        %v1147 = vpop.f32.mrb[0].mxu0
        %v1148 = vadd.f32 %v878, %v1147
        %v1149 = vpop.f32.mrb[0].mxu0
        %1150 = vmatprep.mubr.bf16.mxu0 0
        %1151 = vmatmul.mubr.bf16.gmra.mrb[0].mxu0 %v1003
        %v1152 = vpop.f32.mrb[0].mxu0
        %v1153 = vadd.f32 %v878, %v1152
        %v1154 = vpop.f32.mrb[0].mxu0
        %v1155 = vpop.f32.mrb[0].mxu0
        %v1156 = vadd.f32 %v878, %v1155
        %v1157 = vpop.f32.mrb[0].mxu0
        %1158 = vmatprep.mubr.bf16.mxu0 0
        %1159 = vmatmul.mubr.bf16.gmra.mrb[0].mxu0 %v1006
        %v1160 = vpop.f32.mrb[0].mxu0
        %v1161 = vadd.f32 %v878, %v1160
        %v1162 = vpop.f32.mrb[0].mxu0
        %v1163 = vpop.f32.mrb[0].mxu0
        %v1164 = vadd.f32 %v878, %v1163
        %v1165 = vpop.f32.mrb[0].mxu0
        %1166 = vmatprep.mubr.bf16.mxu0 0
        %1167 = vmatmul.mubr.bf16.gmra.mrb[0].mxu0 %v1009
        %v1168 = vpop.f32.mrb[0].mxu0
        %v1169 = vadd.f32 %v878, %v1168
        %v1170 = vpop.f32.mrb[0].mxu0
        %v1171 = vpop.f32.mrb[0].mxu0
        %v1172 = vadd.f32 %v878, %v1171
        %v1173 = vpop.f32.mrb[0].mxu0
        %1174 = vmatprep.mubr.bf16.mxu0 0
        %1175 = vmatmul.mubr.bf16.gmra.mrb[0].mxu0 %v1012
        %v1176 = vpop.f32.mrb[0].mxu0
        %v1177 = vadd.f32 %v878, %v1176
        %v1178 = vpop.f32.mrb[0].mxu0
        %v1179 = vpop.f32.mrb[0].mxu0
        %v1180 = vadd.f32 %v878, %v1179
        %v1181 = vpop.f32.mrb[0].mxu0
        %1182 = vmatprep.mubr.bf16.mxu0 0
        %1183 = vmatmul.mubr.bf16.gmra.mrb[0].mxu0 %v1015
        %v1184 = vpop.f32.mrb[0].mxu0
        %v1185 = vadd.f32 %v878, %v1184
        %v1186 = vpop.f32.mrb[0].mxu0
        %v1187 = vpop.f32.mrb[0].mxu0
        %v1188 = vadd.f32 %v878, %v1187
        %v1189 = vpop.f32.mrb[0].mxu0
        %1190 = vmatprep.mubr.bf16.mxu0 0
        %1191 = vmatmul.mubr.bf16.gmra.mrb[0].mxu0 %v1018
        %v1192 = vpop.f32.mrb[0].mxu0
        %v1193 = vadd.f32 %v878, %v1192
        %v1194 = vpop.f32.mrb[0].mxu0
        %v1195 = vpop.f32.mrb[0].mxu0
        %v1196 = vadd.f32 %v878, %v1195
        %v1197 = vpop.f32.mrb[0].mxu0
        %1198 = vmatprep.mubr.bf16.mxu0 0
        %1199 = vmatmul.mubr.bf16.gmra.mrb[0].mxu0 %v1021
        %v1200 = vpop.f32.mrb[0].mxu0
        %v1201 = vadd.f32 %v878, %v1200
        %v1202 = vpop.f32.mrb[0].mxu0
        %v1203 = vpop.f32.mrb[0].mxu0
        %v1204 = vadd.f32 %v878, %v1203
        %v1205 = vpop.f32.mrb[0].mxu0
        %1206 = vmatprep.mubr.bf16.mxu0 0
        %1207 = vmatmul.mubr.bf16.gmra.mrb[0].mxu0 %v1024
        %v1208 = vpop.f32.mrb[0].mxu0
        %v1209 = vadd.f32 %v878, %v1208
        %v1210 = vpop.f32.mrb[0].mxu0
        %v1211 = vpop.f32.mrb[0].mxu0
        %v1212 = vadd.f32 %v878, %v1211
        %v1213 = vpop.f32.mrb[0].mxu0
        %1214 = vmatprep.mubr.bf16.mxu0 0
        %1215 = vmatmul.mubr.bf16.gmra.mrb[0].mxu0 %v1027
        %v1216 = vpop.f32.mrb[0].mxu0
        %v1217 = vadd.f32 %v878, %v1216
        %v1218 = vpop.f32.mrb[0].mxu0
        %v1219 = vpop.f32.mrb[0].mxu0
        %v1220 = vadd.f32 %v878, %v1219
        %v1221 = vpop.f32.mrb[0].mxu0
        %1222 = vmatprep.mubr.bf16.mxu0 0
        %1223 = vmatmul.mubr.bf16.gmra.mrb[0].mxu0 %v1030
        %v1224 = vpop.f32.mrb[0].mxu0
        %v1225 = vadd.f32 %v878, %v1224
        %v1226 = vpop.f32.mrb[0].mxu0
        %v1227 = vpop.f32.mrb[0].mxu0
        %v1228 = vadd.f32 %v878, %v1227
        %v1229 = vpop.f32.mrb[0].mxu0
        %1230 = vmatprep.mubr.bf16.mxu0 0
        %1231 = vmatmul.mubr.bf16.gmra.mrb[0].mxu0 %v1033
        %v1232 = vpop.f32.mrb[0].mxu0
        %v1233 = vadd.f32 %v878, %v1232
        %v1234 = vpop.f32.mrb[0].mxu0
        %v1235 = vpop.f32.mrb[0].mxu0
        %v1236 = vadd.f32 %v878, %v1235
        %v1237 = vpop.f32.mrb[0].mxu0
        %1238 = vmatprep.mubr.bf16.mxu0 0
        %1239 = vmatmul.mubr.bf16.gmra.mrb[0].mxu0 %v1036
        %v1240 = vpop.f32.mrb[0].mxu0
        %v1241 = vadd.f32 %v878, %v1240
        %v1242 = vpop.f32.mrb[0].mxu0
        %v1243 = vpop.f32.mrb[0].mxu0
        %v1244 = vadd.f32 %v878, %v1243
        %v1245 = vpop.f32.mrb[0].mxu0
        %1246 = vmatprep.mubr.bf16.mxu0 0
        %1247 = vmatmul.mubr.bf16.gmra.mrb[0].mxu0 %v1039
        %v1248 = vpop.f32.mrb[0].mxu0
        %v1249 = vadd.f32 %v878, %v1248
        %v1250 = vpop.f32.mrb[0].mxu0
        %v1251 = vpop.f32.mrb[0].mxu0
        %v1252 = vadd.f32 %v878, %v1251
        %v1253 = vpop.f32.mrb[0].mxu0
        %1254 = vmatprep.mubr.bf16.mxu0 0
        %1255 = vmatmul.mubr.bf16.gmra.mrb[0].mxu0 %v1042
        %v1256 = vpop.f32.mrb[0].mxu0
        %v1257 = vadd.f32 %v878, %v1256
        %v1258 = vpop.f32.mrb[0].mxu0
        %v1259 = vpop.f32.mrb[0].mxu0
        %v1260 = vadd.f32 %v878, %v1259
        %v1261 = vpop.f32.mrb[0].mxu0
        %1262 = vmatprep.mubr.bf16.mxu0 0
        %1263 = vmatmul.mubr.bf16.gmra.mrb[0].mxu0 %v1045
        %v1264 = vpop.f32.mrb[0].mxu0
        %v1265 = vadd.f32 %v878, %v1264
        %v1266 = vpop.f32.mrb[0].mxu0
        %v1267 = vpop.f32.mrb[0].mxu0
        %v1268 = vadd.f32 %v878, %v1267
        %v1269 = vpop.f32.mrb[0].mxu0
        %1270 = vmatprep.mubr.bf16.mxu0 0
        %1271 = vmatmul.mubr.bf16.gmra.mrb[0].mxu0 %v1048
        %v1272 = vpop.f32.mrb[0].mxu0
        %v1273 = vadd.f32 %v878, %v1272
        %v1274 = vpop.f32.mrb[0].mxu0
        %v1275 = vpop.f32.mrb[0].mxu0
        %v1276 = vadd.f32 %v878, %v1275
        %v1277 = vpop.f32.mrb[0].mxu0
        %1278 = vmatprep.mubr.bf16.mxu0 0
        %1279 = vmatmul.mubr.bf16.gmra.mrb[0].mxu0 %v1051
        %v1280 = vpop.f32.mrb[0].mxu0
        %v1281 = vadd.f32 %v878, %v1280
        %v1282 = vpop.f32.mrb[0].mxu0
        %v1283 = vpop.f32.mrb[0].mxu0
        %v1284 = vadd.f32 %v878, %v1283
        %v1285 = vpop.f32.mrb[0].mxu0
        %1286 = vmatprep.mubr.bf16.mxu0 0
        %1287 = vmatmul.mubr.bf16.gmra.mrb[0].mxu0 %v1054
        %v1288 = vpop.f32.mrb[0].mxu0
        %v1289 = vadd.f32 %v878, %v1288
        %v1290 = vpop.f32.mrb[0].mxu0
        %v1291 = vpop.f32.mrb[0].mxu0
        %v1292 = vadd.f32 %v878, %v1291
        %v1293 = vpop.f32.mrb[0].mxu0
        %1294 = vmatprep.mubr.bf16.mxu0 0
        %1295 = vmatmul.mubr.bf16.gmra.mrb[0].mxu0 %v1057
        %v1296 = vpop.f32.mrb[0].mxu0
        %v1297 = vadd.f32 %v878, %v1296
        %v1298 = vpop.f32.mrb[0].mxu0
        %v1299 = vpop.f32.mrb[0].mxu0
        %v1300 = vadd.f32 %v878, %v1299
        %v1301 = vpop.f32.mrb[0].mxu0
        %1302 = vmatprep.mubr.bf16.mxu0 0
        %1303 = vmatmul.mubr.bf16.gmra.mrb[0].mxu0 %v1060
        %v1304 = vpop.f32.mrb[0].mxu0
        %v1305 = vadd.f32 %v878, %v1304
        %v1306 = vpop.f32.mrb[0].mxu0
        %v1307 = vpop.f32.mrb[0].mxu0
        %v1308 = vadd.f32 %v878, %v1307
        %v1309 = vpop.f32.mrb[0].mxu0
        %1310 = vmatprep.mubr.bf16.mxu0 0
        %1311 = vmatmul.mubr.bf16.gmra.mrb[0].mxu0 %v1063
        %v1312 = vpop.f32.mrb[0].mxu0
        %v1313 = vadd.f32 %v878, %v1312
        %v1314 = vpop.f32.mrb[0].mxu0
        %v1315 = vpop.f32.mrb[0].mxu0
        %v1316 = vadd.f32 %v878, %v1315
        %v1317 = vpop.f32.mrb[0].mxu0
        %1318 = vmatprep.mubr.bf16.mxu0 0
        %1319 = vmatmul.mubr.bf16.gmra.mrb[0].mxu0 %v1066
        %v1320 = vpop.f32.mrb[0].mxu0
        %v1321 = vadd.f32 %v878, %v1320
        %v1322 = vpop.f32.mrb[0].mxu0
        %v1323 = vpop.f32.mrb[0].mxu0
        %v1324 = vadd.f32 %v878, %v1323
        %v1325 = vpop.f32.mrb[0].mxu0
        %1326 = vmatprep.mubr.bf16.mxu0 0
        %1327 = vmatmul.mubr.bf16.gmra.mrb[0].mxu0 %v1069
        %v1328 = vpop.f32.mrb[0].mxu0
        %v1329 = vadd.f32 %v878, %v1328
        %v1330 = vpop.f32.mrb[0].mxu0
        %v1331 = vpop.f32.mrb[0].mxu0
        %v1332 = vadd.f32 %v878, %v1331
        %v1333 = vpop.f32.mrb[0].mxu0
        %1334 = vmatprep.mubr.bf16.mxu0 0
        %1335 = vmatmul.mubr.bf16.gmra.mrb[0].mxu0 %v1072
        %v1336 = vpop.f32.mrb[0].mxu0
        %v1337 = vadd.f32 %v878, %v1336
        %v1338 = vpop.f32.mrb[0].mxu0
        %v1339 = vpop.f32.mrb[0].mxu0
        %v1340 = vadd.f32 %v878, %v1339
        %v1341 = vpop.f32.mrb[0].mxu0
        %1342 = vmatprep.mubr.bf16.mxu0 0
        %1343 = vmatmul.mubr.bf16.gmra.mrb[0].mxu0 %v1075
        %v1344 = vpop.f32.mrb[0].mxu0
        %v1345 = vadd.f32 %v878, %v1344
        %v1346 = vpop.f32.mrb[0].mxu0
        %v1347 = vpop.f32.mrb[0].mxu0
        %v1348 = vadd.f32 %v878, %v1347
        %v1349 = vpop.f32.mrb[0].mxu0
        %1350 = vmatprep.mubr.bf16.mxu0 0
        %1351 = vmatmul.mubr.bf16.gmra.mrb[0].mxu0 %v1078
        %v1352 = vpop.f32.mrb[0].mxu0
        %v1353 = vadd.f32 %v878, %v1352
        %v1354 = vpop.f32.mrb[0].mxu0
        %v1355 = vpop.f32.mrb[0].mxu0
        %v1356 = vadd.f32 %v878, %v1355
        %v1357 = vpop.f32.mrb[0].mxu0
        %1358 = vmatprep.mubr.bf16.mxu0 0
        %1359 = vmatmul.mubr.bf16.gmra.mrb[0].mxu0 %v1081
        %v1360 = vpop.f32.mrb[0].mxu0
        %v1361 = vadd.f32 %v878, %v1360
        %v1362 = vpop.f32.mrb[0].mxu0
        %v1363 = vpop.f32.mrb[0].mxu0
        %v1364 = vadd.f32 %v878, %v1363
        %v1365 = vpop.f32.mrb[0].mxu0
        %1366 = vmatprep.mubr.bf16.mxu0 0
        %1367 = vmatmul.mubr.bf16.gmra.mrb[0].mxu0 %v1084
        %v1368 = vpop.f32.mrb[0].mxu0
        %v1369 = vadd.f32 %v878, %v1368
        %v1370 = vpop.f32.mrb[0].mxu0
        %v1371 = vpop.f32.mrb[0].mxu0
        %v1372 = vadd.f32 %v878, %v1371
        %v1373 = vpop.f32.mrb[0].mxu0
        %1374 = vdwg.mxu0
        %1375 = vmatprep.subr.bf16.mxu0 0
        %1376 = vmatpush1.bf16.msra.mxu0 %v946
        %1377 = vmatprep.subr.bf16.mxu0 0
        %1378 = vmatpush1.bf16.msra.mxu0 %v947
        %1379 = vmatprep.subr.bf16.mxu0 0
        %1380 = vmatpush1.bf16.msra.mxu0 0
        %1381 = vmatprep.subr.bf16.mxu0 0
        %1382 = vmatpush1.bf16.msra.mxu0 0
        %1383 = vmatprep.subr.bf16.mxu0 0
        %1384 = vmatpush1.bf16.msra.mxu0 0
        %1385 = vmatprep.subr.bf16.mxu0 0
        %1386 = vmatpush1.bf16.msra.mxu0 0
        %1387 = vmatprep.subr.bf16.mxu0 0
        %1388 = vmatpush1.bf16.msra.mxu0 0
        %1389 = vmatprep.subr.bf16.mxu0 0
        %1390 = vmatpush1.bf16.msra.mxu0 0
        %1391 = vmatprep.subr.bf16.mxu0 0
        %1392 = vmatpush1.bf16.msra.mxu0 0
        %1393 = vmatprep.subr.bf16.mxu0 0
        %1394 = vmatpush1.bf16.msra.mxu0 0
        %1395 = vmatprep.subr.bf16.mxu0 0
        %1396 = vmatpush1.bf16.msra.mxu0 0
        %1397 = vmatprep.subr.bf16.mxu0 0
        %1398 = vmatpush1.bf16.msra.mxu0 0
        %1399 = vmatprep.subr.bf16.mxu0 0
        %1400 = vmatpush1.bf16.msra.mxu0 0
        %1401 = vmatprep.subr.bf16.mxu0 0
        %1402 = vmatpush1.bf16.msra.mxu0 0
        %1403 = vmatprep.subr.bf16.mxu0 0
        %1404 = vmatpush1.bf16.msra.mxu0 0
        %1405 = vmatprep.subr.bf16.mxu0 0
        %1406 = vmatpush1.bf16.msra.mxu0 0
        %1407 = vmatprep.mubr.bf16.mxu0 0
        %1408 = vmatmul.mubr.bf16.gmra.mrb[0].mxu0 %v991
        %v1409 = vpop.f32.mrb[0].mxu0
        %v1410 = vadd.f32 %v936, %v1409
        %v1411 = vpop.f32.mrb[0].mxu0
        %v1412 = vpop.f32.mrb[0].mxu0
        %v1413 = vadd.f32 %v936, %v1412
        %v1414 = vpop.f32.mrb[0].mxu0
        %1415 = vmatprep.mubr.bf16.mxu0 0
        %1416 = vmatmul.mubr.bf16.gmra.mrb[0].mxu0 %v994
        %v1417 = vpop.f32.mrb[0].mxu0
        %v1418 = vadd.f32 %v936, %v1417
        %v1419 = vpop.f32.mrb[0].mxu0
        %v1420 = vpop.f32.mrb[0].mxu0
        %v1421 = vadd.f32 %v936, %v1420
        %v1422 = vpop.f32.mrb[0].mxu0
        %1423 = vmatprep.mubr.bf16.mxu0 0
        %1424 = vmatmul.mubr.bf16.gmra.mrb[0].mxu0 %v997
        %v1425 = vpop.f32.mrb[0].mxu0
        %v1426 = vadd.f32 %v936, %v1425
        %v1427 = vpop.f32.mrb[0].mxu0
        %v1428 = vpop.f32.mrb[0].mxu0
        %v1429 = vadd.f32 %v936, %v1428
        %v1430 = vpop.f32.mrb[0].mxu0
        %1431 = vmatprep.mubr.bf16.mxu0 0
        %1432 = vmatmul.mubr.bf16.gmra.mrb[0].mxu0 %v1000
        %v1433 = vpop.f32.mrb[0].mxu0
        %v1434 = vadd.f32 %v936, %v1433
        %v1435 = vpop.f32.mrb[0].mxu0
        %v1436 = vpop.f32.mrb[0].mxu0
        %v1437 = vadd.f32 %v936, %v1436
        %v1438 = vpop.f32.mrb[0].mxu0
        %1439 = vmatprep.mubr.bf16.mxu0 0
        %1440 = vmatmul.mubr.bf16.gmra.mrb[0].mxu0 %v1003
        %v1441 = vpop.f32.mrb[0].mxu0
        %v1442 = vadd.f32 %v936, %v1441
        %v1443 = vpop.f32.mrb[0].mxu0
        %v1444 = vpop.f32.mrb[0].mxu0
        %v1445 = vadd.f32 %v936, %v1444
        %v1446 = vpop.f32.mrb[0].mxu0
        %1447 = vmatprep.mubr.bf16.mxu0 0
        %1448 = vmatmul.mubr.bf16.gmra.mrb[0].mxu0 %v1006
        %v1449 = vpop.f32.mrb[0].mxu0
        %v1450 = vadd.f32 %v936, %v1449
        %v1451 = vpop.f32.mrb[0].mxu0
        %v1452 = vpop.f32.mrb[0].mxu0
        %v1453 = vadd.f32 %v936, %v1452
        %v1454 = vpop.f32.mrb[0].mxu0
        %1455 = vmatprep.mubr.bf16.mxu0 0
        %1456 = vmatmul.mubr.bf16.gmra.mrb[0].mxu0 %v1009
        %v1457 = vpop.f32.mrb[0].mxu0
        %v1458 = vadd.f32 %v936, %v1457
        %v1459 = vpop.f32.mrb[0].mxu0
        %v1460 = vpop.f32.mrb[0].mxu0
        %v1461 = vadd.f32 %v936, %v1460
        %v1462 = vpop.f32.mrb[0].mxu0
        %1463 = vmatprep.mubr.bf16.mxu0 0
        %1464 = vmatmul.mubr.bf16.gmra.mrb[0].mxu0 %v1012
        %v1465 = vpop.f32.mrb[0].mxu0
        %v1466 = vadd.f32 %v936, %v1465
        %v1467 = vpop.f32.mrb[0].mxu0
        %v1468 = vpop.f32.mrb[0].mxu0
        %v1469 = vadd.f32 %v936, %v1468
        %v1470 = vpop.f32.mrb[0].mxu0
        %1471 = vmatprep.mubr.bf16.mxu0 0
        %1472 = vmatmul.mubr.bf16.gmra.mrb[0].mxu0 %v1015
        %v1473 = vpop.f32.mrb[0].mxu0
        %v1474 = vadd.f32 %v936, %v1473
        %v1475 = vpop.f32.mrb[0].mxu0
        %v1476 = vpop.f32.mrb[0].mxu0
        %v1477 = vadd.f32 %v936, %v1476
        %v1478 = vpop.f32.mrb[0].mxu0
        %1479 = vmatprep.mubr.bf16.mxu0 0
        %1480 = vmatmul.mubr.bf16.gmra.mrb[0].mxu0 %v1018
        %v1481 = vpop.f32.mrb[0].mxu0
        %v1482 = vadd.f32 %v936, %v1481
        %v1483 = vpop.f32.mrb[0].mxu0
        %v1484 = vpop.f32.mrb[0].mxu0
        %v1485 = vadd.f32 %v936, %v1484
        %v1486 = vpop.f32.mrb[0].mxu0
        %1487 = vmatprep.mubr.bf16.mxu0 0
        %1488 = vmatmul.mubr.bf16.gmra.mrb[0].mxu0 %v1021
        %v1489 = vpop.f32.mrb[0].mxu0
        %v1490 = vadd.f32 %v936, %v1489
        %v1491 = vpop.f32.mrb[0].mxu0
        %v1492 = vpop.f32.mrb[0].mxu0
        %v1493 = vadd.f32 %v936, %v1492
        %v1494 = vpop.f32.mrb[0].mxu0
        %1495 = vmatprep.mubr.bf16.mxu0 0
        %1496 = vmatmul.mubr.bf16.gmra.mrb[0].mxu0 %v1024
        %v1497 = vpop.f32.mrb[0].mxu0
        %v1498 = vadd.f32 %v936, %v1497
        %v1499 = vpop.f32.mrb[0].mxu0
        %v1500 = vpop.f32.mrb[0].mxu0
        %v1501 = vadd.f32 %v936, %v1500
        %v1502 = vpop.f32.mrb[0].mxu0
        %1503 = vmatprep.mubr.bf16.mxu0 0
        %1504 = vmatmul.mubr.bf16.gmra.mrb[0].mxu0 %v1027
        %v1505 = vpop.f32.mrb[0].mxu0
        %v1506 = vadd.f32 %v936, %v1505
        %v1507 = vpop.f32.mrb[0].mxu0
        %v1508 = vpop.f32.mrb[0].mxu0
        %v1509 = vadd.f32 %v936, %v1508
        %v1510 = vpop.f32.mrb[0].mxu0
        %1511 = vmatprep.mubr.bf16.mxu0 0
        %1512 = vmatmul.mubr.bf16.gmra.mrb[0].mxu0 %v1030
        %v1513 = vpop.f32.mrb[0].mxu0
        %v1514 = vadd.f32 %v936, %v1513
        %v1515 = vpop.f32.mrb[0].mxu0
        %v1516 = vpop.f32.mrb[0].mxu0
        %v1517 = vadd.f32 %v936, %v1516
        %v1518 = vpop.f32.mrb[0].mxu0
        %1519 = vmatprep.mubr.bf16.mxu0 0
        %1520 = vmatmul.mubr.bf16.gmra.mrb[0].mxu0 %v1033
        %v1521 = vpop.f32.mrb[0].mxu0
        %v1522 = vadd.f32 %v936, %v1521
        %v1523 = vpop.f32.mrb[0].mxu0
        %v1524 = vpop.f32.mrb[0].mxu0
        %v1525 = vadd.f32 %v936, %v1524
        %v1526 = vpop.f32.mrb[0].mxu0
        %1527 = vmatprep.mubr.bf16.mxu0 0
        %1528 = vmatmul.mubr.bf16.gmra.mrb[0].mxu0 %v1036
        %v1529 = vpop.f32.mrb[0].mxu0
        %v1530 = vadd.f32 %v936, %v1529
        %v1531 = vpop.f32.mrb[0].mxu0
        %v1532 = vpop.f32.mrb[0].mxu0
        %v1533 = vadd.f32 %v936, %v1532
        %v1534 = vpop.f32.mrb[0].mxu0
        %1535 = vmatprep.mubr.bf16.mxu0 0
        %1536 = vmatmul.mubr.bf16.gmra.mrb[0].mxu0 %v1039
        %v1537 = vpop.f32.mrb[0].mxu0
        %v1538 = vadd.f32 %v936, %v1537
        %v1539 = vpop.f32.mrb[0].mxu0
        %v1540 = vpop.f32.mrb[0].mxu0
        %v1541 = vadd.f32 %v936, %v1540
        %v1542 = vpop.f32.mrb[0].mxu0
        %1543 = vmatprep.mubr.bf16.mxu0 0
        %1544 = vmatmul.mubr.bf16.gmra.mrb[0].mxu0 %v1042
        %v1545 = vpop.f32.mrb[0].mxu0
        %v1546 = vadd.f32 %v936, %v1545
        %v1547 = vpop.f32.mrb[0].mxu0
        %v1548 = vpop.f32.mrb[0].mxu0
        %v1549 = vadd.f32 %v936, %v1548
        %v1550 = vpop.f32.mrb[0].mxu0
        %1551 = vmatprep.mubr.bf16.mxu0 0
        %1552 = vmatmul.mubr.bf16.gmra.mrb[0].mxu0 %v1045
        %v1553 = vpop.f32.mrb[0].mxu0
        %v1554 = vadd.f32 %v936, %v1553
        %v1555 = vpop.f32.mrb[0].mxu0
        %v1556 = vpop.f32.mrb[0].mxu0
        %v1557 = vadd.f32 %v936, %v1556
        %v1558 = vpop.f32.mrb[0].mxu0
        %1559 = vmatprep.mubr.bf16.mxu0 0
        %1560 = vmatmul.mubr.bf16.gmra.mrb[0].mxu0 %v1048
        %v1561 = vpop.f32.mrb[0].mxu0
        %v1562 = vadd.f32 %v936, %v1561
        %v1563 = vpop.f32.mrb[0].mxu0
        %v1564 = vpop.f32.mrb[0].mxu0
        %v1565 = vadd.f32 %v936, %v1564
        %v1566 = vpop.f32.mrb[0].mxu0
        %1567 = vmatprep.mubr.bf16.mxu0 0
        %1568 = vmatmul.mubr.bf16.gmra.mrb[0].mxu0 %v1051
        %v1569 = vpop.f32.mrb[0].mxu0
        %v1570 = vadd.f32 %v936, %v1569
        %v1571 = vpop.f32.mrb[0].mxu0
        %v1572 = vpop.f32.mrb[0].mxu0
        %v1573 = vadd.f32 %v936, %v1572
        %v1574 = vpop.f32.mrb[0].mxu0
        %1575 = vmatprep.mubr.bf16.mxu0 0
        %1576 = vmatmul.mubr.bf16.gmra.mrb[0].mxu0 %v1054
        %v1577 = vpop.f32.mrb[0].mxu0
        %v1578 = vadd.f32 %v936, %v1577
        %v1579 = vpop.f32.mrb[0].mxu0
        %v1580 = vpop.f32.mrb[0].mxu0
        %v1581 = vadd.f32 %v936, %v1580
        %v1582 = vpop.f32.mrb[0].mxu0
        %1583 = vmatprep.mubr.bf16.mxu0 0
        %1584 = vmatmul.mubr.bf16.gmra.mrb[0].mxu0 %v1057
        %v1585 = vpop.f32.mrb[0].mxu0
        %v1586 = vadd.f32 %v936, %v1585
        %v1587 = vpop.f32.mrb[0].mxu0
        %v1588 = vpop.f32.mrb[0].mxu0
        %v1589 = vadd.f32 %v936, %v1588
        %v1590 = vpop.f32.mrb[0].mxu0
        %1591 = vmatprep.mubr.bf16.mxu0 0
        %1592 = vmatmul.mubr.bf16.gmra.mrb[0].mxu0 %v1060
        %v1593 = vpop.f32.mrb[0].mxu0
        %v1594 = vadd.f32 %v936, %v1593
        %v1595 = vpop.f32.mrb[0].mxu0
        %v1596 = vpop.f32.mrb[0].mxu0
        %v1597 = vadd.f32 %v936, %v1596
        %v1598 = vpop.f32.mrb[0].mxu0
        %1599 = vmatprep.mubr.bf16.mxu0 0
        %1600 = vmatmul.mubr.bf16.gmra.mrb[0].mxu0 %v1063
        %v1601 = vpop.f32.mrb[0].mxu0
        %v1602 = vadd.f32 %v936, %v1601
        %v1603 = vpop.f32.mrb[0].mxu0
        %v1604 = vpop.f32.mrb[0].mxu0
        %v1605 = vadd.f32 %v936, %v1604
        %v1606 = vpop.f32.mrb[0].mxu0
        %1607 = vmatprep.mubr.bf16.mxu0 0
        %1608 = vmatmul.mubr.bf16.gmra.mrb[0].mxu0 %v1066
        %v1609 = vpop.f32.mrb[0].mxu0
        %v1610 = vadd.f32 %v936, %v1609
        %v1611 = vpop.f32.mrb[0].mxu0
        %v1612 = vpop.f32.mrb[0].mxu0
        %v1613 = vadd.f32 %v936, %v1612
        %v1614 = vpop.f32.mrb[0].mxu0
        %1615 = vmatprep.mubr.bf16.mxu0 0
        %1616 = vmatmul.mubr.bf16.gmra.mrb[0].mxu0 %v1069
        %v1617 = vpop.f32.mrb[0].mxu0
        %v1618 = vadd.f32 %v936, %v1617
        %v1619 = vpop.f32.mrb[0].mxu0
        %v1620 = vpop.f32.mrb[0].mxu0
        %v1621 = vadd.f32 %v936, %v1620
        %v1622 = vpop.f32.mrb[0].mxu0
        %1623 = vmatprep.mubr.bf16.mxu0 0
        %1624 = vmatmul.mubr.bf16.gmra.mrb[0].mxu0 %v1072
        %v1625 = vpop.f32.mrb[0].mxu0
        %v1626 = vadd.f32 %v936, %v1625
        %v1627 = vpop.f32.mrb[0].mxu0
        %v1628 = vpop.f32.mrb[0].mxu0
        %v1629 = vadd.f32 %v936, %v1628
        %v1630 = vpop.f32.mrb[0].mxu0
        %1631 = vmatprep.mubr.bf16.mxu0 0
        %1632 = vmatmul.mubr.bf16.gmra.mrb[0].mxu0 %v1075
        %v1633 = vpop.f32.mrb[0].mxu0
        %v1634 = vadd.f32 %v936, %v1633
        %v1635 = vpop.f32.mrb[0].mxu0
        %v1636 = vpop.f32.mrb[0].mxu0
        %v1637 = vadd.f32 %v936, %v1636
        %v1638 = vpop.f32.mrb[0].mxu0
        %1639 = vmatprep.mubr.bf16.mxu0 0
        %1640 = vmatmul.mubr.bf16.gmra.mrb[0].mxu0 %v1078
        %v1641 = vpop.f32.mrb[0].mxu0
        %v1642 = vadd.f32 %v936, %v1641
        %v1643 = vpop.f32.mrb[0].mxu0
        %v1644 = vpop.f32.mrb[0].mxu0
        %v1645 = vadd.f32 %v936, %v1644
        %v1646 = vpop.f32.mrb[0].mxu0
        %1647 = vmatprep.mubr.bf16.mxu0 0
        %1648 = vmatmul.mubr.bf16.gmra.mrb[0].mxu0 %v1081
        %v1649 = vpop.f32.mrb[0].mxu0
        %v1650 = vadd.f32 %v936, %v1649
        %v1651 = vpop.f32.mrb[0].mxu0
        %v1652 = vpop.f32.mrb[0].mxu0
        %v1653 = vadd.f32 %v936, %v1652
        %v1654 = vpop.f32.mrb[0].mxu0
        %1655 = vmatprep.mubr.bf16.mxu0 0
        %1656 = vmatmul.mubr.bf16.gmra.mrb[0].mxu0 %v1084
        %v1657 = vpop.f32.mrb[0].mxu0
        %v1658 = vadd.f32 %v936, %v1657
        %v1659 = vpop.f32.mrb[0].mxu0
        %v1660 = vpop.f32.mrb[0].mxu0
        %v1661 = vadd.f32 %v936, %v1660
        %v1662 = vpop.f32.mrb[0].mxu0
        %1663 = vdwg.mxu0
        %v1664 = vmul.f32 %v869, 0.35355338
        %v1665 = vlaneseq
        %v1666 = vshrl.u32 %v1665, 7
        %v1667 = vadd.s32 %v1666, 8
        %v1668 = vadd.s32 %v1666, 16
        %v1669 = vadd.s32 %v1666, 24
        %v1670 = vlaneseq
        %v1671 = vand.u32 %v1670, 127
        %v1672 = vmul.u32 %v1671, 8
        %vm1673 = vcmp.ge.s32.totalorder %v1666, %v1672
        %vm1674 = vcmp.ge.s32.totalorder %v1667, %v1672
        %vm1675 = vcmp.ge.s32.totalorder %v1668, %v1672
        %vm1676 = vcmp.ge.s32.totalorder %v1669, %v1672
        %v1677 = vadd.s32 %v1672, 8
        %vm1678 = vcmp.lt.s32.totalorder %v1666, %v1677
        %vm1679 = vcmp.lt.s32.totalorder %v1667, %v1677
        %vm1680 = vcmp.lt.s32.totalorder %v1668, %v1677
        %vm1681 = vcmp.lt.s32.totalorder %v1669, %v1677
        %vm1682 = vmand %vm1673, %vm1678
        %vm1683 = vmand %vm1674, %vm1679
        %vm1684 = vmand %vm1675, %vm1680
        %vm1685 = vmand %vm1676, %vm1681
        %v1686 = vsel %vm1682, 1, 0
        %v1687 = vsel %vm1683, 1, 0
        %v1688 = vsel %vm1684, 1, 0
        %v1689 = vsel %vm1685, 1, 0
        %v1690 = vcvt.s32.f32 %v1686
        %v1691 = vcvt.s32.f32 %v1687
        %v1692 = vcvt.s32.f32 %v1688
        %v1693 = vcvt.s32.f32 %v1689
        %v1694 = vmul.u32 %v1666, 8
        %vm1695 = vcmp.ge.s32.totalorder %v1671, %v1694
        %v1696 = vadd.s32 %v1694, 8
        %vm1697 = vcmp.lt.s32.totalorder %v1671, %v1696
        %vm1698 = vmand %vm1695, %vm1697
        %v1699 = vsel %vm1698, 1, 0
        %v1700 = vcvt.s32.f32 %v1699
        %v1702 = vcombine.high %v1664, %v1664
        %v1704 = vunpack.c.l.s4 1966171168
        %v1705 = vunpack.c.0.s8 %v1704
        %v1706 = vlaneseq
        %v1707 = vshrl.u32 %v1706, 7
        %v1708 = vsub.s32 %v1705, %v1707
        %v1709 = vrot.slane %v1664, %v1708
        %v1711 = vunpack.c.l.s4 1966171168
        %v1712 = vunpack.c.0.s8 %v1711
        %v1713 = vlaneseq
        %v1714 = vshrl.u32 %v1713, 7
        %v1715 = vsub.s32 %v1712, %v1714
        %v1716 = vrot.slane %v1702, %v1715
        %v1717 = vcombine.high %v1709, %v1709
        %v1718 = vcombine.high %v1716, %v1716
        %v1720 = vunpack.c.l.s4 1966171168
        %v1721 = vunpack.c.0.s8 %v1720
        %v1722 = vlaneseq
        %v1723 = vshrl.u32 %v1722, 7
        %v1724 = vsub.s32 %v1721, %v1723
        %v1725 = vrot.slane %v1709, %v1724
        %v1727 = vunpack.c.l.s4 1966171168
        %v1728 = vunpack.c.0.s8 %v1727
        %v1729 = vlaneseq
        %v1730 = vshrl.u32 %v1729, 7
        %v1731 = vsub.s32 %v1728, %v1730
        %v1732 = vrot.slane %v1716, %v1731
        %v1734 = vunpack.c.l.s4 1966171168
        %v1735 = vunpack.c.0.s8 %v1734
        %v1736 = vlaneseq
        %v1737 = vshrl.u32 %v1736, 7
        %v1738 = vsub.s32 %v1735, %v1737
        %v1739 = vrot.slane %v1717, %v1738
        %v1741 = vunpack.c.l.s4 1966171168
        %v1742 = vunpack.c.0.s8 %v1741
        %v1743 = vlaneseq
        %v1744 = vshrl.u32 %v1743, 7
        %v1745 = vsub.s32 %v1742, %v1744
        %v1746 = vrot.slane %v1718, %v1745
        %v1747 = vcombine.high %v1725, %v1725
        %v1748 = vcombine.high %v1732, %v1732
        %v1749 = vcombine.high %v1739, %v1739
        %v1750 = vcombine.high %v1746, %v1746
        %v1751 = vlaneseq
        %v1752 = vshrl.u32 %v1751, 7
        %v1753 = vsub.s32 0, %v1752
        %v1754 = vrot.slane %v1725, %v1753
        %v1755 = vlaneseq
        %v1756 = vshrl.u32 %v1755, 7
        %v1757 = vsub.s32 0, %v1756
        %v1758 = vrot.slane %v1739, %v1757
        %v1759 = vlaneseq
        %v1760 = vshrl.u32 %v1759, 7
        %v1761 = vsub.s32 0, %v1760
        %v1762 = vrot.slane %v1747, %v1761
        %v1763 = vlaneseq
        %v1764 = vshrl.u32 %v1763, 7
        %v1765 = vsub.s32 0, %v1764
        %v1766 = vrot.slane %v1749, %v1765
        %v1767 = vlaneseq
        %v1768 = vshrl.u32 %v1767, 7
        %v1769 = vsub.s32 0, %v1768
        %v1770 = vrot.slane %v1732, %v1769
        %v1771 = vlaneseq
        %v1772 = vshrl.u32 %v1771, 7
        %v1773 = vsub.s32 0, %v1772
        %v1774 = vrot.slane %v1746, %v1773
        %v1775 = vlaneseq
        %v1776 = vshrl.u32 %v1775, 7
        %v1777 = vsub.s32 0, %v1776
        %v1778 = vrot.slane %v1748, %v1777
        %v1779 = vlaneseq
        %v1780 = vshrl.u32 %v1779, 7
        %v1781 = vsub.s32 0, %v1780
        %v1782 = vrot.slane %v1750, %v1781
        %v1791 = vmul.f32 %v1754, %v1121
        %v1792 = vmul.f32 %v1754, %v1124
        %v1793 = vmul.f32 %v1754, %v1129
        %v1794 = vmul.f32 %v1754, %v1132
        %v1795 = vmul.f32 %v1754, %v1137
        %v1796 = vmul.f32 %v1754, %v1140
        %v1797 = vmul.f32 %v1754, %v1145
        %v1798 = vmul.f32 %v1754, %v1148
        %v1799 = vmul.f32 %v1758, %v1153
        %v1800 = vmul.f32 %v1758, %v1156
        %v1801 = vmul.f32 %v1758, %v1161
        %v1802 = vmul.f32 %v1758, %v1164
        %v1803 = vmul.f32 %v1758, %v1169
        %v1804 = vmul.f32 %v1758, %v1172
        %v1805 = vmul.f32 %v1758, %v1177
        %v1806 = vmul.f32 %v1758, %v1180
        %v1807 = vmul.f32 %v1762, %v1185
        %v1808 = vmul.f32 %v1762, %v1188
        %v1809 = vmul.f32 %v1762, %v1193
        %v1810 = vmul.f32 %v1762, %v1196
        %v1811 = vmul.f32 %v1762, %v1201
        %v1812 = vmul.f32 %v1762, %v1204
        %v1813 = vmul.f32 %v1762, %v1209
        %v1814 = vmul.f32 %v1762, %v1212
        %v1815 = vmul.f32 %v1766, %v1217
        %v1816 = vmul.f32 %v1766, %v1220
        %v1817 = vmul.f32 %v1766, %v1225
        %v1818 = vmul.f32 %v1766, %v1228
        %v1819 = vmul.f32 %v1766, %v1233
        %v1820 = vmul.f32 %v1766, %v1236
        %v1821 = vmul.f32 %v1766, %v1241
        %v1822 = vmul.f32 %v1766, %v1244
        %v1823 = vmul.f32 %v1770, %v1249
        %v1824 = vmul.f32 %v1770, %v1252
        %v1825 = vmul.f32 %v1770, %v1257
        %v1826 = vmul.f32 %v1770, %v1260
        %v1827 = vmul.f32 %v1770, %v1265
        %v1828 = vmul.f32 %v1770, %v1268
        %v1829 = vmul.f32 %v1770, %v1273
        %v1830 = vmul.f32 %v1770, %v1276
        %v1831 = vmul.f32 %v1774, %v1281
        %v1832 = vmul.f32 %v1774, %v1284
        %v1833 = vmul.f32 %v1774, %v1289
        %v1834 = vmul.f32 %v1774, %v1292
        %v1835 = vmul.f32 %v1774, %v1297
        %v1836 = vmul.f32 %v1774, %v1300
        %v1837 = vmul.f32 %v1774, %v1305
        %v1838 = vmul.f32 %v1774, %v1308
        %v1839 = vmul.f32 %v1778, %v1313
        %v1840 = vmul.f32 %v1778, %v1316
        %v1841 = vmul.f32 %v1778, %v1321
        %v1842 = vmul.f32 %v1778, %v1324
        %v1843 = vmul.f32 %v1778, %v1329
        %v1844 = vmul.f32 %v1778, %v1332
        %v1845 = vmul.f32 %v1778, %v1337
        %v1846 = vmul.f32 %v1778, %v1340
        %v1847 = vmul.f32 %v1782, %v1345
        %v1848 = vmul.f32 %v1782, %v1348
        %v1849 = vmul.f32 %v1782, %v1353
        %v1850 = vmul.f32 %v1782, %v1356
        %v1851 = vmul.f32 %v1782, %v1361
        %v1852 = vmul.f32 %v1782, %v1364
        %v1853 = vmul.f32 %v1782, %v1369
        %v1854 = vmul.f32 %v1782, %v1372
        %v1856 = vsel %vm464, %v1791, 0
        %v1859 = vsel %vm464, %v1792, 0
        %v1862 = vsel %vm464, %v1793, 0
        %v1865 = vsel %vm464, %v1794, 0
        %v1868 = vsel %vm464, %v1795, 0
        %v1871 = vsel %vm464, %v1796, 0
        %v1874 = vsel %vm464, %v1797, 0
        %v1877 = vsel %vm464, %v1798, 0
        %v1880 = vsel %vm464, %v1799, 0
        %v1883 = vsel %vm464, %v1800, 0
        %v1886 = vsel %vm464, %v1801, 0
        %v1889 = vsel %vm464, %v1802, 0
        %v1892 = vsel %vm464, %v1803, 0
        %v1895 = vsel %vm464, %v1804, 0
        %v1898 = vsel %vm464, %v1805, 0
        %v1901 = vsel %vm464, %v1806, 0
        %v1904 = vsel %vm464, %v1807, 0
        %v1907 = vsel %vm464, %v1808, 0
        %v1910 = vsel %vm464, %v1809, 0
        %v1913 = vsel %vm464, %v1810, 0
        %v1916 = vsel %vm464, %v1811, 0
        %v1919 = vsel %vm464, %v1812, 0
        %v1922 = vsel %vm464, %v1813, 0
        %v1925 = vsel %vm464, %v1814, 0
        %v1928 = vsel %vm464, %v1815, 0
        %v1931 = vsel %vm464, %v1816, 0
        %v1934 = vsel %vm464, %v1817, 0
        %v1937 = vsel %vm464, %v1818, 0
        %v1940 = vsel %vm464, %v1819, 0
        %v1943 = vsel %vm464, %v1820, 0
        %v1946 = vsel %vm464, %v1821, 0
        %v1949 = vsel %vm464, %v1822, 0
        %v1952 = vsel %vm464, %v1823, 0
        %v1955 = vsel %vm464, %v1824, 0
        %v1958 = vsel %vm464, %v1825, 0
        %v1961 = vsel %vm464, %v1826, 0
        %v1964 = vsel %vm464, %v1827, 0
        %v1967 = vsel %vm464, %v1828, 0
        %v1970 = vsel %vm464, %v1829, 0
        %v1973 = vsel %vm464, %v1830, 0
        %v1976 = vsel %vm464, %v1831, 0
        %v1979 = vsel %vm464, %v1832, 0
        %v1982 = vsel %vm464, %v1833, 0
        %v1985 = vsel %vm464, %v1834, 0
        %v1988 = vsel %vm464, %v1835, 0
        %v1991 = vsel %vm464, %v1836, 0
        %v1994 = vsel %vm464, %v1837, 0
        %v1997 = vsel %vm464, %v1838, 0
        %v2000 = vsel %vm464, %v1839, 0
        %v2003 = vsel %vm464, %v1840, 0
        %v2006 = vsel %vm464, %v1841, 0
        %v2009 = vsel %vm464, %v1842, 0
        %v2012 = vsel %vm464, %v1843, 0
        %v2015 = vsel %vm464, %v1844, 0
        %v2018 = vsel %vm464, %v1845, 0
        %v2021 = vsel %vm464, %v1846, 0
        %v2024 = vsel %vm464, %v1847, 0
        %v2027 = vsel %vm464, %v1848, 0
        %v2030 = vsel %vm464, %v1849, 0
        %v2033 = vsel %vm464, %v1850, 0
        %v2036 = vsel %vm464, %v1851, 0
        %v2039 = vsel %vm464, %v1852, 0
        %v2042 = vsel %vm464, %v1853, 0
        %v2045 = vsel %vm464, %v1854, 0
        %2047 = vmatprep.subr.mxu0 0.0
        %2048 = vmatpush1.msra.mxu0 %v1690
        %2049 = vmatprep.subr.mxu0 0.0
        %2050 = vmatpush1.msra.mxu0 %v1691
        %2051 = vmatprep.subr.mxu0 0.0
        %2052 = vmatpush1.msra.mxu0 %v1692
        %2053 = vmatprep.subr.mxu0 0.0
        %2054 = vmatpush1.msra.mxu0 %v1693
        %2055 = vmatprep.subr.mxu0 0.0
        %2056 = vmatpush1.msra.mxu0 0.0
        %2057 = vmatprep.subr.mxu0 0.0
        %2058 = vmatpush1.msra.mxu0 0.0
        %2059 = vmatprep.subr.mxu0 0.0
        %2060 = vmatpush1.msra.mxu0 0.0
        %2061 = vmatprep.subr.mxu0 0.0
        %2062 = vmatpush1.msra.mxu0 0.0
        %2063 = vmatprep.subr.mxu0 0.0
        %2064 = vmatpush1.msra.mxu0 0.0
        %2065 = vmatprep.subr.mxu0 0.0
        %2066 = vmatpush1.msra.mxu0 0.0
        %2067 = vmatprep.subr.mxu0 0.0
        %2068 = vmatpush1.msra.mxu0 0.0
        %2069 = vmatprep.subr.mxu0 0.0
        %2070 = vmatpush1.msra.mxu0 0.0
        %2071 = vmatprep.subr.mxu0 0.0
        %2072 = vmatpush1.msra.mxu0 0.0
        %2073 = vmatprep.subr.mxu0 0.0
        %2074 = vmatpush1.msra.mxu0 0.0
        %2075 = vmatprep.subr.mxu0 0.0
        %2076 = vmatpush1.msra.mxu0 0.0
        %2077 = vmatprep.subr.mxu0 0.0
        %2078 = vmatpush1.msra.mxu0 0.0
        %2079 = vmatprep.subr.mxu0 0.0
        %2080 = vmatpush1.msra.mxu0 0.0
        %2081 = vmatprep.subr.mxu0 0.0
        %2082 = vmatpush1.msra.mxu0 0.0
        %2083 = vmatprep.subr.mxu0 0.0
        %2084 = vmatpush1.msra.mxu0 0.0
        %2085 = vmatprep.subr.mxu0 0.0
        %2086 = vmatpush1.msra.mxu0 0.0
        %2087 = vmatprep.subr.mxu0 0.0
        %2088 = vmatpush1.msra.mxu0 0.0
        %2089 = vmatprep.subr.mxu0 0.0
        %2090 = vmatpush1.msra.mxu0 0.0
        %2091 = vmatprep.subr.mxu0 0.0
        %2092 = vmatpush1.msra.mxu0 0.0
        %2093 = vmatprep.subr.mxu0 0.0
        %2094 = vmatpush1.msra.mxu0 0.0
        %2095 = vmatprep.subr.mxu0 0.0
        %2096 = vmatpush1.msra.mxu0 0.0
        %2097 = vmatprep.subr.mxu0 0.0
        %2098 = vmatpush1.msra.mxu0 0.0
        %2099 = vmatprep.subr.mxu0 0.0
        %2100 = vmatpush1.msra.mxu0 0.0
        %2101 = vmatprep.subr.mxu0 0.0
        %2102 = vmatpush1.msra.mxu0 0.0
        %2103 = vmatprep.subr.mxu0 0.0
        %2104 = vmatpush1.msra.mxu0 0.0
        %2105 = vmatprep.subr.mxu0 0.0
        %2106 = vmatpush1.msra.mxu0 0.0
        %2107 = vmatprep.subr.mxu0 0.0
        %2108 = vmatpush1.msra.mxu0 0.0
        %2109 = vmatprep.subr.mxu0 0.0
        %2110 = vmatpush1.msra.mxu0 0.0
        %2111 = vmatprep.mubr.f32.mxu0 0.0
        %2112 = vmatmul.mubr.f32.gmra.mrb[0].mxu0 %v1856
        %v2113 = vpop.f32.mrb[0].mxu0
        %v2114 = vadd.f32 0.0, %v2113
        %v2115 = vpop.f32.mrb[0].mxu0
        %2116 = vmatprep.mubr.f32.mxu0 0.0
        %2117 = vmatmul.mubr.f32.gmra.mrb[0].mxu0 %v1859
        %v2118 = vpop.f32.mrb[0].mxu0
        %v2119 = vadd.f32 0.0, %v2118
        %v2120 = vpop.f32.mrb[0].mxu0
        %2121 = vmatprep.mubr.f32.mxu0 0.0
        %2122 = vmatmul.mubr.f32.gmra.mrb[0].mxu0 %v1862
        %v2123 = vpop.f32.mrb[0].mxu0
        %v2124 = vadd.f32 0.0, %v2123
        %v2125 = vpop.f32.mrb[0].mxu0
        %2126 = vmatprep.mubr.f32.mxu0 0.0
        %2127 = vmatmul.mubr.f32.gmra.mrb[0].mxu0 %v1865
        %v2128 = vpop.f32.mrb[0].mxu0
        %v2129 = vadd.f32 0.0, %v2128
        %v2130 = vpop.f32.mrb[0].mxu0
        %2131 = vmatprep.mubr.f32.mxu0 0.0
        %2132 = vmatmul.mubr.f32.gmra.mrb[0].mxu0 %v1868
        %v2133 = vpop.f32.mrb[0].mxu0
        %v2134 = vadd.f32 0.0, %v2133
        %v2135 = vpop.f32.mrb[0].mxu0
        %2136 = vmatprep.mubr.f32.mxu0 0.0
        %2137 = vmatmul.mubr.f32.gmra.mrb[0].mxu0 %v1871
        %v2138 = vpop.f32.mrb[0].mxu0
        %v2139 = vadd.f32 0.0, %v2138
        %v2140 = vpop.f32.mrb[0].mxu0
        %2141 = vmatprep.mubr.f32.mxu0 0.0
        %2142 = vmatmul.mubr.f32.gmra.mrb[0].mxu0 %v1874
        %v2143 = vpop.f32.mrb[0].mxu0
        %v2144 = vadd.f32 0.0, %v2143
        %v2145 = vpop.f32.mrb[0].mxu0
        %2146 = vmatprep.mubr.f32.mxu0 0.0
        %2147 = vmatmul.mubr.f32.gmra.mrb[0].mxu0 %v1877
        %v2148 = vpop.f32.mrb[0].mxu0
        %v2149 = vadd.f32 0.0, %v2148
        %v2150 = vpop.f32.mrb[0].mxu0
        %2151 = vmatprep.mubr.f32.mxu0 0.0
        %2152 = vmatmul.mubr.f32.gmra.mrb[0].mxu0 %v1880
        %v2153 = vpop.f32.mrb[0].mxu0
        %v2154 = vadd.f32 0.0, %v2153
        %v2155 = vpop.f32.mrb[0].mxu0
        %2156 = vmatprep.mubr.f32.mxu0 0.0
        %2157 = vmatmul.mubr.f32.gmra.mrb[0].mxu0 %v1883
        %v2158 = vpop.f32.mrb[0].mxu0
        %v2159 = vadd.f32 0.0, %v2158
        %v2160 = vpop.f32.mrb[0].mxu0
        %2161 = vmatprep.mubr.f32.mxu0 0.0
        %2162 = vmatmul.mubr.f32.gmra.mrb[0].mxu0 %v1886
        %v2163 = vpop.f32.mrb[0].mxu0
        %v2164 = vadd.f32 0.0, %v2163
        %v2165 = vpop.f32.mrb[0].mxu0
        %2166 = vmatprep.mubr.f32.mxu0 0.0
        %2167 = vmatmul.mubr.f32.gmra.mrb[0].mxu0 %v1889
        %v2168 = vpop.f32.mrb[0].mxu0
        %v2169 = vadd.f32 0.0, %v2168
        %v2170 = vpop.f32.mrb[0].mxu0
        %2171 = vmatprep.mubr.f32.mxu0 0.0
        %2172 = vmatmul.mubr.f32.gmra.mrb[0].mxu0 %v1892
        %v2173 = vpop.f32.mrb[0].mxu0
        %v2174 = vadd.f32 0.0, %v2173
        %v2175 = vpop.f32.mrb[0].mxu0
        %2176 = vmatprep.mubr.f32.mxu0 0.0
        %2177 = vmatmul.mubr.f32.gmra.mrb[0].mxu0 %v1895
        %v2178 = vpop.f32.mrb[0].mxu0
        %v2179 = vadd.f32 0.0, %v2178
        %v2180 = vpop.f32.mrb[0].mxu0
        %2181 = vmatprep.mubr.f32.mxu0 0.0
        %2182 = vmatmul.mubr.f32.gmra.mrb[0].mxu0 %v1898
        %v2183 = vpop.f32.mrb[0].mxu0
        %v2184 = vadd.f32 0.0, %v2183
        %v2185 = vpop.f32.mrb[0].mxu0
        %2186 = vmatprep.mubr.f32.mxu0 0.0
        %2187 = vmatmul.mubr.f32.gmra.mrb[0].mxu0 %v1901
        %v2188 = vpop.f32.mrb[0].mxu0
        %v2189 = vadd.f32 0.0, %v2188
        %v2190 = vpop.f32.mrb[0].mxu0
        %2191 = vmatprep.mubr.f32.mxu0 0.0
        %2192 = vmatmul.mubr.f32.gmra.mrb[0].mxu0 %v1904
        %v2193 = vpop.f32.mrb[0].mxu0
        %v2194 = vadd.f32 0.0, %v2193
        %v2195 = vpop.f32.mrb[0].mxu0
        %2196 = vmatprep.mubr.f32.mxu0 0.0
        %2197 = vmatmul.mubr.f32.gmra.mrb[0].mxu0 %v1907
        %v2198 = vpop.f32.mrb[0].mxu0
        %v2199 = vadd.f32 0.0, %v2198
        %v2200 = vpop.f32.mrb[0].mxu0
        %2201 = vmatprep.mubr.f32.mxu0 0.0
        %2202 = vmatmul.mubr.f32.gmra.mrb[0].mxu0 %v1910
        %v2203 = vpop.f32.mrb[0].mxu0
        %v2204 = vadd.f32 0.0, %v2203
        %v2205 = vpop.f32.mrb[0].mxu0
        %2206 = vmatprep.mubr.f32.mxu0 0.0
        %2207 = vmatmul.mubr.f32.gmra.mrb[0].mxu0 %v1913
        %v2208 = vpop.f32.mrb[0].mxu0
        %v2209 = vadd.f32 0.0, %v2208
        %v2210 = vpop.f32.mrb[0].mxu0
        %2211 = vmatprep.mubr.f32.mxu0 0.0
        %2212 = vmatmul.mubr.f32.gmra.mrb[0].mxu0 %v1916
        %v2213 = vpop.f32.mrb[0].mxu0
        %v2214 = vadd.f32 0.0, %v2213
        %v2215 = vpop.f32.mrb[0].mxu0
        %2216 = vmatprep.mubr.f32.mxu0 0.0
        %2217 = vmatmul.mubr.f32.gmra.mrb[0].mxu0 %v1919
        %v2218 = vpop.f32.mrb[0].mxu0
        %v2219 = vadd.f32 0.0, %v2218
        %v2220 = vpop.f32.mrb[0].mxu0
        %2221 = vmatprep.mubr.f32.mxu0 0.0
        %2222 = vmatmul.mubr.f32.gmra.mrb[0].mxu0 %v1922
        %v2223 = vpop.f32.mrb[0].mxu0
        %v2224 = vadd.f32 0.0, %v2223
        %v2225 = vpop.f32.mrb[0].mxu0
        %2226 = vmatprep.mubr.f32.mxu0 0.0
        %2227 = vmatmul.mubr.f32.gmra.mrb[0].mxu0 %v1925
        %v2228 = vpop.f32.mrb[0].mxu0
        %v2229 = vadd.f32 0.0, %v2228
        %v2230 = vpop.f32.mrb[0].mxu0
        %2231 = vmatprep.mubr.f32.mxu0 0.0
        %2232 = vmatmul.mubr.f32.gmra.mrb[0].mxu0 %v1928
        %v2233 = vpop.f32.mrb[0].mxu0
        %v2234 = vadd.f32 0.0, %v2233
        %v2235 = vpop.f32.mrb[0].mxu0
        %2236 = vmatprep.mubr.f32.mxu0 0.0
        %2237 = vmatmul.mubr.f32.gmra.mrb[0].mxu0 %v1931
        %v2238 = vpop.f32.mrb[0].mxu0
        %v2239 = vadd.f32 0.0, %v2238
        %v2240 = vpop.f32.mrb[0].mxu0
        %2241 = vmatprep.mubr.f32.mxu0 0.0
        %2242 = vmatmul.mubr.f32.gmra.mrb[0].mxu0 %v1934
        %v2243 = vpop.f32.mrb[0].mxu0
        %v2244 = vadd.f32 0.0, %v2243
        %v2245 = vpop.f32.mrb[0].mxu0
        %2246 = vmatprep.mubr.f32.mxu0 0.0
        %2247 = vmatmul.mubr.f32.gmra.mrb[0].mxu0 %v1937
        %v2248 = vpop.f32.mrb[0].mxu0
        %v2249 = vadd.f32 0.0, %v2248
        %v2250 = vpop.f32.mrb[0].mxu0
        %2251 = vmatprep.mubr.f32.mxu0 0.0
        %2252 = vmatmul.mubr.f32.gmra.mrb[0].mxu0 %v1940
        %v2253 = vpop.f32.mrb[0].mxu0
        %v2254 = vadd.f32 0.0, %v2253
        %v2255 = vpop.f32.mrb[0].mxu0
        %2256 = vmatprep.mubr.f32.mxu0 0.0
        %2257 = vmatmul.mubr.f32.gmra.mrb[0].mxu0 %v1943
        %v2258 = vpop.f32.mrb[0].mxu0
        %v2259 = vadd.f32 0.0, %v2258
        %v2260 = vpop.f32.mrb[0].mxu0
        %2261 = vmatprep.mubr.f32.mxu0 0.0
        %2262 = vmatmul.mubr.f32.gmra.mrb[0].mxu0 %v1946
        %v2263 = vpop.f32.mrb[0].mxu0
        %v2264 = vadd.f32 0.0, %v2263
        %v2265 = vpop.f32.mrb[0].mxu0
        %2266 = vmatprep.mubr.f32.mxu0 0.0
        %2267 = vmatmul.mubr.f32.gmra.mrb[0].mxu0 %v1949
        %v2268 = vpop.f32.mrb[0].mxu0
        %v2269 = vadd.f32 0.0, %v2268
        %v2270 = vpop.f32.mrb[0].mxu0
        %2271 = vmatprep.mubr.f32.mxu0 0.0
        %2272 = vmatmul.mubr.f32.gmra.mrb[0].mxu0 %v1952
        %v2273 = vpop.f32.mrb[0].mxu0
        %v2274 = vadd.f32 0.0, %v2273
        %v2275 = vpop.f32.mrb[0].mxu0
        %2276 = vmatprep.mubr.f32.mxu0 0.0
        %2277 = vmatmul.mubr.f32.gmra.mrb[0].mxu0 %v1955
        %v2278 = vpop.f32.mrb[0].mxu0
        %v2279 = vadd.f32 0.0, %v2278
        %v2280 = vpop.f32.mrb[0].mxu0
        %2281 = vmatprep.mubr.f32.mxu0 0.0
        %2282 = vmatmul.mubr.f32.gmra.mrb[0].mxu0 %v1958
        %v2283 = vpop.f32.mrb[0].mxu0
        %v2284 = vadd.f32 0.0, %v2283
        %v2285 = vpop.f32.mrb[0].mxu0
        %2286 = vmatprep.mubr.f32.mxu0 0.0
        %2287 = vmatmul.mubr.f32.gmra.mrb[0].mxu0 %v1961
        %v2288 = vpop.f32.mrb[0].mxu0
        %v2289 = vadd.f32 0.0, %v2288
        %v2290 = vpop.f32.mrb[0].mxu0
        %2291 = vmatprep.mubr.f32.mxu0 0.0
        %2292 = vmatmul.mubr.f32.gmra.mrb[0].mxu0 %v1964
        %v2293 = vpop.f32.mrb[0].mxu0
        %v2294 = vadd.f32 0.0, %v2293
        %v2295 = vpop.f32.mrb[0].mxu0
        %2296 = vmatprep.mubr.f32.mxu0 0.0
        %2297 = vmatmul.mubr.f32.gmra.mrb[0].mxu0 %v1967
        %v2298 = vpop.f32.mrb[0].mxu0
        %v2299 = vadd.f32 0.0, %v2298
        %v2300 = vpop.f32.mrb[0].mxu0
        %2301 = vmatprep.mubr.f32.mxu0 0.0
        %2302 = vmatmul.mubr.f32.gmra.mrb[0].mxu0 %v1970
        %v2303 = vpop.f32.mrb[0].mxu0
        %v2304 = vadd.f32 0.0, %v2303
        %v2305 = vpop.f32.mrb[0].mxu0
        %2306 = vmatprep.mubr.f32.mxu0 0.0
        %2307 = vmatmul.mubr.f32.gmra.mrb[0].mxu0 %v1973
        %v2308 = vpop.f32.mrb[0].mxu0
        %v2309 = vadd.f32 0.0, %v2308
        %v2310 = vpop.f32.mrb[0].mxu0
        %2311 = vmatprep.mubr.f32.mxu0 0.0
        %2312 = vmatmul.mubr.f32.gmra.mrb[0].mxu0 %v1976
        %v2313 = vpop.f32.mrb[0].mxu0
        %v2314 = vadd.f32 0.0, %v2313
        %v2315 = vpop.f32.mrb[0].mxu0
        %2316 = vmatprep.mubr.f32.mxu0 0.0
        %2317 = vmatmul.mubr.f32.gmra.mrb[0].mxu0 %v1979
        %v2318 = vpop.f32.mrb[0].mxu0
        %v2319 = vadd.f32 0.0, %v2318
        %v2320 = vpop.f32.mrb[0].mxu0
        %2321 = vmatprep.mubr.f32.mxu0 0.0
        %2322 = vmatmul.mubr.f32.gmra.mrb[0].mxu0 %v1982
        %v2323 = vpop.f32.mrb[0].mxu0
        %v2324 = vadd.f32 0.0, %v2323
        %v2325 = vpop.f32.mrb[0].mxu0
        %2326 = vmatprep.mubr.f32.mxu0 0.0
        %2327 = vmatmul.mubr.f32.gmra.mrb[0].mxu0 %v1985
        %v2328 = vpop.f32.mrb[0].mxu0
        %v2329 = vadd.f32 0.0, %v2328
        %v2330 = vpop.f32.mrb[0].mxu0
        %2331 = vmatprep.mubr.f32.mxu0 0.0
        %2332 = vmatmul.mubr.f32.gmra.mrb[0].mxu0 %v1988
        %v2333 = vpop.f32.mrb[0].mxu0
        %v2334 = vadd.f32 0.0, %v2333
        %v2335 = vpop.f32.mrb[0].mxu0
        %2336 = vmatprep.mubr.f32.mxu0 0.0
        %2337 = vmatmul.mubr.f32.gmra.mrb[0].mxu0 %v1991
        %v2338 = vpop.f32.mrb[0].mxu0
        %v2339 = vadd.f32 0.0, %v2338
        %v2340 = vpop.f32.mrb[0].mxu0
        %2341 = vmatprep.mubr.f32.mxu0 0.0
        %2342 = vmatmul.mubr.f32.gmra.mrb[0].mxu0 %v1994
        %v2343 = vpop.f32.mrb[0].mxu0
        %v2344 = vadd.f32 0.0, %v2343
        %v2345 = vpop.f32.mrb[0].mxu0
        %2346 = vmatprep.mubr.f32.mxu0 0.0
        %2347 = vmatmul.mubr.f32.gmra.mrb[0].mxu0 %v1997
        %v2348 = vpop.f32.mrb[0].mxu0
        %v2349 = vadd.f32 0.0, %v2348
        %v2350 = vpop.f32.mrb[0].mxu0
        %2351 = vmatprep.mubr.f32.mxu0 0.0
        %2352 = vmatmul.mubr.f32.gmra.mrb[0].mxu0 %v2000
        %v2353 = vpop.f32.mrb[0].mxu0
        %v2354 = vadd.f32 0.0, %v2353
        %v2355 = vpop.f32.mrb[0].mxu0
        %2356 = vmatprep.mubr.f32.mxu0 0.0
        %2357 = vmatmul.mubr.f32.gmra.mrb[0].mxu0 %v2003
        %v2358 = vpop.f32.mrb[0].mxu0
        %v2359 = vadd.f32 0.0, %v2358
        %v2360 = vpop.f32.mrb[0].mxu0
        %2361 = vmatprep.mubr.f32.mxu0 0.0
        %2362 = vmatmul.mubr.f32.gmra.mrb[0].mxu0 %v2006
        %v2363 = vpop.f32.mrb[0].mxu0
        %v2364 = vadd.f32 0.0, %v2363
        %v2365 = vpop.f32.mrb[0].mxu0
        %2366 = vmatprep.mubr.f32.mxu0 0.0
        %2367 = vmatmul.mubr.f32.gmra.mrb[0].mxu0 %v2009
        %v2368 = vpop.f32.mrb[0].mxu0
        %v2369 = vadd.f32 0.0, %v2368
        %v2370 = vpop.f32.mrb[0].mxu0
        %2371 = vmatprep.mubr.f32.mxu0 0.0
        %2372 = vmatmul.mubr.f32.gmra.mrb[0].mxu0 %v2012
        %v2373 = vpop.f32.mrb[0].mxu0
        %v2374 = vadd.f32 0.0, %v2373
        %v2375 = vpop.f32.mrb[0].mxu0
        %2376 = vmatprep.mubr.f32.mxu0 0.0
        %2377 = vmatmul.mubr.f32.gmra.mrb[0].mxu0 %v2015
        %v2378 = vpop.f32.mrb[0].mxu0
        %v2379 = vadd.f32 0.0, %v2378
        %v2380 = vpop.f32.mrb[0].mxu0
        %2381 = vmatprep.mubr.f32.mxu0 0.0
        %2382 = vmatmul.mubr.f32.gmra.mrb[0].mxu0 %v2018
        %v2383 = vpop.f32.mrb[0].mxu0
        %v2384 = vadd.f32 0.0, %v2383
        %v2385 = vpop.f32.mrb[0].mxu0
        %2386 = vmatprep.mubr.f32.mxu0 0.0
        %2387 = vmatmul.mubr.f32.gmra.mrb[0].mxu0 %v2021
        %v2388 = vpop.f32.mrb[0].mxu0
        %v2389 = vadd.f32 0.0, %v2388
        %v2390 = vpop.f32.mrb[0].mxu0
        %2391 = vmatprep.mubr.f32.mxu0 0.0
        %2392 = vmatmul.mubr.f32.gmra.mrb[0].mxu0 %v2024
        %v2393 = vpop.f32.mrb[0].mxu0
        %v2394 = vadd.f32 0.0, %v2393
        %v2395 = vpop.f32.mrb[0].mxu0
        %2396 = vmatprep.mubr.f32.mxu0 0.0
        %2397 = vmatmul.mubr.f32.gmra.mrb[0].mxu0 %v2027
        %v2398 = vpop.f32.mrb[0].mxu0
        %v2399 = vadd.f32 0.0, %v2398
        %v2400 = vpop.f32.mrb[0].mxu0
        %2401 = vmatprep.mubr.f32.mxu0 0.0
        %2402 = vmatmul.mubr.f32.gmra.mrb[0].mxu0 %v2030
        %v2403 = vpop.f32.mrb[0].mxu0
        %v2404 = vadd.f32 0.0, %v2403
        %v2405 = vpop.f32.mrb[0].mxu0
        %2406 = vmatprep.mubr.f32.mxu0 0.0
        %2407 = vmatmul.mubr.f32.gmra.mrb[0].mxu0 %v2033
        %v2408 = vpop.f32.mrb[0].mxu0
        %v2409 = vadd.f32 0.0, %v2408
        %v2410 = vpop.f32.mrb[0].mxu0
        %2411 = vmatprep.mubr.f32.mxu0 0.0
        %2412 = vmatmul.mubr.f32.gmra.mrb[0].mxu0 %v2036
        %v2413 = vpop.f32.mrb[0].mxu0
        %v2414 = vadd.f32 0.0, %v2413
        %v2415 = vpop.f32.mrb[0].mxu0
        %2416 = vmatprep.mubr.f32.mxu0 0.0
        %2417 = vmatmul.mubr.f32.gmra.mrb[0].mxu0 %v2039
        %v2418 = vpop.f32.mrb[0].mxu0
        %v2419 = vadd.f32 0.0, %v2418
        %v2420 = vpop.f32.mrb[0].mxu0
        %2421 = vmatprep.mubr.f32.mxu0 0.0
        %2422 = vmatmul.mubr.f32.gmra.mrb[0].mxu0 %v2042
        %v2423 = vpop.f32.mrb[0].mxu0
        %v2424 = vadd.f32 0.0, %v2423
        %v2425 = vpop.f32.mrb[0].mxu0
        %2426 = vmatprep.mubr.f32.mxu0 0.0
        %2427 = vmatmul.mubr.f32.gmra.mrb[0].mxu0 %v2045
        %v2428 = vpop.f32.mrb[0].mxu0
        %v2429 = vadd.f32 0.0, %v2428
        %v2430 = vpop.f32.mrb[0].mxu0
        %2431 = vdwg.mxu0
        %v2432 = vmul.f32 %v1664, %v927
        %v2434 = vsel %vm464, %v2432, 0
        %2436 = vmatprep.subr.mxu0 0.0
        %2437 = vmatpush1.msra.mxu0 %v1690
        %2438 = vmatprep.subr.mxu0 0.0
        %2439 = vmatpush1.msra.mxu0 %v1691
        %2440 = vmatprep.subr.mxu0 0.0
        %2441 = vmatpush1.msra.mxu0 %v1692
        %2442 = vmatprep.subr.mxu0 0.0
        %2443 = vmatpush1.msra.mxu0 %v1693
        %2444 = vmatprep.subr.mxu0 0.0
        %2445 = vmatpush1.msra.mxu0 0.0
        %2446 = vmatprep.subr.mxu0 0.0
        %2447 = vmatpush1.msra.mxu0 0.0
        %2448 = vmatprep.subr.mxu0 0.0
        %2449 = vmatpush1.msra.mxu0 0.0
        %2450 = vmatprep.subr.mxu0 0.0
        %2451 = vmatpush1.msra.mxu0 0.0
        %2452 = vmatprep.subr.mxu0 0.0
        %2453 = vmatpush1.msra.mxu0 0.0
        %2454 = vmatprep.subr.mxu0 0.0
        %2455 = vmatpush1.msra.mxu0 0.0
        %2456 = vmatprep.subr.mxu0 0.0
        %2457 = vmatpush1.msra.mxu0 0.0
        %2458 = vmatprep.subr.mxu0 0.0
        %2459 = vmatpush1.msra.mxu0 0.0
        %2460 = vmatprep.subr.mxu0 0.0
        %2461 = vmatpush1.msra.mxu0 0.0
        %2462 = vmatprep.subr.mxu0 0.0
        %2463 = vmatpush1.msra.mxu0 0.0
        %2464 = vmatprep.subr.mxu0 0.0
        %2465 = vmatpush1.msra.mxu0 0.0
        %2466 = vmatprep.subr.mxu0 0.0
        %2467 = vmatpush1.msra.mxu0 0.0
        %2468 = vmatprep.subr.mxu0 0.0
        %2469 = vmatpush1.msra.mxu0 0.0
        %2470 = vmatprep.subr.mxu0 0.0
        %2471 = vmatpush1.msra.mxu0 0.0
        %2472 = vmatprep.subr.mxu0 0.0
        %2473 = vmatpush1.msra.mxu0 0.0
        %2474 = vmatprep.subr.mxu0 0.0
        %2475 = vmatpush1.msra.mxu0 0.0
        %2476 = vmatprep.subr.mxu0 0.0
        %2477 = vmatpush1.msra.mxu0 0.0
        %2478 = vmatprep.subr.mxu0 0.0
        %2479 = vmatpush1.msra.mxu0 0.0
        %2480 = vmatprep.subr.mxu0 0.0
        %2481 = vmatpush1.msra.mxu0 0.0
        %2482 = vmatprep.subr.mxu0 0.0
        %2483 = vmatpush1.msra.mxu0 0.0
        %2484 = vmatprep.subr.mxu0 0.0
        %2485 = vmatpush1.msra.mxu0 0.0
        %2486 = vmatprep.subr.mxu0 0.0
        %2487 = vmatpush1.msra.mxu0 0.0
        %2488 = vmatprep.subr.mxu0 0.0
        %2489 = vmatpush1.msra.mxu0 0.0
        %2490 = vmatprep.subr.mxu0 0.0
        %2491 = vmatpush1.msra.mxu0 0.0
        %2492 = vmatprep.subr.mxu0 0.0
        %2493 = vmatpush1.msra.mxu0 0.0
        %2494 = vmatprep.subr.mxu0 0.0
        %2495 = vmatpush1.msra.mxu0 0.0
        %2496 = vmatprep.subr.mxu0 0.0
        %2497 = vmatpush1.msra.mxu0 0.0
        %2498 = vmatprep.subr.mxu0 0.0
        %2499 = vmatpush1.msra.mxu0 0.0
        %2500 = vmatprep.mubr.f32.mxu0 0.0
        %2501 = vmatmul.mubr.f32.gmra.mrb[0].mxu0 %v2434
        %v2502 = vpop.f32.mrb[0].mxu0
        %v2503 = vadd.f32 0.0, %v2502
        %v2504 = vpop.f32.mrb[0].mxu0
        %2505 = vdwg.mxu0
        %vm2506 = vcmask 31744
        %v2507 = vsel %vm2506, %v2114, -inf
        %v2508 = vsel %vm2506, %v2119, -inf
        %v2509 = vmax.f32 %v2507, %v2508
        %v2510 = vsel %vm2506, %v2124, -inf
        %v2511 = vmax.f32 %v2509, %v2510
        %v2512 = vsel %vm2506, %v2129, -inf
        %v2513 = vmax.f32 %v2511, %v2512
        %v2514 = vsel %vm2506, %v2134, -inf
        %v2515 = vmax.f32 %v2513, %v2514
        %v2516 = vsel %vm2506, %v2139, -inf
        %v2517 = vmax.f32 %v2515, %v2516
        %v2518 = vsel %vm2506, %v2144, -inf
        %v2519 = vmax.f32 %v2517, %v2518
        %v2520 = vsel %vm2506, %v2149, -inf
        %v2521 = vmax.f32 %v2519, %v2520
        %v2522 = vrot.slane %v2521, 4
        %v2523 = vmax.f32 %v2521, %v2522
        %v2524 = vrot.slane %v2523, 2
        %v2525 = vmax.f32 %v2523, %v2524
        %v2526 = vrot.slane %v2525, 1
        %v2527 = vmax.f32 %v2525, %v2526
        %v2528 = vsel %vm2506, %v2154, -inf
        %v2529 = vsel %vm2506, %v2159, -inf
        %v2530 = vmax.f32 %v2528, %v2529
        %v2531 = vsel %vm2506, %v2164, -inf
        %v2532 = vmax.f32 %v2530, %v2531
        %v2533 = vsel %vm2506, %v2169, -inf
        %v2534 = vmax.f32 %v2532, %v2533
        %v2535 = vsel %vm2506, %v2174, -inf
        %v2536 = vmax.f32 %v2534, %v2535
        %v2537 = vsel %vm2506, %v2179, -inf
        %v2538 = vmax.f32 %v2536, %v2537
        %v2539 = vsel %vm2506, %v2184, -inf
        %v2540 = vmax.f32 %v2538, %v2539
        %v2541 = vsel %vm2506, %v2189, -inf
        %v2542 = vmax.f32 %v2540, %v2541
        %v2543 = vrot.slane %v2542, 4
        %v2544 = vmax.f32 %v2542, %v2543
        %v2545 = vrot.slane %v2544, 2
        %v2546 = vmax.f32 %v2544, %v2545
        %v2547 = vrot.slane %v2546, 1
        %v2548 = vmax.f32 %v2546, %v2547
        %v2549 = vsel %vm2506, %v2194, -inf
        %v2550 = vsel %vm2506, %v2199, -inf
        %v2551 = vmax.f32 %v2549, %v2550
        %v2552 = vsel %vm2506, %v2204, -inf
        %v2553 = vmax.f32 %v2551, %v2552
        %v2554 = vsel %vm2506, %v2209, -inf
        %v2555 = vmax.f32 %v2553, %v2554
        %v2556 = vsel %vm2506, %v2214, -inf
        %v2557 = vmax.f32 %v2555, %v2556
        %v2558 = vsel %vm2506, %v2219, -inf
        %v2559 = vmax.f32 %v2557, %v2558
        %v2560 = vsel %vm2506, %v2224, -inf
        %v2561 = vmax.f32 %v2559, %v2560
        %v2562 = vsel %vm2506, %v2229, -inf
        %v2563 = vmax.f32 %v2561, %v2562
        %v2564 = vrot.slane %v2563, 4
        %v2565 = vmax.f32 %v2563, %v2564
        %v2566 = vrot.slane %v2565, 2
        %v2567 = vmax.f32 %v2565, %v2566
        %v2568 = vrot.slane %v2567, 1
        %v2569 = vmax.f32 %v2567, %v2568
        %v2570 = vsel %vm2506, %v2234, -inf
        %v2571 = vsel %vm2506, %v2239, -inf
        %v2572 = vmax.f32 %v2570, %v2571
        %v2573 = vsel %vm2506, %v2244, -inf
        %v2574 = vmax.f32 %v2572, %v2573
        %v2575 = vsel %vm2506, %v2249, -inf
        %v2576 = vmax.f32 %v2574, %v2575
        %v2577 = vsel %vm2506, %v2254, -inf
        %v2578 = vmax.f32 %v2576, %v2577
        %v2579 = vsel %vm2506, %v2259, -inf
        %v2580 = vmax.f32 %v2578, %v2579
        %v2581 = vsel %vm2506, %v2264, -inf
        %v2582 = vmax.f32 %v2580, %v2581
        %v2583 = vsel %vm2506, %v2269, -inf
        %v2584 = vmax.f32 %v2582, %v2583
        %v2585 = vrot.slane %v2584, 4
        %v2586 = vmax.f32 %v2584, %v2585
        %v2587 = vrot.slane %v2586, 2
        %v2588 = vmax.f32 %v2586, %v2587
        %v2589 = vrot.slane %v2588, 1
        %v2590 = vmax.f32 %v2588, %v2589
        %v2591 = vsel %vm2506, %v2274, -inf
        %v2592 = vsel %vm2506, %v2279, -inf
        %v2593 = vmax.f32 %v2591, %v2592
        %v2594 = vsel %vm2506, %v2284, -inf
        %v2595 = vmax.f32 %v2593, %v2594
        %v2596 = vsel %vm2506, %v2289, -inf
        %v2597 = vmax.f32 %v2595, %v2596
        %v2598 = vsel %vm2506, %v2294, -inf
        %v2599 = vmax.f32 %v2597, %v2598
        %v2600 = vsel %vm2506, %v2299, -inf
        %v2601 = vmax.f32 %v2599, %v2600
        %v2602 = vsel %vm2506, %v2304, -inf
        %v2603 = vmax.f32 %v2601, %v2602
        %v2604 = vsel %vm2506, %v2309, -inf
        %v2605 = vmax.f32 %v2603, %v2604
        %v2606 = vrot.slane %v2605, 4
        %v2607 = vmax.f32 %v2605, %v2606
        %v2608 = vrot.slane %v2607, 2
        %v2609 = vmax.f32 %v2607, %v2608
        %v2610 = vrot.slane %v2609, 1
        %v2611 = vmax.f32 %v2609, %v2610
        %v2612 = vsel %vm2506, %v2314, -inf
        %v2613 = vsel %vm2506, %v2319, -inf
        %v2614 = vmax.f32 %v2612, %v2613
        %v2615 = vsel %vm2506, %v2324, -inf
        %v2616 = vmax.f32 %v2614, %v2615
        %v2617 = vsel %vm2506, %v2329, -inf
        %v2618 = vmax.f32 %v2616, %v2617
        %v2619 = vsel %vm2506, %v2334, -inf
        %v2620 = vmax.f32 %v2618, %v2619
        %v2621 = vsel %vm2506, %v2339, -inf
        %v2622 = vmax.f32 %v2620, %v2621
        %v2623 = vsel %vm2506, %v2344, -inf
        %v2624 = vmax.f32 %v2622, %v2623
        %v2625 = vsel %vm2506, %v2349, -inf
        %v2626 = vmax.f32 %v2624, %v2625
        %v2627 = vrot.slane %v2626, 4
        %v2628 = vmax.f32 %v2626, %v2627
        %v2629 = vrot.slane %v2628, 2
        %v2630 = vmax.f32 %v2628, %v2629
        %v2631 = vrot.slane %v2630, 1
        %v2632 = vmax.f32 %v2630, %v2631
        %v2633 = vsel %vm2506, %v2354, -inf
        %v2634 = vsel %vm2506, %v2359, -inf
        %v2635 = vmax.f32 %v2633, %v2634
        %v2636 = vsel %vm2506, %v2364, -inf
        %v2637 = vmax.f32 %v2635, %v2636
        %v2638 = vsel %vm2506, %v2369, -inf
        %v2639 = vmax.f32 %v2637, %v2638
        %v2640 = vsel %vm2506, %v2374, -inf
        %v2641 = vmax.f32 %v2639, %v2640
        %v2642 = vsel %vm2506, %v2379, -inf
        %v2643 = vmax.f32 %v2641, %v2642
        %v2644 = vsel %vm2506, %v2384, -inf
        %v2645 = vmax.f32 %v2643, %v2644
        %v2646 = vsel %vm2506, %v2389, -inf
        %v2647 = vmax.f32 %v2645, %v2646
        %v2648 = vrot.slane %v2647, 4
        %v2649 = vmax.f32 %v2647, %v2648
        %v2650 = vrot.slane %v2649, 2
        %v2651 = vmax.f32 %v2649, %v2650
        %v2652 = vrot.slane %v2651, 1
        %v2653 = vmax.f32 %v2651, %v2652
        %v2654 = vsel %vm2506, %v2394, -inf
        %v2655 = vsel %vm2506, %v2399, -inf
        %v2656 = vmax.f32 %v2654, %v2655
        %v2657 = vsel %vm2506, %v2404, -inf
        %v2658 = vmax.f32 %v2656, %v2657
        %v2659 = vsel %vm2506, %v2409, -inf
        %v2660 = vmax.f32 %v2658, %v2659
        %v2661 = vsel %vm2506, %v2414, -inf
        %v2662 = vmax.f32 %v2660, %v2661
        %v2663 = vsel %vm2506, %v2419, -inf
        %v2664 = vmax.f32 %v2662, %v2663
        %v2665 = vsel %vm2506, %v2424, -inf
        %v2666 = vmax.f32 %v2664, %v2665
        %v2667 = vsel %vm2506, %v2429, -inf
        %v2668 = vmax.f32 %v2666, %v2667
        %v2669 = vrot.slane %v2668, 4
        %v2670 = vmax.f32 %v2668, %v2669
        %v2671 = vrot.slane %v2670, 2
        %v2672 = vmax.f32 %v2670, %v2671
        %v2673 = vrot.slane %v2672, 1
        %v2674 = vmax.f32 %v2672, %v2673
        %v2676 = vrot.slane %v2503, 1
        %v2677 = vrot.slane %v2503, 2
        %v2678 = vrot.slane %v2503, 3
        %v2679 = vrot.slane %v2503, 4
        %v2680 = vrot.slane %v2503, 5
        %v2681 = vrot.slane %v2503, 6
        %v2682 = vrot.slane %v2503, 7
        %v2691 = vmax.f32 %v2527, %v2503
        %v2692 = vmax.f32 %v2548, %v2676
        %v2693 = vmax.f32 %v2569, %v2677
        %v2694 = vmax.f32 %v2590, %v2678
        %v2695 = vmax.f32 %v2611, %v2679
        %v2696 = vmax.f32 %v2632, %v2680
        %v2697 = vmax.f32 %v2653, %v2681
        %v2698 = vmax.f32 %v2674, %v2682
        %v2699 = vlaneseq
        %v2700 = vshrl.u32 %v2699, 7
        %v2701 = vsub.s32 0, %v2700
        %v2702 = vrot.slane %v2691, %v2701
        %v2703 = vlaneseq
        %v2704 = vshrl.u32 %v2703, 7
        %v2705 = vsub.s32 0, %v2704
        %v2706 = vrot.slane %v2692, %v2705
        %v2707 = vlaneseq
        %v2708 = vshrl.u32 %v2707, 7
        %v2709 = vsub.s32 0, %v2708
        %v2710 = vrot.slane %v2693, %v2709
        %v2711 = vlaneseq
        %v2712 = vshrl.u32 %v2711, 7
        %v2713 = vsub.s32 0, %v2712
        %v2714 = vrot.slane %v2694, %v2713
        %v2715 = vlaneseq
        %v2716 = vshrl.u32 %v2715, 7
        %v2717 = vsub.s32 0, %v2716
        %v2718 = vrot.slane %v2695, %v2717
        %v2719 = vlaneseq
        %v2720 = vshrl.u32 %v2719, 7
        %v2721 = vsub.s32 0, %v2720
        %v2722 = vrot.slane %v2696, %v2721
        %v2723 = vlaneseq
        %v2724 = vshrl.u32 %v2723, 7
        %v2725 = vsub.s32 0, %v2724
        %v2726 = vrot.slane %v2697, %v2725
        %v2727 = vlaneseq
        %v2728 = vshrl.u32 %v2727, 7
        %v2729 = vsub.s32 0, %v2728
        %v2730 = vrot.slane %v2698, %v2729
        %v2731 = vsub.f32 %v2114, %v2702
        %v2732 = vsub.f32 %v2119, %v2702
        %v2733 = vsub.f32 %v2124, %v2702
        %v2734 = vsub.f32 %v2129, %v2702
        %v2735 = vsub.f32 %v2134, %v2702
        %v2736 = vsub.f32 %v2139, %v2702
        %v2737 = vsub.f32 %v2144, %v2702
        %v2738 = vsub.f32 %v2149, %v2702
        %v2739 = vsub.f32 %v2154, %v2706
        %v2740 = vsub.f32 %v2159, %v2706
        %v2741 = vsub.f32 %v2164, %v2706
        %v2742 = vsub.f32 %v2169, %v2706
        %v2743 = vsub.f32 %v2174, %v2706
        %v2744 = vsub.f32 %v2179, %v2706
        %v2745 = vsub.f32 %v2184, %v2706
        %v2746 = vsub.f32 %v2189, %v2706
        %v2747 = vsub.f32 %v2194, %v2710
        %v2748 = vsub.f32 %v2199, %v2710
        %v2749 = vsub.f32 %v2204, %v2710
        %v2750 = vsub.f32 %v2209, %v2710
        %v2751 = vsub.f32 %v2214, %v2710
        %v2752 = vsub.f32 %v2219, %v2710
        %v2753 = vsub.f32 %v2224, %v2710
        %v2754 = vsub.f32 %v2229, %v2710
        %v2755 = vsub.f32 %v2234, %v2714
        %v2756 = vsub.f32 %v2239, %v2714
        %v2757 = vsub.f32 %v2244, %v2714
        %v2758 = vsub.f32 %v2249, %v2714
        %v2759 = vsub.f32 %v2254, %v2714
        %v2760 = vsub.f32 %v2259, %v2714
        %v2761 = vsub.f32 %v2264, %v2714
        %v2762 = vsub.f32 %v2269, %v2714
        %v2763 = vsub.f32 %v2274, %v2718
        %v2764 = vsub.f32 %v2279, %v2718
        %v2765 = vsub.f32 %v2284, %v2718
        %v2766 = vsub.f32 %v2289, %v2718
        %v2767 = vsub.f32 %v2294, %v2718
        %v2768 = vsub.f32 %v2299, %v2718
        %v2769 = vsub.f32 %v2304, %v2718
        %v2770 = vsub.f32 %v2309, %v2718
        %v2771 = vsub.f32 %v2314, %v2722
        %v2772 = vsub.f32 %v2319, %v2722
        %v2773 = vsub.f32 %v2324, %v2722
        %v2774 = vsub.f32 %v2329, %v2722
        %v2775 = vsub.f32 %v2334, %v2722
        %v2776 = vsub.f32 %v2339, %v2722
        %v2777 = vsub.f32 %v2344, %v2722
        %v2778 = vsub.f32 %v2349, %v2722
        %v2779 = vsub.f32 %v2354, %v2726
        %v2780 = vsub.f32 %v2359, %v2726
        %v2781 = vsub.f32 %v2364, %v2726
        %v2782 = vsub.f32 %v2369, %v2726
        %v2783 = vsub.f32 %v2374, %v2726
        %v2784 = vsub.f32 %v2379, %v2726
        %v2785 = vsub.f32 %v2384, %v2726
        %v2786 = vsub.f32 %v2389, %v2726
        %v2787 = vsub.f32 %v2394, %v2730
        %v2788 = vsub.f32 %v2399, %v2730
        %v2789 = vsub.f32 %v2404, %v2730
        %v2790 = vsub.f32 %v2409, %v2730
        %v2791 = vsub.f32 %v2414, %v2730
        %v2792 = vsub.f32 %v2419, %v2730
        %v2793 = vsub.f32 %v2424, %v2730
        %v2794 = vsub.f32 %v2429, %v2730
        %v2795 = vmul.f32 %v2731, 1.442695
        %v2796 = vpow.pop %v2795
        %v2797 = vmul.f32 %v2732, 1.442695
        %v2798 = vpow.pop %v2797
        %v2799 = vmul.f32 %v2733, 1.442695
        %v2800 = vpow.pop %v2799
        %v2801 = vmul.f32 %v2734, 1.442695
        %v2802 = vpow.pop %v2801
        %v2803 = vmul.f32 %v2735, 1.442695
        %v2804 = vpow.pop %v2803
        %v2805 = vmul.f32 %v2736, 1.442695
        %v2806 = vpow.pop %v2805
        %v2807 = vmul.f32 %v2737, 1.442695
        %v2808 = vpow.pop %v2807
        %v2809 = vmul.f32 %v2738, 1.442695
        %v2810 = vpow.pop %v2809
        %v2811 = vmul.f32 %v2739, 1.442695
        %v2812 = vpow.pop %v2811
        %v2813 = vmul.f32 %v2740, 1.442695
        %v2814 = vpow.pop %v2813
        %v2815 = vmul.f32 %v2741, 1.442695
        %v2816 = vpow.pop %v2815
        %v2817 = vmul.f32 %v2742, 1.442695
        %v2818 = vpow.pop %v2817
        %v2819 = vmul.f32 %v2743, 1.442695
        %v2820 = vpow.pop %v2819
        %v2821 = vmul.f32 %v2744, 1.442695
        %v2822 = vpow.pop %v2821
        %v2823 = vmul.f32 %v2745, 1.442695
        %v2824 = vpow.pop %v2823
        %v2825 = vmul.f32 %v2746, 1.442695
        %v2826 = vpow.pop %v2825
        %v2827 = vmul.f32 %v2747, 1.442695
        %v2828 = vpow.pop %v2827
        %v2829 = vmul.f32 %v2748, 1.442695
        %v2830 = vpow.pop %v2829
        %v2831 = vmul.f32 %v2749, 1.442695
        %v2832 = vpow.pop %v2831
        %v2833 = vmul.f32 %v2750, 1.442695
        %v2834 = vpow.pop %v2833
        %v2835 = vmul.f32 %v2751, 1.442695
        %v2836 = vpow.pop %v2835
        %v2837 = vmul.f32 %v2752, 1.442695
        %v2838 = vpow.pop %v2837
        %v2839 = vmul.f32 %v2753, 1.442695
        %v2840 = vpow.pop %v2839
        %v2841 = vmul.f32 %v2754, 1.442695
        %v2842 = vpow.pop %v2841
        %v2843 = vmul.f32 %v2755, 1.442695
        %v2844 = vpow.pop %v2843
        %v2845 = vmul.f32 %v2756, 1.442695
        %v2846 = vpow.pop %v2845
        %v2847 = vmul.f32 %v2757, 1.442695
        %v2848 = vpow.pop %v2847
        %v2849 = vmul.f32 %v2758, 1.442695
        %v2850 = vpow.pop %v2849
        %v2851 = vmul.f32 %v2759, 1.442695
        %v2852 = vpow.pop %v2851
        %v2853 = vmul.f32 %v2760, 1.442695
        %v2854 = vpow.pop %v2853
        %v2855 = vmul.f32 %v2761, 1.442695
        %v2856 = vpow.pop %v2855
        %v2857 = vmul.f32 %v2762, 1.442695
        %v2858 = vpow.pop %v2857
        %v2859 = vmul.f32 %v2763, 1.442695
        %v2860 = vpow.pop %v2859
        %v2861 = vmul.f32 %v2764, 1.442695
        %v2862 = vpow.pop %v2861
        %v2863 = vmul.f32 %v2765, 1.442695
        %v2864 = vpow.pop %v2863
        %v2865 = vmul.f32 %v2766, 1.442695
        %v2866 = vpow.pop %v2865
        %v2867 = vmul.f32 %v2767, 1.442695
        %v2868 = vpow.pop %v2867
        %v2869 = vmul.f32 %v2768, 1.442695
        %v2870 = vpow.pop %v2869
        %v2871 = vmul.f32 %v2769, 1.442695
        %v2872 = vpow.pop %v2871
        %v2873 = vmul.f32 %v2770, 1.442695
        %v2874 = vpow.pop %v2873
        %v2875 = vmul.f32 %v2771, 1.442695
        %v2876 = vpow.pop %v2875
        %v2877 = vmul.f32 %v2772, 1.442695
        %v2878 = vpow.pop %v2877
        %v2879 = vmul.f32 %v2773, 1.442695
        %v2880 = vpow.pop %v2879
        %v2881 = vmul.f32 %v2774, 1.442695
        %v2882 = vpow.pop %v2881
        %v2883 = vmul.f32 %v2775, 1.442695
        %v2884 = vpow.pop %v2883
        %v2885 = vmul.f32 %v2776, 1.442695
        %v2886 = vpow.pop %v2885
        %v2887 = vmul.f32 %v2777, 1.442695
        %v2888 = vpow.pop %v2887
        %v2889 = vmul.f32 %v2778, 1.442695
        %v2890 = vpow.pop %v2889
        %v2891 = vmul.f32 %v2779, 1.442695
        %v2892 = vpow.pop %v2891
        %v2893 = vmul.f32 %v2780, 1.442695
        %v2894 = vpow.pop %v2893
        %v2895 = vmul.f32 %v2781, 1.442695
        %v2896 = vpow.pop %v2895
        %v2897 = vmul.f32 %v2782, 1.442695
        %v2898 = vpow.pop %v2897
        %v2899 = vmul.f32 %v2783, 1.442695
        %v2900 = vpow.pop %v2899
        %v2901 = vmul.f32 %v2784, 1.442695
        %v2902 = vpow.pop %v2901
        %v2903 = vmul.f32 %v2785, 1.442695
        %v2904 = vpow.pop %v2903
        %v2905 = vmul.f32 %v2786, 1.442695
        %v2906 = vpow.pop %v2905
        %v2907 = vmul.f32 %v2787, 1.442695
        %v2908 = vpow.pop %v2907
        %v2909 = vmul.f32 %v2788, 1.442695
        %v2910 = vpow.pop %v2909
        %v2911 = vmul.f32 %v2789, 1.442695
        %v2912 = vpow.pop %v2911
        %v2913 = vmul.f32 %v2790, 1.442695
        %v2914 = vpow.pop %v2913
        %v2915 = vmul.f32 %v2791, 1.442695
        %v2916 = vpow.pop %v2915
        %v2917 = vmul.f32 %v2792, 1.442695
        %v2918 = vpow.pop %v2917
        %v2919 = vmul.f32 %v2793, 1.442695
        %v2920 = vpow.pop %v2919
        %v2921 = vmul.f32 %v2794, 1.442695
        %v2922 = vpow.pop %v2921
        %v2931 = vrot.slane %v2692, 7
        %v2932 = vsel %vm798, %v2931, %v2691
        %v2933 = vrot.slane %v2693, 6
        %v2934 = vsel %vm801, %v2933, %v2932
        %v2935 = vrot.slane %v2694, 5
        %v2936 = vsel %vm804, %v2935, %v2934
        %v2937 = vrot.slane %v2695, 4
        %v2938 = vsel %vm807, %v2937, %v2936
        %v2939 = vrot.slane %v2696, 3
        %v2940 = vsel %vm810, %v2939, %v2938
        %v2941 = vrot.slane %v2697, 2
        %v2942 = vsel %vm813, %v2941, %v2940
        %v2943 = vrot.slane %v2698, 1
        %v2944 = vsel %vm816, %v2943, %v2942
        %v2946 = vsub.f32 %v2503, %v2944
        %v2947 = vmul.f32 %v2946, 1.442695
        %v2948 = vpow.pop %v2947
        %v2949 = vsel %vm2506, %v2796, 0.0
        %v2950 = vsel %vm2506, %v2798, 0.0
        %v2951 = vadd.f32 %v2949, %v2950
        %v2952 = vsel %vm2506, %v2800, 0.0
        %v2953 = vadd.f32 %v2951, %v2952
        %v2954 = vsel %vm2506, %v2802, 0.0
        %v2955 = vadd.f32 %v2953, %v2954
        %v2956 = vsel %vm2506, %v2804, 0.0
        %v2957 = vadd.f32 %v2955, %v2956
        %v2958 = vsel %vm2506, %v2806, 0.0
        %v2959 = vadd.f32 %v2957, %v2958
        %v2960 = vsel %vm2506, %v2808, 0.0
        %v2961 = vadd.f32 %v2959, %v2960
        %v2962 = vsel %vm2506, %v2810, 0.0
        %v2963 = vadd.f32 %v2961, %v2962
        %v2964 = vrot.slane %v2963, 4
        %v2965 = vadd.f32 %v2963, %v2964
        %v2966 = vrot.slane %v2965, 2
        %v2967 = vadd.f32 %v2965, %v2966
        %v2968 = vrot.slane %v2967, 1
        %v2969 = vadd.f32 %v2967, %v2968
        %v2970 = vsel %vm2506, %v2812, 0.0
        %v2971 = vsel %vm2506, %v2814, 0.0
        %v2972 = vadd.f32 %v2970, %v2971
        %v2973 = vsel %vm2506, %v2816, 0.0
        %v2974 = vadd.f32 %v2972, %v2973
        %v2975 = vsel %vm2506, %v2818, 0.0
        %v2976 = vadd.f32 %v2974, %v2975
        %v2977 = vsel %vm2506, %v2820, 0.0
        %v2978 = vadd.f32 %v2976, %v2977
        %v2979 = vsel %vm2506, %v2822, 0.0
        %v2980 = vadd.f32 %v2978, %v2979
        %v2981 = vsel %vm2506, %v2824, 0.0
        %v2982 = vadd.f32 %v2980, %v2981
        %v2983 = vsel %vm2506, %v2826, 0.0
        %v2984 = vadd.f32 %v2982, %v2983
        %v2985 = vrot.slane %v2984, 4
        %v2986 = vadd.f32 %v2984, %v2985
        %v2987 = vrot.slane %v2986, 2
        %v2988 = vadd.f32 %v2986, %v2987
        %v2989 = vrot.slane %v2988, 1
        %v2990 = vadd.f32 %v2988, %v2989
        %v2991 = vsel %vm2506, %v2828, 0.0
        %v2992 = vsel %vm2506, %v2830, 0.0
        %v2993 = vadd.f32 %v2991, %v2992
        %v2994 = vsel %vm2506, %v2832, 0.0
        %v2995 = vadd.f32 %v2993, %v2994
        %v2996 = vsel %vm2506, %v2834, 0.0
        %v2997 = vadd.f32 %v2995, %v2996
        %v2998 = vsel %vm2506, %v2836, 0.0
        %v2999 = vadd.f32 %v2997, %v2998
        %v3000 = vsel %vm2506, %v2838, 0.0
        %v3001 = vadd.f32 %v2999, %v3000
        %v3002 = vsel %vm2506, %v2840, 0.0
        %v3003 = vadd.f32 %v3001, %v3002
        %v3004 = vsel %vm2506, %v2842, 0.0
        %v3005 = vadd.f32 %v3003, %v3004
        %v3006 = vrot.slane %v3005, 4
        %v3007 = vadd.f32 %v3005, %v3006
        %v3008 = vrot.slane %v3007, 2
        %v3009 = vadd.f32 %v3007, %v3008
        %v3010 = vrot.slane %v3009, 1
        %v3011 = vadd.f32 %v3009, %v3010
        %v3012 = vsel %vm2506, %v2844, 0.0
        %v3013 = vsel %vm2506, %v2846, 0.0
        %v3014 = vadd.f32 %v3012, %v3013
        %v3015 = vsel %vm2506, %v2848, 0.0
        %v3016 = vadd.f32 %v3014, %v3015
        %v3017 = vsel %vm2506, %v2850, 0.0
        %v3018 = vadd.f32 %v3016, %v3017
        %v3019 = vsel %vm2506, %v2852, 0.0
        %v3020 = vadd.f32 %v3018, %v3019
        %v3021 = vsel %vm2506, %v2854, 0.0
        %v3022 = vadd.f32 %v3020, %v3021
        %v3023 = vsel %vm2506, %v2856, 0.0
        %v3024 = vadd.f32 %v3022, %v3023
        %v3025 = vsel %vm2506, %v2858, 0.0
        %v3026 = vadd.f32 %v3024, %v3025
        %v3027 = vrot.slane %v3026, 4
        %v3028 = vadd.f32 %v3026, %v3027
        %v3029 = vrot.slane %v3028, 2
        %v3030 = vadd.f32 %v3028, %v3029
        %v3031 = vrot.slane %v3030, 1
        %v3032 = vadd.f32 %v3030, %v3031
        %v3033 = vsel %vm2506, %v2860, 0.0
        %v3034 = vsel %vm2506, %v2862, 0.0
        %v3035 = vadd.f32 %v3033, %v3034
        %v3036 = vsel %vm2506, %v2864, 0.0
        %v3037 = vadd.f32 %v3035, %v3036
        %v3038 = vsel %vm2506, %v2866, 0.0
        %v3039 = vadd.f32 %v3037, %v3038
        %v3040 = vsel %vm2506, %v2868, 0.0
        %v3041 = vadd.f32 %v3039, %v3040
        %v3042 = vsel %vm2506, %v2870, 0.0
        %v3043 = vadd.f32 %v3041, %v3042
        %v3044 = vsel %vm2506, %v2872, 0.0
        %v3045 = vadd.f32 %v3043, %v3044
        %v3046 = vsel %vm2506, %v2874, 0.0
        %v3047 = vadd.f32 %v3045, %v3046
        %v3048 = vrot.slane %v3047, 4
        %v3049 = vadd.f32 %v3047, %v3048
        %v3050 = vrot.slane %v3049, 2
        %v3051 = vadd.f32 %v3049, %v3050
        %v3052 = vrot.slane %v3051, 1
        %v3053 = vadd.f32 %v3051, %v3052
        %v3054 = vsel %vm2506, %v2876, 0.0
        %v3055 = vsel %vm2506, %v2878, 0.0
        %v3056 = vadd.f32 %v3054, %v3055
        %v3057 = vsel %vm2506, %v2880, 0.0
        %v3058 = vadd.f32 %v3056, %v3057
        %v3059 = vsel %vm2506, %v2882, 0.0
        %v3060 = vadd.f32 %v3058, %v3059
        %v3061 = vsel %vm2506, %v2884, 0.0
        %v3062 = vadd.f32 %v3060, %v3061
        %v3063 = vsel %vm2506, %v2886, 0.0
        %v3064 = vadd.f32 %v3062, %v3063
        %v3065 = vsel %vm2506, %v2888, 0.0
        %v3066 = vadd.f32 %v3064, %v3065
        %v3067 = vsel %vm2506, %v2890, 0.0
        %v3068 = vadd.f32 %v3066, %v3067
        %v3069 = vrot.slane %v3068, 4
        %v3070 = vadd.f32 %v3068, %v3069
        %v3071 = vrot.slane %v3070, 2
        %v3072 = vadd.f32 %v3070, %v3071
        %v3073 = vrot.slane %v3072, 1
        %v3074 = vadd.f32 %v3072, %v3073
        %v3075 = vsel %vm2506, %v2892, 0.0
        %v3076 = vsel %vm2506, %v2894, 0.0
        %v3077 = vadd.f32 %v3075, %v3076
        %v3078 = vsel %vm2506, %v2896, 0.0
        %v3079 = vadd.f32 %v3077, %v3078
        %v3080 = vsel %vm2506, %v2898, 0.0
        %v3081 = vadd.f32 %v3079, %v3080
        %v3082 = vsel %vm2506, %v2900, 0.0
        %v3083 = vadd.f32 %v3081, %v3082
        %v3084 = vsel %vm2506, %v2902, 0.0
        %v3085 = vadd.f32 %v3083, %v3084
        %v3086 = vsel %vm2506, %v2904, 0.0
        %v3087 = vadd.f32 %v3085, %v3086
        %v3088 = vsel %vm2506, %v2906, 0.0
        %v3089 = vadd.f32 %v3087, %v3088
        %v3090 = vrot.slane %v3089, 4
        %v3091 = vadd.f32 %v3089, %v3090
        %v3092 = vrot.slane %v3091, 2
        %v3093 = vadd.f32 %v3091, %v3092
        %v3094 = vrot.slane %v3093, 1
        %v3095 = vadd.f32 %v3093, %v3094
        %v3096 = vsel %vm2506, %v2908, 0.0
        %v3097 = vsel %vm2506, %v2910, 0.0
        %v3098 = vadd.f32 %v3096, %v3097
        %v3099 = vsel %vm2506, %v2912, 0.0
        %v3100 = vadd.f32 %v3098, %v3099
        %v3101 = vsel %vm2506, %v2914, 0.0
        %v3102 = vadd.f32 %v3100, %v3101
        %v3103 = vsel %vm2506, %v2916, 0.0
        %v3104 = vadd.f32 %v3102, %v3103
        %v3105 = vsel %vm2506, %v2918, 0.0
        %v3106 = vadd.f32 %v3104, %v3105
        %v3107 = vsel %vm2506, %v2920, 0.0
        %v3108 = vadd.f32 %v3106, %v3107
        %v3109 = vsel %vm2506, %v2922, 0.0
        %v3110 = vadd.f32 %v3108, %v3109
        %v3111 = vrot.slane %v3110, 4
        %v3112 = vadd.f32 %v3110, %v3111
        %v3113 = vrot.slane %v3112, 2
        %v3114 = vadd.f32 %v3112, %v3113
        %v3115 = vrot.slane %v3114, 1
        %v3116 = vadd.f32 %v3114, %v3115
        %v3118 = vrot.slane %v2948, 1
        %v3119 = vrot.slane %v2948, 2
        %v3120 = vrot.slane %v2948, 3
        %v3121 = vrot.slane %v2948, 4
        %v3122 = vrot.slane %v2948, 5
        %v3123 = vrot.slane %v2948, 6
        %v3124 = vrot.slane %v2948, 7
        %v3133 = vadd.f32 %v2969, %v2948
        %v3134 = vadd.f32 %v2990, %v3118
        %v3135 = vadd.f32 %v3011, %v3119
        %v3136 = vadd.f32 %v3032, %v3120
        %v3137 = vadd.f32 %v3053, %v3121
        %v3138 = vadd.f32 %v3074, %v3122
        %v3139 = vadd.f32 %v3095, %v3123
        %v3140 = vadd.f32 %v3116, %v3124
        %v3141 = vrcp.pop %v3133
        %v3142 = vrcp.pop %v3134
        %v3143 = vrcp.pop %v3135
        %v3144 = vrcp.pop %v3136
        %v3145 = vrcp.pop %v3137
        %v3146 = vrcp.pop %v3138
        %v3147 = vrcp.pop %v3139
        %v3148 = vrcp.pop %v3140
        %v3149 = vlaneseq
        %v3150 = vshrl.u32 %v3149, 7
        %v3151 = vsub.s32 0, %v3150
        %v3152 = vrot.slane %v3141, %v3151
        %v3153 = vlaneseq
        %v3154 = vshrl.u32 %v3153, 7
        %v3155 = vsub.s32 0, %v3154
        %v3156 = vrot.slane %v3142, %v3155
        %v3157 = vlaneseq
        %v3158 = vshrl.u32 %v3157, 7
        %v3159 = vsub.s32 0, %v3158
        %v3160 = vrot.slane %v3143, %v3159
        %v3161 = vlaneseq
        %v3162 = vshrl.u32 %v3161, 7
        %v3163 = vsub.s32 0, %v3162
        %v3164 = vrot.slane %v3144, %v3163
        %v3165 = vlaneseq
        %v3166 = vshrl.u32 %v3165, 7
        %v3167 = vsub.s32 0, %v3166
        %v3168 = vrot.slane %v3145, %v3167
        %v3169 = vlaneseq
        %v3170 = vshrl.u32 %v3169, 7
        %v3171 = vsub.s32 0, %v3170
        %v3172 = vrot.slane %v3146, %v3171
        %v3173 = vlaneseq
        %v3174 = vshrl.u32 %v3173, 7
        %v3175 = vsub.s32 0, %v3174
        %v3176 = vrot.slane %v3147, %v3175
        %v3177 = vlaneseq
        %v3178 = vshrl.u32 %v3177, 7
        %v3179 = vsub.s32 0, %v3178
        %v3180 = vrot.slane %v3148, %v3179
        %v3181 = vmul.f32 %v2796, %v3152
        %v3182 = vmul.f32 %v2798, %v3152
        %v3183 = vmul.f32 %v2800, %v3152
        %v3184 = vmul.f32 %v2802, %v3152
        %v3185 = vmul.f32 %v2804, %v3152
        %v3186 = vmul.f32 %v2806, %v3152
        %v3187 = vmul.f32 %v2808, %v3152
        %v3188 = vmul.f32 %v2810, %v3152
        %v3189 = vmul.f32 %v2812, %v3156
        %v3190 = vmul.f32 %v2814, %v3156
        %v3191 = vmul.f32 %v2816, %v3156
        %v3192 = vmul.f32 %v2818, %v3156
        %v3193 = vmul.f32 %v2820, %v3156
        %v3194 = vmul.f32 %v2822, %v3156
        %v3195 = vmul.f32 %v2824, %v3156
        %v3196 = vmul.f32 %v2826, %v3156
        %v3197 = vmul.f32 %v2828, %v3160
        %v3198 = vmul.f32 %v2830, %v3160
        %v3199 = vmul.f32 %v2832, %v3160
        %v3200 = vmul.f32 %v2834, %v3160
        %v3201 = vmul.f32 %v2836, %v3160
        %v3202 = vmul.f32 %v2838, %v3160
        %v3203 = vmul.f32 %v2840, %v3160
        %v3204 = vmul.f32 %v2842, %v3160
        %v3205 = vmul.f32 %v2844, %v3164
        %v3206 = vmul.f32 %v2846, %v3164
        %v3207 = vmul.f32 %v2848, %v3164
        %v3208 = vmul.f32 %v2850, %v3164
        %v3209 = vmul.f32 %v2852, %v3164
        %v3210 = vmul.f32 %v2854, %v3164
        %v3211 = vmul.f32 %v2856, %v3164
        %v3212 = vmul.f32 %v2858, %v3164
        %v3213 = vmul.f32 %v2860, %v3168
        %v3214 = vmul.f32 %v2862, %v3168
        %v3215 = vmul.f32 %v2864, %v3168
        %v3216 = vmul.f32 %v2866, %v3168
        %v3217 = vmul.f32 %v2868, %v3168
        %v3218 = vmul.f32 %v2870, %v3168
        %v3219 = vmul.f32 %v2872, %v3168
        %v3220 = vmul.f32 %v2874, %v3168
        %v3221 = vmul.f32 %v2876, %v3172
        %v3222 = vmul.f32 %v2878, %v3172
        %v3223 = vmul.f32 %v2880, %v3172
        %v3224 = vmul.f32 %v2882, %v3172
        %v3225 = vmul.f32 %v2884, %v3172
        %v3226 = vmul.f32 %v2886, %v3172
        %v3227 = vmul.f32 %v2888, %v3172
        %v3228 = vmul.f32 %v2890, %v3172
        %v3229 = vmul.f32 %v2892, %v3176
        %v3230 = vmul.f32 %v2894, %v3176
        %v3231 = vmul.f32 %v2896, %v3176
        %v3232 = vmul.f32 %v2898, %v3176
        %v3233 = vmul.f32 %v2900, %v3176
        %v3234 = vmul.f32 %v2902, %v3176
        %v3235 = vmul.f32 %v2904, %v3176
        %v3236 = vmul.f32 %v2906, %v3176
        %v3237 = vmul.f32 %v2908, %v3180
        %v3238 = vmul.f32 %v2910, %v3180
        %v3239 = vmul.f32 %v2912, %v3180
        %v3240 = vmul.f32 %v2914, %v3180
        %v3241 = vmul.f32 %v2916, %v3180
        %v3242 = vmul.f32 %v2918, %v3180
        %v3243 = vmul.f32 %v2920, %v3180
        %v3244 = vmul.f32 %v2922, %v3180
        %v3253 = vrot.slane %v3142, 7
        %v3254 = vsel %vm798, %v3253, %v3141
        %v3255 = vrot.slane %v3143, 6
        %v3256 = vsel %vm801, %v3255, %v3254
        %v3257 = vrot.slane %v3144, 5
        %v3258 = vsel %vm804, %v3257, %v3256
        %v3259 = vrot.slane %v3145, 4
        %v3260 = vsel %vm807, %v3259, %v3258
        %v3261 = vrot.slane %v3146, 3
        %v3262 = vsel %vm810, %v3261, %v3260
        %v3263 = vrot.slane %v3147, 2
        %v3264 = vsel %vm813, %v3263, %v3262
        %v3265 = vrot.slane %v3148, 1
        %v3266 = vsel %vm816, %v3265, %v3264
        %v3268 = vmul.f32 %v2948, %v3266
        %v3270 = vsel %vm2506, %v3181, 0
        %v3273 = vsel %vm2506, %v3182, 0
        %v3276 = vsel %vm2506, %v3183, 0
        %v3279 = vsel %vm2506, %v3184, 0
        %v3282 = vsel %vm2506, %v3185, 0
        %v3285 = vsel %vm2506, %v3186, 0
        %v3288 = vsel %vm2506, %v3187, 0
        %v3291 = vsel %vm2506, %v3188, 0
        %v3294 = vsel %vm2506, %v3189, 0
        %v3297 = vsel %vm2506, %v3190, 0
        %v3300 = vsel %vm2506, %v3191, 0
        %v3303 = vsel %vm2506, %v3192, 0
        %v3306 = vsel %vm2506, %v3193, 0
        %v3309 = vsel %vm2506, %v3194, 0
        %v3312 = vsel %vm2506, %v3195, 0
        %v3315 = vsel %vm2506, %v3196, 0
        %v3318 = vsel %vm2506, %v3197, 0
        %v3321 = vsel %vm2506, %v3198, 0
        %v3324 = vsel %vm2506, %v3199, 0
        %v3327 = vsel %vm2506, %v3200, 0
        %v3330 = vsel %vm2506, %v3201, 0
        %v3333 = vsel %vm2506, %v3202, 0
        %v3336 = vsel %vm2506, %v3203, 0
        %v3339 = vsel %vm2506, %v3204, 0
        %v3342 = vsel %vm2506, %v3205, 0
        %v3345 = vsel %vm2506, %v3206, 0
        %v3348 = vsel %vm2506, %v3207, 0
        %v3351 = vsel %vm2506, %v3208, 0
        %v3354 = vsel %vm2506, %v3209, 0
        %v3357 = vsel %vm2506, %v3210, 0
        %v3360 = vsel %vm2506, %v3211, 0
        %v3363 = vsel %vm2506, %v3212, 0
        %v3366 = vsel %vm2506, %v3213, 0
        %v3369 = vsel %vm2506, %v3214, 0
        %v3372 = vsel %vm2506, %v3215, 0
        %v3375 = vsel %vm2506, %v3216, 0
        %v3378 = vsel %vm2506, %v3217, 0
        %v3381 = vsel %vm2506, %v3218, 0
        %v3384 = vsel %vm2506, %v3219, 0
        %v3387 = vsel %vm2506, %v3220, 0
        %v3390 = vsel %vm2506, %v3221, 0
        %v3393 = vsel %vm2506, %v3222, 0
        %v3396 = vsel %vm2506, %v3223, 0
        %v3399 = vsel %vm2506, %v3224, 0
        %v3402 = vsel %vm2506, %v3225, 0
        %v3405 = vsel %vm2506, %v3226, 0
        %v3408 = vsel %vm2506, %v3227, 0
        %v3411 = vsel %vm2506, %v3228, 0
        %v3414 = vsel %vm2506, %v3229, 0
        %v3417 = vsel %vm2506, %v3230, 0
        %v3420 = vsel %vm2506, %v3231, 0
        %v3423 = vsel %vm2506, %v3232, 0
        %v3426 = vsel %vm2506, %v3233, 0
        %v3429 = vsel %vm2506, %v3234, 0
        %v3432 = vsel %vm2506, %v3235, 0
        %v3435 = vsel %vm2506, %v3236, 0
        %v3438 = vsel %vm2506, %v3237, 0
        %v3441 = vsel %vm2506, %v3238, 0
        %v3444 = vsel %vm2506, %v3239, 0
        %v3447 = vsel %vm2506, %v3240, 0
        %v3450 = vsel %vm2506, %v3241, 0
        %v3453 = vsel %vm2506, %v3242, 0
        %v3456 = vsel %vm2506, %v3243, 0
        %v3459 = vsel %vm2506, %v3244, 0
        %vm3461 = vcmask 1043456
        %v3463 = vsel %vm3461, %v1700, 0
        %3465 = vmatprep.subr.mxu0 0.0
        %3466 = vmatpush1.msra.mxu0 %v3463
        %3467 = vmatprep.subr.mxu0 0.0
        %3468 = vmatpush1.msra.mxu0 0.0
        %3469 = vmatprep.subr.mxu0 0.0
        %3470 = vmatpush1.msra.mxu0 0.0
        %3471 = vmatprep.subr.mxu0 0.0
        %3472 = vmatpush1.msra.mxu0 0.0
        %3473 = vmatprep.subr.mxu0 0.0
        %3474 = vmatpush1.msra.mxu0 0.0
        %3475 = vmatprep.subr.mxu0 0.0
        %3476 = vmatpush1.msra.mxu0 0.0
        %3477 = vmatprep.subr.mxu0 0.0
        %3478 = vmatpush1.msra.mxu0 0.0
        %3479 = vmatprep.subr.mxu0 0.0
        %3480 = vmatpush1.msra.mxu0 0.0
        %3481 = vmatprep.subr.mxu0 0.0
        %3482 = vmatpush1.msra.mxu0 0.0
        %3483 = vmatprep.subr.mxu0 0.0
        %3484 = vmatpush1.msra.mxu0 0.0
        %3485 = vmatprep.subr.mxu0 0.0
        %3486 = vmatpush1.msra.mxu0 0.0
        %3487 = vmatprep.subr.mxu0 0.0
        %3488 = vmatpush1.msra.mxu0 0.0
        %3489 = vmatprep.subr.mxu0 0.0
        %3490 = vmatpush1.msra.mxu0 0.0
        %3491 = vmatprep.subr.mxu0 0.0
        %3492 = vmatpush1.msra.mxu0 0.0
        %3493 = vmatprep.subr.mxu0 0.0
        %3494 = vmatpush1.msra.mxu0 0.0
        %3495 = vmatprep.subr.mxu0 0.0
        %3496 = vmatpush1.msra.mxu0 0.0
        %3497 = vmatprep.subr.mxu0 0.0
        %3498 = vmatpush1.msra.mxu0 0.0
        %3499 = vmatprep.subr.mxu0 0.0
        %3500 = vmatpush1.msra.mxu0 0.0
        %3501 = vmatprep.subr.mxu0 0.0
        %3502 = vmatpush1.msra.mxu0 0.0
        %3503 = vmatprep.subr.mxu0 0.0
        %3504 = vmatpush1.msra.mxu0 0.0
        %3505 = vmatprep.subr.mxu0 0.0
        %3506 = vmatpush1.msra.mxu0 0.0
        %3507 = vmatprep.subr.mxu0 0.0
        %3508 = vmatpush1.msra.mxu0 0.0
        %3509 = vmatprep.subr.mxu0 0.0
        %3510 = vmatpush1.msra.mxu0 0.0
        %3511 = vmatprep.subr.mxu0 0.0
        %3512 = vmatpush1.msra.mxu0 0.0
        %3513 = vmatprep.subr.mxu0 0.0
        %3514 = vmatpush1.msra.mxu0 0.0
        %3515 = vmatprep.subr.mxu0 0.0
        %3516 = vmatpush1.msra.mxu0 0.0
        %3517 = vmatprep.subr.mxu0 0.0
        %3518 = vmatpush1.msra.mxu0 0.0
        %3519 = vmatprep.subr.mxu0 0.0
        %3520 = vmatpush1.msra.mxu0 0.0
        %3521 = vmatprep.subr.mxu0 0.0
        %3522 = vmatpush1.msra.mxu0 0.0
        %3523 = vmatprep.subr.mxu0 0.0
        %3524 = vmatpush1.msra.mxu0 0.0
        %3525 = vmatprep.subr.mxu0 0.0
        %3526 = vmatpush1.msra.mxu0 0.0
        %3527 = vmatprep.subr.mxu0 0.0
        %3528 = vmatpush1.msra.mxu0 0.0
        %3529 = vmatprep.mubr.f32.mxu0 0.0
        %3530 = vmatmul.mubr.f32.gmra.mrb[0].mxu0 %v3270
        %v3531 = vpop.f32.mrb[0].mxu0
        %v3532 = vadd.f32 0.0, %v3531
        %v3533 = vpop.f32.mrb[0].mxu0
        %3534 = vmatprep.mubr.f32.mxu0 0.0
        %3535 = vmatmul.mubr.f32.gmra.mrb[0].mxu0 %v3273
        %v3536 = vpop.f32.mrb[0].mxu0
        %v3537 = vadd.f32 0.0, %v3536
        %v3538 = vpop.f32.mrb[0].mxu0
        %3539 = vmatprep.mubr.f32.mxu0 0.0
        %3540 = vmatmul.mubr.f32.gmra.mrb[0].mxu0 %v3276
        %v3541 = vpop.f32.mrb[0].mxu0
        %v3542 = vadd.f32 0.0, %v3541
        %v3543 = vpop.f32.mrb[0].mxu0
        %3544 = vmatprep.mubr.f32.mxu0 0.0
        %3545 = vmatmul.mubr.f32.gmra.mrb[0].mxu0 %v3279
        %v3546 = vpop.f32.mrb[0].mxu0
        %v3547 = vadd.f32 0.0, %v3546
        %v3548 = vpop.f32.mrb[0].mxu0
        %3549 = vmatprep.mubr.f32.mxu0 0.0
        %3550 = vmatmul.mubr.f32.gmra.mrb[0].mxu0 %v3282
        %v3551 = vpop.f32.mrb[0].mxu0
        %v3552 = vadd.f32 0.0, %v3551
        %v3553 = vpop.f32.mrb[0].mxu0
        %3554 = vmatprep.mubr.f32.mxu0 0.0
        %3555 = vmatmul.mubr.f32.gmra.mrb[0].mxu0 %v3285
        %v3556 = vpop.f32.mrb[0].mxu0
        %v3557 = vadd.f32 0.0, %v3556
        %v3558 = vpop.f32.mrb[0].mxu0
        %3559 = vmatprep.mubr.f32.mxu0 0.0
        %3560 = vmatmul.mubr.f32.gmra.mrb[0].mxu0 %v3288
        %v3561 = vpop.f32.mrb[0].mxu0
        %v3562 = vadd.f32 0.0, %v3561
        %v3563 = vpop.f32.mrb[0].mxu0
        %3564 = vmatprep.mubr.f32.mxu0 0.0
        %3565 = vmatmul.mubr.f32.gmra.mrb[0].mxu0 %v3291
        %v3566 = vpop.f32.mrb[0].mxu0
        %v3567 = vadd.f32 0.0, %v3566
        %v3568 = vpop.f32.mrb[0].mxu0
        %3569 = vmatprep.mubr.f32.mxu0 0.0
        %3570 = vmatmul.mubr.f32.gmra.mrb[0].mxu0 %v3294
        %v3571 = vpop.f32.mrb[0].mxu0
        %v3572 = vadd.f32 0.0, %v3571
        %v3573 = vpop.f32.mrb[0].mxu0
        %3574 = vmatprep.mubr.f32.mxu0 0.0
        %3575 = vmatmul.mubr.f32.gmra.mrb[0].mxu0 %v3297
        %v3576 = vpop.f32.mrb[0].mxu0
        %v3577 = vadd.f32 0.0, %v3576
        %v3578 = vpop.f32.mrb[0].mxu0
        %3579 = vmatprep.mubr.f32.mxu0 0.0
        %3580 = vmatmul.mubr.f32.gmra.mrb[0].mxu0 %v3300
        %v3581 = vpop.f32.mrb[0].mxu0
        %v3582 = vadd.f32 0.0, %v3581
        %v3583 = vpop.f32.mrb[0].mxu0
        %3584 = vmatprep.mubr.f32.mxu0 0.0
        %3585 = vmatmul.mubr.f32.gmra.mrb[0].mxu0 %v3303
        %v3586 = vpop.f32.mrb[0].mxu0
        %v3587 = vadd.f32 0.0, %v3586
        %v3588 = vpop.f32.mrb[0].mxu0
        %3589 = vmatprep.mubr.f32.mxu0 0.0
        %3590 = vmatmul.mubr.f32.gmra.mrb[0].mxu0 %v3306
        %v3591 = vpop.f32.mrb[0].mxu0
        %v3592 = vadd.f32 0.0, %v3591
        %v3593 = vpop.f32.mrb[0].mxu0
        %3594 = vmatprep.mubr.f32.mxu0 0.0
        %3595 = vmatmul.mubr.f32.gmra.mrb[0].mxu0 %v3309
        %v3596 = vpop.f32.mrb[0].mxu0
        %v3597 = vadd.f32 0.0, %v3596
        %v3598 = vpop.f32.mrb[0].mxu0
        %3599 = vmatprep.mubr.f32.mxu0 0.0
        %3600 = vmatmul.mubr.f32.gmra.mrb[0].mxu0 %v3312
        %v3601 = vpop.f32.mrb[0].mxu0
        %v3602 = vadd.f32 0.0, %v3601
        %v3603 = vpop.f32.mrb[0].mxu0
        %3604 = vmatprep.mubr.f32.mxu0 0.0
        %3605 = vmatmul.mubr.f32.gmra.mrb[0].mxu0 %v3315
        %v3606 = vpop.f32.mrb[0].mxu0
        %v3607 = vadd.f32 0.0, %v3606
        %v3608 = vpop.f32.mrb[0].mxu0
        %3609 = vmatprep.mubr.f32.mxu0 0.0
        %3610 = vmatmul.mubr.f32.gmra.mrb[0].mxu0 %v3318
        %v3611 = vpop.f32.mrb[0].mxu0
        %v3612 = vadd.f32 0.0, %v3611
        %v3613 = vpop.f32.mrb[0].mxu0
        %3614 = vmatprep.mubr.f32.mxu0 0.0
        %3615 = vmatmul.mubr.f32.gmra.mrb[0].mxu0 %v3321
        %v3616 = vpop.f32.mrb[0].mxu0
        %v3617 = vadd.f32 0.0, %v3616
        %v3618 = vpop.f32.mrb[0].mxu0
        %3619 = vmatprep.mubr.f32.mxu0 0.0
        %3620 = vmatmul.mubr.f32.gmra.mrb[0].mxu0 %v3324
        %v3621 = vpop.f32.mrb[0].mxu0
        %v3622 = vadd.f32 0.0, %v3621
        %v3623 = vpop.f32.mrb[0].mxu0
        %3624 = vmatprep.mubr.f32.mxu0 0.0
        %3625 = vmatmul.mubr.f32.gmra.mrb[0].mxu0 %v3327
        %v3626 = vpop.f32.mrb[0].mxu0
        %v3627 = vadd.f32 0.0, %v3626
        %v3628 = vpop.f32.mrb[0].mxu0
        %3629 = vmatprep.mubr.f32.mxu0 0.0
        %3630 = vmatmul.mubr.f32.gmra.mrb[0].mxu0 %v3330
        %v3631 = vpop.f32.mrb[0].mxu0
        %v3632 = vadd.f32 0.0, %v3631
        %v3633 = vpop.f32.mrb[0].mxu0
        %3634 = vmatprep.mubr.f32.mxu0 0.0
        %3635 = vmatmul.mubr.f32.gmra.mrb[0].mxu0 %v3333
        %v3636 = vpop.f32.mrb[0].mxu0
        %v3637 = vadd.f32 0.0, %v3636
        %v3638 = vpop.f32.mrb[0].mxu0
        %3639 = vmatprep.mubr.f32.mxu0 0.0
        %3640 = vmatmul.mubr.f32.gmra.mrb[0].mxu0 %v3336
        %v3641 = vpop.f32.mrb[0].mxu0
        %v3642 = vadd.f32 0.0, %v3641
        %v3643 = vpop.f32.mrb[0].mxu0
        %3644 = vmatprep.mubr.f32.mxu0 0.0
        %3645 = vmatmul.mubr.f32.gmra.mrb[0].mxu0 %v3339
        %v3646 = vpop.f32.mrb[0].mxu0
        %v3647 = vadd.f32 0.0, %v3646
        %v3648 = vpop.f32.mrb[0].mxu0
        %3649 = vmatprep.mubr.f32.mxu0 0.0
        %3650 = vmatmul.mubr.f32.gmra.mrb[0].mxu0 %v3342
        %v3651 = vpop.f32.mrb[0].mxu0
        %v3652 = vadd.f32 0.0, %v3651
        %v3653 = vpop.f32.mrb[0].mxu0
        %3654 = vmatprep.mubr.f32.mxu0 0.0
        %3655 = vmatmul.mubr.f32.gmra.mrb[0].mxu0 %v3345
        %v3656 = vpop.f32.mrb[0].mxu0
        %v3657 = vadd.f32 0.0, %v3656
        %v3658 = vpop.f32.mrb[0].mxu0
        %3659 = vmatprep.mubr.f32.mxu0 0.0
        %3660 = vmatmul.mubr.f32.gmra.mrb[0].mxu0 %v3348
        %v3661 = vpop.f32.mrb[0].mxu0
        %v3662 = vadd.f32 0.0, %v3661
        %v3663 = vpop.f32.mrb[0].mxu0
        %3664 = vmatprep.mubr.f32.mxu0 0.0
        %3665 = vmatmul.mubr.f32.gmra.mrb[0].mxu0 %v3351
        %v3666 = vpop.f32.mrb[0].mxu0
        %v3667 = vadd.f32 0.0, %v3666
        %v3668 = vpop.f32.mrb[0].mxu0
        %3669 = vmatprep.mubr.f32.mxu0 0.0
        %3670 = vmatmul.mubr.f32.gmra.mrb[0].mxu0 %v3354
        %v3671 = vpop.f32.mrb[0].mxu0
        %v3672 = vadd.f32 0.0, %v3671
        %v3673 = vpop.f32.mrb[0].mxu0
        %3674 = vmatprep.mubr.f32.mxu0 0.0
        %3675 = vmatmul.mubr.f32.gmra.mrb[0].mxu0 %v3357
        %v3676 = vpop.f32.mrb[0].mxu0
        %v3677 = vadd.f32 0.0, %v3676
        %v3678 = vpop.f32.mrb[0].mxu0
        %3679 = vmatprep.mubr.f32.mxu0 0.0
        %3680 = vmatmul.mubr.f32.gmra.mrb[0].mxu0 %v3360
        %v3681 = vpop.f32.mrb[0].mxu0
        %v3682 = vadd.f32 0.0, %v3681
        %v3683 = vpop.f32.mrb[0].mxu0
        %3684 = vmatprep.mubr.f32.mxu0 0.0
        %3685 = vmatmul.mubr.f32.gmra.mrb[0].mxu0 %v3363
        %v3686 = vpop.f32.mrb[0].mxu0
        %v3687 = vadd.f32 0.0, %v3686
        %v3688 = vpop.f32.mrb[0].mxu0
        %3689 = vmatprep.mubr.f32.mxu0 0.0
        %3690 = vmatmul.mubr.f32.gmra.mrb[0].mxu0 %v3366
        %v3691 = vpop.f32.mrb[0].mxu0
        %v3692 = vadd.f32 0.0, %v3691
        %v3693 = vpop.f32.mrb[0].mxu0
        %3694 = vmatprep.mubr.f32.mxu0 0.0
        %3695 = vmatmul.mubr.f32.gmra.mrb[0].mxu0 %v3369
        %v3696 = vpop.f32.mrb[0].mxu0
        %v3697 = vadd.f32 0.0, %v3696
        %v3698 = vpop.f32.mrb[0].mxu0
        %3699 = vmatprep.mubr.f32.mxu0 0.0
        %3700 = vmatmul.mubr.f32.gmra.mrb[0].mxu0 %v3372
        %v3701 = vpop.f32.mrb[0].mxu0
        %v3702 = vadd.f32 0.0, %v3701
        %v3703 = vpop.f32.mrb[0].mxu0
        %3704 = vmatprep.mubr.f32.mxu0 0.0
        %3705 = vmatmul.mubr.f32.gmra.mrb[0].mxu0 %v3375
        %v3706 = vpop.f32.mrb[0].mxu0
        %v3707 = vadd.f32 0.0, %v3706
        %v3708 = vpop.f32.mrb[0].mxu0
        %3709 = vmatprep.mubr.f32.mxu0 0.0
        %3710 = vmatmul.mubr.f32.gmra.mrb[0].mxu0 %v3378
        %v3711 = vpop.f32.mrb[0].mxu0
        %v3712 = vadd.f32 0.0, %v3711
        %v3713 = vpop.f32.mrb[0].mxu0
        %3714 = vmatprep.mubr.f32.mxu0 0.0
        %3715 = vmatmul.mubr.f32.gmra.mrb[0].mxu0 %v3381
        %v3716 = vpop.f32.mrb[0].mxu0
        %v3717 = vadd.f32 0.0, %v3716
        %v3718 = vpop.f32.mrb[0].mxu0
        %3719 = vmatprep.mubr.f32.mxu0 0.0
        %3720 = vmatmul.mubr.f32.gmra.mrb[0].mxu0 %v3384
        %v3721 = vpop.f32.mrb[0].mxu0
        %v3722 = vadd.f32 0.0, %v3721
        %v3723 = vpop.f32.mrb[0].mxu0
        %3724 = vmatprep.mubr.f32.mxu0 0.0
        %3725 = vmatmul.mubr.f32.gmra.mrb[0].mxu0 %v3387
        %v3726 = vpop.f32.mrb[0].mxu0
        %v3727 = vadd.f32 0.0, %v3726
        %v3728 = vpop.f32.mrb[0].mxu0
        %3729 = vmatprep.mubr.f32.mxu0 0.0
        %3730 = vmatmul.mubr.f32.gmra.mrb[0].mxu0 %v3390
        %v3731 = vpop.f32.mrb[0].mxu0
        %v3732 = vadd.f32 0.0, %v3731
        %v3733 = vpop.f32.mrb[0].mxu0
        %3734 = vmatprep.mubr.f32.mxu0 0.0
        %3735 = vmatmul.mubr.f32.gmra.mrb[0].mxu0 %v3393
        %v3736 = vpop.f32.mrb[0].mxu0
        %v3737 = vadd.f32 0.0, %v3736
        %v3738 = vpop.f32.mrb[0].mxu0
        %3739 = vmatprep.mubr.f32.mxu0 0.0
        %3740 = vmatmul.mubr.f32.gmra.mrb[0].mxu0 %v3396
        %v3741 = vpop.f32.mrb[0].mxu0
        %v3742 = vadd.f32 0.0, %v3741
        %v3743 = vpop.f32.mrb[0].mxu0
        %3744 = vmatprep.mubr.f32.mxu0 0.0
        %3745 = vmatmul.mubr.f32.gmra.mrb[0].mxu0 %v3399
        %v3746 = vpop.f32.mrb[0].mxu0
        %v3747 = vadd.f32 0.0, %v3746
        %v3748 = vpop.f32.mrb[0].mxu0
        %3749 = vmatprep.mubr.f32.mxu0 0.0
        %3750 = vmatmul.mubr.f32.gmra.mrb[0].mxu0 %v3402
        %v3751 = vpop.f32.mrb[0].mxu0
        %v3752 = vadd.f32 0.0, %v3751
        %v3753 = vpop.f32.mrb[0].mxu0
        %3754 = vmatprep.mubr.f32.mxu0 0.0
        %3755 = vmatmul.mubr.f32.gmra.mrb[0].mxu0 %v3405
        %v3756 = vpop.f32.mrb[0].mxu0
        %v3757 = vadd.f32 0.0, %v3756
        %v3758 = vpop.f32.mrb[0].mxu0
        %3759 = vmatprep.mubr.f32.mxu0 0.0
        %3760 = vmatmul.mubr.f32.gmra.mrb[0].mxu0 %v3408
        %v3761 = vpop.f32.mrb[0].mxu0
        %v3762 = vadd.f32 0.0, %v3761
        %v3763 = vpop.f32.mrb[0].mxu0
        %3764 = vmatprep.mubr.f32.mxu0 0.0
        %3765 = vmatmul.mubr.f32.gmra.mrb[0].mxu0 %v3411
        %v3766 = vpop.f32.mrb[0].mxu0
        %v3767 = vadd.f32 0.0, %v3766
        %v3768 = vpop.f32.mrb[0].mxu0
        %3769 = vmatprep.mubr.f32.mxu0 0.0
        %3770 = vmatmul.mubr.f32.gmra.mrb[0].mxu0 %v3414
        %v3771 = vpop.f32.mrb[0].mxu0
        %v3772 = vadd.f32 0.0, %v3771
        %v3773 = vpop.f32.mrb[0].mxu0
        %3774 = vmatprep.mubr.f32.mxu0 0.0
        %3775 = vmatmul.mubr.f32.gmra.mrb[0].mxu0 %v3417
        %v3776 = vpop.f32.mrb[0].mxu0
        %v3777 = vadd.f32 0.0, %v3776
        %v3778 = vpop.f32.mrb[0].mxu0
        %3779 = vmatprep.mubr.f32.mxu0 0.0
        %3780 = vmatmul.mubr.f32.gmra.mrb[0].mxu0 %v3420
        %v3781 = vpop.f32.mrb[0].mxu0
        %v3782 = vadd.f32 0.0, %v3781
        %v3783 = vpop.f32.mrb[0].mxu0
        %3784 = vmatprep.mubr.f32.mxu0 0.0
        %3785 = vmatmul.mubr.f32.gmra.mrb[0].mxu0 %v3423
        %v3786 = vpop.f32.mrb[0].mxu0
        %v3787 = vadd.f32 0.0, %v3786
        %v3788 = vpop.f32.mrb[0].mxu0
        %3789 = vmatprep.mubr.f32.mxu0 0.0
        %3790 = vmatmul.mubr.f32.gmra.mrb[0].mxu0 %v3426
        %v3791 = vpop.f32.mrb[0].mxu0
        %v3792 = vadd.f32 0.0, %v3791
        %v3793 = vpop.f32.mrb[0].mxu0
        %3794 = vmatprep.mubr.f32.mxu0 0.0
        %3795 = vmatmul.mubr.f32.gmra.mrb[0].mxu0 %v3429
        %v3796 = vpop.f32.mrb[0].mxu0
        %v3797 = vadd.f32 0.0, %v3796
        %v3798 = vpop.f32.mrb[0].mxu0
        %3799 = vmatprep.mubr.f32.mxu0 0.0
        %3800 = vmatmul.mubr.f32.gmra.mrb[0].mxu0 %v3432
        %v3801 = vpop.f32.mrb[0].mxu0
        %v3802 = vadd.f32 0.0, %v3801
        %v3803 = vpop.f32.mrb[0].mxu0
        %3804 = vmatprep.mubr.f32.mxu0 0.0
        %3805 = vmatmul.mubr.f32.gmra.mrb[0].mxu0 %v3435
        %v3806 = vpop.f32.mrb[0].mxu0
        %v3807 = vadd.f32 0.0, %v3806
        %v3808 = vpop.f32.mrb[0].mxu0
        %3809 = vmatprep.mubr.f32.mxu0 0.0
        %3810 = vmatmul.mubr.f32.gmra.mrb[0].mxu0 %v3438
        %v3811 = vpop.f32.mrb[0].mxu0
        %v3812 = vadd.f32 0.0, %v3811
        %v3813 = vpop.f32.mrb[0].mxu0
        %3814 = vmatprep.mubr.f32.mxu0 0.0
        %3815 = vmatmul.mubr.f32.gmra.mrb[0].mxu0 %v3441
        %v3816 = vpop.f32.mrb[0].mxu0
        %v3817 = vadd.f32 0.0, %v3816
        %v3818 = vpop.f32.mrb[0].mxu0
        %3819 = vmatprep.mubr.f32.mxu0 0.0
        %3820 = vmatmul.mubr.f32.gmra.mrb[0].mxu0 %v3444
        %v3821 = vpop.f32.mrb[0].mxu0
        %v3822 = vadd.f32 0.0, %v3821
        %v3823 = vpop.f32.mrb[0].mxu0
        %3824 = vmatprep.mubr.f32.mxu0 0.0
        %3825 = vmatmul.mubr.f32.gmra.mrb[0].mxu0 %v3447
        %v3826 = vpop.f32.mrb[0].mxu0
        %v3827 = vadd.f32 0.0, %v3826
        %v3828 = vpop.f32.mrb[0].mxu0
        %3829 = vmatprep.mubr.f32.mxu0 0.0
        %3830 = vmatmul.mubr.f32.gmra.mrb[0].mxu0 %v3450
        %v3831 = vpop.f32.mrb[0].mxu0
        %v3832 = vadd.f32 0.0, %v3831
        %v3833 = vpop.f32.mrb[0].mxu0
        %3834 = vmatprep.mubr.f32.mxu0 0.0
        %3835 = vmatmul.mubr.f32.gmra.mrb[0].mxu0 %v3453
        %v3836 = vpop.f32.mrb[0].mxu0
        %v3837 = vadd.f32 0.0, %v3836
        %v3838 = vpop.f32.mrb[0].mxu0
        %3839 = vmatprep.mubr.f32.mxu0 0.0
        %3840 = vmatmul.mubr.f32.gmra.mrb[0].mxu0 %v3456
        %v3841 = vpop.f32.mrb[0].mxu0
        %v3842 = vadd.f32 0.0, %v3841
        %v3843 = vpop.f32.mrb[0].mxu0
        %3844 = vmatprep.mubr.f32.mxu0 0.0
        %3845 = vmatmul.mubr.f32.gmra.mrb[0].mxu0 %v3459
        %v3846 = vpop.f32.mrb[0].mxu0
        %v3847 = vadd.f32 0.0, %v3846
        %v3848 = vpop.f32.mrb[0].mxu0
        %3849 = vdwg.mxu0
        %v3851 = vsel %vm2506, %v3268, 0
        %3853 = vmatprep.subr.mxu0 0.0
        %3854 = vmatpush1.msra.mxu0 %v3463
        %3855 = vmatprep.subr.mxu0 0.0
        %3856 = vmatpush1.msra.mxu0 0.0
        %3857 = vmatprep.subr.mxu0 0.0
        %3858 = vmatpush1.msra.mxu0 0.0
        %3859 = vmatprep.subr.mxu0 0.0
        %3860 = vmatpush1.msra.mxu0 0.0
        %3861 = vmatprep.subr.mxu0 0.0
        %3862 = vmatpush1.msra.mxu0 0.0
        %3863 = vmatprep.subr.mxu0 0.0
        %3864 = vmatpush1.msra.mxu0 0.0
        %3865 = vmatprep.subr.mxu0 0.0
        %3866 = vmatpush1.msra.mxu0 0.0
        %3867 = vmatprep.subr.mxu0 0.0
        %3868 = vmatpush1.msra.mxu0 0.0
        %3869 = vmatprep.subr.mxu0 0.0
        %3870 = vmatpush1.msra.mxu0 0.0
        %3871 = vmatprep.subr.mxu0 0.0
        %3872 = vmatpush1.msra.mxu0 0.0
        %3873 = vmatprep.subr.mxu0 0.0
        %3874 = vmatpush1.msra.mxu0 0.0
        %3875 = vmatprep.subr.mxu0 0.0
        %3876 = vmatpush1.msra.mxu0 0.0
        %3877 = vmatprep.subr.mxu0 0.0
        %3878 = vmatpush1.msra.mxu0 0.0
        %3879 = vmatprep.subr.mxu0 0.0
        %3880 = vmatpush1.msra.mxu0 0.0
        %3881 = vmatprep.subr.mxu0 0.0
        %3882 = vmatpush1.msra.mxu0 0.0
        %3883 = vmatprep.subr.mxu0 0.0
        %3884 = vmatpush1.msra.mxu0 0.0
        %3885 = vmatprep.subr.mxu0 0.0
        %3886 = vmatpush1.msra.mxu0 0.0
        %3887 = vmatprep.subr.mxu0 0.0
        %3888 = vmatpush1.msra.mxu0 0.0
        %3889 = vmatprep.subr.mxu0 0.0
        %3890 = vmatpush1.msra.mxu0 0.0
        %3891 = vmatprep.subr.mxu0 0.0
        %3892 = vmatpush1.msra.mxu0 0.0
        %3893 = vmatprep.subr.mxu0 0.0
        %3894 = vmatpush1.msra.mxu0 0.0
        %3895 = vmatprep.subr.mxu0 0.0
        %3896 = vmatpush1.msra.mxu0 0.0
        %3897 = vmatprep.subr.mxu0 0.0
        %3898 = vmatpush1.msra.mxu0 0.0
        %3899 = vmatprep.subr.mxu0 0.0
        %3900 = vmatpush1.msra.mxu0 0.0
        %3901 = vmatprep.subr.mxu0 0.0
        %3902 = vmatpush1.msra.mxu0 0.0
        %3903 = vmatprep.subr.mxu0 0.0
        %3904 = vmatpush1.msra.mxu0 0.0
        %3905 = vmatprep.subr.mxu0 0.0
        %3906 = vmatpush1.msra.mxu0 0.0
        %3907 = vmatprep.subr.mxu0 0.0
        %3908 = vmatpush1.msra.mxu0 0.0
        %3909 = vmatprep.subr.mxu0 0.0
        %3910 = vmatpush1.msra.mxu0 0.0
        %3911 = vmatprep.subr.mxu0 0.0
        %3912 = vmatpush1.msra.mxu0 0.0
        %3913 = vmatprep.subr.mxu0 0.0
        %3914 = vmatpush1.msra.mxu0 0.0
        %3915 = vmatprep.subr.mxu0 0.0
        %3916 = vmatpush1.msra.mxu0 0.0
        %3917 = vmatprep.mubr.f32.mxu0 0.0
        %3918 = vmatmul.mubr.f32.gmra.mrb[0].mxu0 %v3851
        %v3919 = vpop.f32.mrb[0].mxu0
        %v3920 = vadd.f32 0.0, %v3919
        %v3921 = vpop.f32.mrb[0].mxu0
        %3922 = vdwg.mxu0
        %v3923 = vmul.f32 %v3532, %v1410
        %v3924 = vmul.f32 %v3537, %v1413
        %v3925 = vmul.f32 %v3542, %v1418
        %v3926 = vmul.f32 %v3547, %v1421
        %v3927 = vmul.f32 %v3552, %v1426
        %v3928 = vmul.f32 %v3557, %v1429
        %v3929 = vmul.f32 %v3562, %v1434
        %v3930 = vmul.f32 %v3567, %v1437
        %v3931 = vmul.f32 %v3572, %v1442
        %v3932 = vmul.f32 %v3577, %v1445
        %v3933 = vmul.f32 %v3582, %v1450
        %v3934 = vmul.f32 %v3587, %v1453
        %v3935 = vmul.f32 %v3592, %v1458
        %v3936 = vmul.f32 %v3597, %v1461
        %v3937 = vmul.f32 %v3602, %v1466
        %v3938 = vmul.f32 %v3607, %v1469
        %v3939 = vmul.f32 %v3612, %v1474
        %v3940 = vmul.f32 %v3617, %v1477
        %v3941 = vmul.f32 %v3622, %v1482
        %v3942 = vmul.f32 %v3627, %v1485
        %v3943 = vmul.f32 %v3632, %v1490
        %v3944 = vmul.f32 %v3637, %v1493
        %v3945 = vmul.f32 %v3642, %v1498
        %v3946 = vmul.f32 %v3647, %v1501
        %v3947 = vmul.f32 %v3652, %v1506
        %v3948 = vmul.f32 %v3657, %v1509
        %v3949 = vmul.f32 %v3662, %v1514
        %v3950 = vmul.f32 %v3667, %v1517
        %v3951 = vmul.f32 %v3672, %v1522
        %v3952 = vmul.f32 %v3677, %v1525
        %v3953 = vmul.f32 %v3682, %v1530
        %v3954 = vmul.f32 %v3687, %v1533
        %v3955 = vmul.f32 %v3692, %v1538
        %v3956 = vmul.f32 %v3697, %v1541
        %v3957 = vmul.f32 %v3702, %v1546
        %v3958 = vmul.f32 %v3707, %v1549
        %v3959 = vmul.f32 %v3712, %v1554
        %v3960 = vmul.f32 %v3717, %v1557
        %v3961 = vmul.f32 %v3722, %v1562
        %v3962 = vmul.f32 %v3727, %v1565
        %v3963 = vmul.f32 %v3732, %v1570
        %v3964 = vmul.f32 %v3737, %v1573
        %v3965 = vmul.f32 %v3742, %v1578
        %v3966 = vmul.f32 %v3747, %v1581
        %v3967 = vmul.f32 %v3752, %v1586
        %v3968 = vmul.f32 %v3757, %v1589
        %v3969 = vmul.f32 %v3762, %v1594
        %v3970 = vmul.f32 %v3767, %v1597
        %v3971 = vmul.f32 %v3772, %v1602
        %v3972 = vmul.f32 %v3777, %v1605
        %v3973 = vmul.f32 %v3782, %v1610
        %v3974 = vmul.f32 %v3787, %v1613
        %v3975 = vmul.f32 %v3792, %v1618
        %v3976 = vmul.f32 %v3797, %v1621
        %v3977 = vmul.f32 %v3802, %v1626
        %v3978 = vmul.f32 %v3807, %v1629
        %v3979 = vmul.f32 %v3812, %v1634
        %v3980 = vmul.f32 %v3817, %v1637
        %v3981 = vmul.f32 %v3822, %v1642
        %v3982 = vmul.f32 %v3827, %v1645
        %v3983 = vmul.f32 %v3832, %v1650
        %v3984 = vmul.f32 %v3837, %v1653
        %v3985 = vmul.f32 %v3842, %v1658
        %v3986 = vmul.f32 %v3847, %v1661
        %v3987 = vsel %vm464, %v3923, 0.0
        %v3988 = vsel %vm464, %v3924, 0.0
        %v3989 = vadd.f32 %v3987, %v3988
        %v3990 = vsel %vm464, %v3925, 0.0
        %v3991 = vadd.f32 %v3989, %v3990
        %v3992 = vsel %vm464, %v3926, 0.0
        %v3993 = vadd.f32 %v3991, %v3992
        %v3994 = vsel %vm464, %v3927, 0.0
        %v3995 = vadd.f32 %v3993, %v3994
        %v3996 = vsel %vm464, %v3928, 0.0
        %v3997 = vadd.f32 %v3995, %v3996
        %v3998 = vsel %vm464, %v3929, 0.0
        %v3999 = vadd.f32 %v3997, %v3998
        %v4000 = vsel %vm464, %v3930, 0.0
        %v4001 = vadd.f32 %v3999, %v4000
        %v4002 = vrot.slane %v4001, 4
        %v4003 = vadd.f32 %v4001, %v4002
        %v4004 = vrot.slane %v4003, 2
        %v4005 = vadd.f32 %v4003, %v4004
        %v4006 = vrot.slane %v4005, 1
        %v4007 = vadd.f32 %v4005, %v4006
        %v4008 = vsel %vm464, %v3931, 0.0
        %v4009 = vsel %vm464, %v3932, 0.0
        %v4010 = vadd.f32 %v4008, %v4009
        %v4011 = vsel %vm464, %v3933, 0.0
        %v4012 = vadd.f32 %v4010, %v4011
        %v4013 = vsel %vm464, %v3934, 0.0
        %v4014 = vadd.f32 %v4012, %v4013
        %v4015 = vsel %vm464, %v3935, 0.0
        %v4016 = vadd.f32 %v4014, %v4015
        %v4017 = vsel %vm464, %v3936, 0.0
        %v4018 = vadd.f32 %v4016, %v4017
        %v4019 = vsel %vm464, %v3937, 0.0
        %v4020 = vadd.f32 %v4018, %v4019
        %v4021 = vsel %vm464, %v3938, 0.0
        %v4022 = vadd.f32 %v4020, %v4021
        %v4023 = vrot.slane %v4022, 4
        %v4024 = vadd.f32 %v4022, %v4023
        %v4025 = vrot.slane %v4024, 2
        %v4026 = vadd.f32 %v4024, %v4025
        %v4027 = vrot.slane %v4026, 1
        %v4028 = vadd.f32 %v4026, %v4027
        %v4029 = vsel %vm464, %v3939, 0.0
        %v4030 = vsel %vm464, %v3940, 0.0
        %v4031 = vadd.f32 %v4029, %v4030
        %v4032 = vsel %vm464, %v3941, 0.0
        %v4033 = vadd.f32 %v4031, %v4032
        %v4034 = vsel %vm464, %v3942, 0.0
        %v4035 = vadd.f32 %v4033, %v4034
        %v4036 = vsel %vm464, %v3943, 0.0
        %v4037 = vadd.f32 %v4035, %v4036
        %v4038 = vsel %vm464, %v3944, 0.0
        %v4039 = vadd.f32 %v4037, %v4038
        %v4040 = vsel %vm464, %v3945, 0.0
        %v4041 = vadd.f32 %v4039, %v4040
        %v4042 = vsel %vm464, %v3946, 0.0
        %v4043 = vadd.f32 %v4041, %v4042
        %v4044 = vrot.slane %v4043, 4
        %v4045 = vadd.f32 %v4043, %v4044
        %v4046 = vrot.slane %v4045, 2
        %v4047 = vadd.f32 %v4045, %v4046
        %v4048 = vrot.slane %v4047, 1
        %v4049 = vadd.f32 %v4047, %v4048
        %v4050 = vsel %vm464, %v3947, 0.0
        %v4051 = vsel %vm464, %v3948, 0.0
        %v4052 = vadd.f32 %v4050, %v4051
        %v4053 = vsel %vm464, %v3949, 0.0
        %v4054 = vadd.f32 %v4052, %v4053
        %v4055 = vsel %vm464, %v3950, 0.0
        %v4056 = vadd.f32 %v4054, %v4055
        %v4057 = vsel %vm464, %v3951, 0.0
        %v4058 = vadd.f32 %v4056, %v4057
        %v4059 = vsel %vm464, %v3952, 0.0
        %v4060 = vadd.f32 %v4058, %v4059
        %v4061 = vsel %vm464, %v3953, 0.0
        %v4062 = vadd.f32 %v4060, %v4061
        %v4063 = vsel %vm464, %v3954, 0.0
        %v4064 = vadd.f32 %v4062, %v4063
        %v4065 = vrot.slane %v4064, 4
        %v4066 = vadd.f32 %v4064, %v4065
        %v4067 = vrot.slane %v4066, 2
        %v4068 = vadd.f32 %v4066, %v4067
        %v4069 = vrot.slane %v4068, 1
        %v4070 = vadd.f32 %v4068, %v4069
        %v4071 = vsel %vm464, %v3955, 0.0
        %v4072 = vsel %vm464, %v3956, 0.0
        %v4073 = vadd.f32 %v4071, %v4072
        %v4074 = vsel %vm464, %v3957, 0.0
        %v4075 = vadd.f32 %v4073, %v4074
        %v4076 = vsel %vm464, %v3958, 0.0
        %v4077 = vadd.f32 %v4075, %v4076
        %v4078 = vsel %vm464, %v3959, 0.0
        %v4079 = vadd.f32 %v4077, %v4078
        %v4080 = vsel %vm464, %v3960, 0.0
        %v4081 = vadd.f32 %v4079, %v4080
        %v4082 = vsel %vm464, %v3961, 0.0
        %v4083 = vadd.f32 %v4081, %v4082
        %v4084 = vsel %vm464, %v3962, 0.0
        %v4085 = vadd.f32 %v4083, %v4084
        %v4086 = vrot.slane %v4085, 4
        %v4087 = vadd.f32 %v4085, %v4086
        %v4088 = vrot.slane %v4087, 2
        %v4089 = vadd.f32 %v4087, %v4088
        %v4090 = vrot.slane %v4089, 1
        %v4091 = vadd.f32 %v4089, %v4090
        %v4092 = vsel %vm464, %v3963, 0.0
        %v4093 = vsel %vm464, %v3964, 0.0
        %v4094 = vadd.f32 %v4092, %v4093
        %v4095 = vsel %vm464, %v3965, 0.0
        %v4096 = vadd.f32 %v4094, %v4095
        %v4097 = vsel %vm464, %v3966, 0.0
        %v4098 = vadd.f32 %v4096, %v4097
        %v4099 = vsel %vm464, %v3967, 0.0
        %v4100 = vadd.f32 %v4098, %v4099
        %v4101 = vsel %vm464, %v3968, 0.0
        %v4102 = vadd.f32 %v4100, %v4101
        %v4103 = vsel %vm464, %v3969, 0.0
        %v4104 = vadd.f32 %v4102, %v4103
        %v4105 = vsel %vm464, %v3970, 0.0
        %v4106 = vadd.f32 %v4104, %v4105
        %v4107 = vrot.slane %v4106, 4
        %v4108 = vadd.f32 %v4106, %v4107
        %v4109 = vrot.slane %v4108, 2
        %v4110 = vadd.f32 %v4108, %v4109
        %v4111 = vrot.slane %v4110, 1
        %v4112 = vadd.f32 %v4110, %v4111
        %v4113 = vsel %vm464, %v3971, 0.0
        %v4114 = vsel %vm464, %v3972, 0.0
        %v4115 = vadd.f32 %v4113, %v4114
        %v4116 = vsel %vm464, %v3973, 0.0
        %v4117 = vadd.f32 %v4115, %v4116
        %v4118 = vsel %vm464, %v3974, 0.0
        %v4119 = vadd.f32 %v4117, %v4118
        %v4120 = vsel %vm464, %v3975, 0.0
        %v4121 = vadd.f32 %v4119, %v4120
        %v4122 = vsel %vm464, %v3976, 0.0
        %v4123 = vadd.f32 %v4121, %v4122
        %v4124 = vsel %vm464, %v3977, 0.0
        %v4125 = vadd.f32 %v4123, %v4124
        %v4126 = vsel %vm464, %v3978, 0.0
        %v4127 = vadd.f32 %v4125, %v4126
        %v4128 = vrot.slane %v4127, 4
        %v4129 = vadd.f32 %v4127, %v4128
        %v4130 = vrot.slane %v4129, 2
        %v4131 = vadd.f32 %v4129, %v4130
        %v4132 = vrot.slane %v4131, 1
        %v4133 = vadd.f32 %v4131, %v4132
        %v4134 = vsel %vm464, %v3979, 0.0
        %v4135 = vsel %vm464, %v3980, 0.0
        %v4136 = vadd.f32 %v4134, %v4135
        %v4137 = vsel %vm464, %v3981, 0.0
        %v4138 = vadd.f32 %v4136, %v4137
        %v4139 = vsel %vm464, %v3982, 0.0
        %v4140 = vadd.f32 %v4138, %v4139
        %v4141 = vsel %vm464, %v3983, 0.0
        %v4142 = vadd.f32 %v4140, %v4141
        %v4143 = vsel %vm464, %v3984, 0.0
        %v4144 = vadd.f32 %v4142, %v4143
        %v4145 = vsel %vm464, %v3985, 0.0
        %v4146 = vadd.f32 %v4144, %v4145
        %v4147 = vsel %vm464, %v3986, 0.0
        %v4148 = vadd.f32 %v4146, %v4147
        %v4149 = vrot.slane %v4148, 4
        %v4150 = vadd.f32 %v4148, %v4149
        %v4151 = vrot.slane %v4150, 2
        %v4152 = vadd.f32 %v4150, %v4151
        %v4153 = vrot.slane %v4152, 1
        %v4154 = vadd.f32 %v4152, %v4153
        %v4155 = vmul.f32 %v3920, %v985
        %v4157 = vrot.slane %v4155, 1
        %v4158 = vrot.slane %v4155, 2
        %v4159 = vrot.slane %v4155, 3
        %v4160 = vrot.slane %v4155, 4
        %v4161 = vrot.slane %v4155, 5
        %v4162 = vrot.slane %v4155, 6
        %v4163 = vrot.slane %v4155, 7
        %v4172 = vadd.f32 %v4007, %v4155
        %v4173 = vadd.f32 %v4028, %v4157
        %v4174 = vadd.f32 %v4049, %v4158
        %v4175 = vadd.f32 %v4070, %v4159
        %v4176 = vadd.f32 %v4091, %v4160
        %v4177 = vadd.f32 %v4112, %v4161
        %v4178 = vadd.f32 %v4133, %v4162
        %v4179 = vadd.f32 %v4154, %v4163
        %v4180 = vpack.c.bf16 %v4172, %v4172
        %v4181 = vpack.c.bf16 %v4173, %v4173
        %v4182 = vpack.c.bf16 %v4174, %v4174
        %v4183 = vpack.c.bf16 %v4175, %v4175
        %v4184 = vpack.c.bf16 %v4176, %v4176
        %v4185 = vpack.c.bf16 %v4177, %v4177
        %v4186 = vpack.c.bf16 %v4178, %v4178
        %v4187 = vpack.c.bf16 %v4179, %v4179
        %v4188 = vld [vmem:[%s9] sm:$0xf]
        %v4189 = vld [vmem:[%s9 + $0x4] sm:$0xf]
        %v4190 = vld [vmem:[%s9 + $0x8] sm:$0xf]
        %v4191 = vld [vmem:[%s9 + $0xc] sm:$0xf]
        %v4192 = vld [vmem:[%s10] sm:$0x1]
        %v4194 = vlaneseq
        %v4195 = vshrl.u32 %v4194, 7
        %v4196 = vsub.s32 0, %v4195
        %v4197 = vrot.slane %v4192, %v4196
        %v4207 = vunpack.c.l.b16 %v4180
        %v4208 = vunpack.c.l.b16 %v4181
        %v4209 = vunpack.c.l.b16 %v4182
        %v4210 = vunpack.c.l.b16 %v4183
        %v4211 = vunpack.c.l.b16 %v4184
        %v4212 = vunpack.c.l.b16 %v4185
        %v4213 = vunpack.c.l.b16 %v4186
        %v4214 = vunpack.c.l.b16 %v4187
        %v4215 = vrot.slane %v4208, 7
        %v4216 = vsel %vm798, %v4215, %v4207
        %v4217 = vrot.slane %v4209, 6
        %v4218 = vsel %vm801, %v4217, %v4216
        %v4219 = vrot.slane %v4210, 5
        %v4220 = vsel %vm804, %v4219, %v4218
        %v4221 = vrot.slane %v4211, 4
        %v4222 = vsel %vm807, %v4221, %v4220
        %v4223 = vrot.slane %v4212, 3
        %v4224 = vsel %vm810, %v4223, %v4222
        %v4225 = vrot.slane %v4213, 2
        %v4226 = vsel %vm813, %v4225, %v4224
        %v4227 = vrot.slane %v4214, 1
        %v4228 = vsel %vm816, %v4227, %v4226
        %v4229 = vpack.c.b16 %v4228, %v4228
        %v4234 = vunpack.c.l.b16 %v4188
        %v4235 = vunpack.c.l.b16 %v4189
        %v4236 = vunpack.c.l.b16 %v4190
        %v4237 = vunpack.c.l.b16 %v4191
        %v4238 = vpack.c.b16 %v4235, %v4234
        %v4239 = vpack.c.b16 %v4237, %v4236
        %v4243 = vsel %vm464, %v4229, 0
        %4245 = vmatprep.subr.bf16.mxu0 0
        %4246 = vmatpush1.bf16.msra.mxu0 %v4238
        %4247 = vmatprep.subr.bf16.mxu0 0
        %4248 = vmatpush1.bf16.msra.mxu0 %v4239
        %4249 = vmatprep.subr.bf16.mxu0 0
        %4250 = vmatpush1.bf16.msra.mxu0 0
        %4251 = vmatprep.subr.bf16.mxu0 0
        %4252 = vmatpush1.bf16.msra.mxu0 0
        %4253 = vmatprep.subr.bf16.mxu0 0
        %4254 = vmatpush1.bf16.msra.mxu0 0
        %4255 = vmatprep.subr.bf16.mxu0 0
        %4256 = vmatpush1.bf16.msra.mxu0 0
        %4257 = vmatprep.subr.bf16.mxu0 0
        %4258 = vmatpush1.bf16.msra.mxu0 0
        %4259 = vmatprep.subr.bf16.mxu0 0
        %4260 = vmatpush1.bf16.msra.mxu0 0
        %4261 = vmatprep.subr.bf16.mxu0 0
        %4262 = vmatpush1.bf16.msra.mxu0 0
        %4263 = vmatprep.subr.bf16.mxu0 0
        %4264 = vmatpush1.bf16.msra.mxu0 0
        %4265 = vmatprep.subr.bf16.mxu0 0
        %4266 = vmatpush1.bf16.msra.mxu0 0
        %4267 = vmatprep.subr.bf16.mxu0 0
        %4268 = vmatpush1.bf16.msra.mxu0 0
        %4269 = vmatprep.subr.bf16.mxu0 0
        %4270 = vmatpush1.bf16.msra.mxu0 0
        %4271 = vmatprep.subr.bf16.mxu0 0
        %4272 = vmatpush1.bf16.msra.mxu0 0
        %4273 = vmatprep.subr.bf16.mxu0 0
        %4274 = vmatpush1.bf16.msra.mxu0 0
        %4275 = vmatprep.subr.bf16.mxu0 0
        %4276 = vmatpush1.bf16.msra.mxu0 0
        %4277 = vmatprep.mubr.bf16.mxu0 0
        %4278 = vmatmul.mubr.bf16.gmra.mrb[0].mxu0 %v4243
        %v4279 = vpop.f32.mrb[0].mxu0
        %v4280 = vadd.f32 %v4197, %v4279
        %v4281 = vpop.f32.mrb[0].mxu0
        %v4282 = vpop.f32.mrb[0].mxu0
        %v4283 = vpop.f32.mrb[0].mxu0
        %4284 = vdwg.mxu0
        %vm4285 = vcmask 130048
        %4286 = vst.msk [vmem:[%s382] sm:$0xff] %vm4285, %v4280
        %s4287 = sand.u32 %s269, 1
        %s4288 = scalar_lea.sflag [#allocation3], %s4287
        %s4289 = sand.u32 %s269, 1
        %s4290 = smul.addr %s4289, 8
        %s4291 = scalar_lea.vmem [#allocation2], %s4290
        // Predicated region
        $region65: #{tpu_custom_call.1} parent=63 // pred_check
          %p4292 = pneg %p279
        $region66: #{tpu_custom_call.1} parent=63 // pred_check_branch
          %4294 = sbr.rel (%p4292) target = $region68
        $region67: #{tpu_custom_call.1} parent=63 // pred_region
          %s4296 = ssub.s32 128, 128
          %4297 = vsyncadd %s4288, %s4296
          %s4298 = smul.addr %s25, 128
          %s4299 = scalar_lea.hbm %s11, %s4298
          %s4301 = sshll.u32 %s4291, 4
          %s4302 = int_to_ptr.vmem [resolvable:$true] %s4301
          %4304 = dma.vmem_to_hbm [thread:$0]  %s4302, 128, %s4299, %s4288
        $region68: #{tpu_custom_call.1} parent=63 // pred_fallthru
          _
      $region64: #{tpu_custom_call.1} parent=5 // pred_fallthru
        _
      %p4305 = scmp.le.s32.totalorder 2, %s20
      // Predicated region
      $region69: #{tpu_custom_call.1} parent=5 // pred_check
        %p4306 = pneg %p4305
      $region70: #{tpu_custom_call.1} parent=5 // pred_check_branch
        %4308 = sbr.rel (%p4306) target = $region72
      $region71: #{tpu_custom_call.1} parent=5 // pred_region
        %s4309 = ssub.s32 %s20, 2
        // Predicated region
        $region73: #{tpu_custom_call.1} parent=71 // pred_check
          %p4310 = pneg %p285
        $region74: #{tpu_custom_call.1} parent=71 // pred_check_branch
          %4312 = sbr.rel (%p4310) target = $region76
        $region75: #{tpu_custom_call.1} parent=71 // pred_region
          %s4313 = sand.u32 %s270, 1
          %s4314 = scalar_lea.sflag [#allocation3], %s4313
          %s4315 = sand.u32 %s270, 1
          %s4316 = smul.addr %s4315, 8
          %s4317 = scalar_lea.vmem [#allocation2], %s4316
          %4318 = dma.done %s4314, 128
        $region76: #{tpu_custom_call.1} parent=71 // pred_fallthru
          _
      $region72: #{tpu_custom_call.1} parent=5 // pred_fallthru
        _
    $region6: #{tpu_custom_call.1} parent=1 // loop_footer
      %s24 = sadd.s32 1, %s20
    $region7: #{tpu_custom_call.1} parent=1 // loop_footer_branch
      %19 = sbr.rel target = $region3
    $region8: #{tpu_custom_call.1} parent=1 // loop_exit
      _
    %4319 = vsyncpa [#allocation3], 1
    %s4320 = scalar_lea.sflag [#allocation3], 1
    %4321 = vsyncpa %s4320, 1

</llo_original>
